<compile_context>
chip_gen: v6e
topology: v6e:2x2x1
jax: 0.10.0
libtpu: 0.0.40
codegen_flags: <defaults>
</compile_context>

<pallas_src>
import math

import jax
import jax.numpy as jnp
from jax import lax
from jax.experimental import pallas as pl
from jax.experimental.pallas import tpu as pltpu

# ---------------------------------------------------------------- config ----
BATCH = 2
SEQ = 128                              # one lane-dense tile of sequence
NUM_HEADS = 2
NUM_KV_HEADS = 2                       # cogvlm1: num_kv_heads == num_heads
HEAD_DIM = 128                         # full MXU contraction depth
HIDDEN = NUM_HEADS * HEAD_DIM          # 256
KV_SIZE = NUM_KV_HEADS * HEAD_DIM      # 256
QKV_OUT = HIDDEN + 2 * KV_SIZE         # 768
SM_SCALE = 1.0 / math.sqrt(HEAD_DIM)
NEG_MASK = -1e30                       # finite (NaN-safe) additive mask value

_APPROX_SOFTMAX_RECIP = True           # EUP approx reciprocal; False = exact divide


# ------------------------------------------------------------ fused kernel --
def _fused_kernel(x_ref, mask_ref, cos_ref, sins_ref, causal_ref,
                  wqkv_ref, bqkv_v_ref, wo_ref,
                  o_ref, qkv_sc):
    """One batch element per grid step; everything stays in VMEM."""
    x = x_ref[...].astype(jnp.bfloat16)                    # [S, H] bf16 MXU operand
    is_vis = mask_ref[...] != 0                            # [S, 1] bool

    # ---- expert QKV projection: one concatenated (lang | vis) matmul -------
    qkv_cat = jnp.dot(x, wqkv_ref[...],
                      preferred_element_type=jnp.float32)  # [S, 2*QKV_OUT] f32
    qkv_l = qkv_cat[:, :QKV_OUT]
    qkv_v = qkv_cat[:, QKV_OUT:] + bqkv_v_ref[...]         # vision expert has bias
    qkv_sc[...] = jnp.where(jnp.broadcast_to(is_vis, qkv_l.shape), qkv_v, qkv_l)

    cos = cos_ref[...]                                     # [S, D] f32
    sins = sins_ref[...]                                   # [S, D] f32, sign-folded
    causal = causal_ref[...]                               # [S, S] additive 0 / -1e30

    # ---- per-head RoPE + causal attention (split_qkv = ref column slices) ---
    attn_heads = []
    for h in range(NUM_HEADS):
        q_h = qkv_sc[:, h * HEAD_DIM:(h + 1) * HEAD_DIM]                    # [S, D]
        k_h = qkv_sc[:, HIDDEN + h * HEAD_DIM:HIDDEN + (h + 1) * HEAD_DIM]
        v_h = qkv_sc[:, HIDDEN + KV_SIZE + h * HEAD_DIM:
                     HIDDEN + KV_SIZE + (h + 1) * HEAD_DIM]

        # rotate_half via XLU roll (sign folded into `sins`); softmax scale
        # folded into q (O(S*D)).  RoPE math stays f32; cast at MXU boundary.
        q_h = ((q_h * cos + pltpu.roll(q_h, HEAD_DIM // 2, 1) * sins)
               * SM_SCALE).astype(jnp.bfloat16)
        k_h = (k_h * cos + pltpu.roll(k_h, HEAD_DIM // 2, 1) * sins
               ).astype(jnp.bfloat16)

        # q @ k^T, contraction over D=128, bf16 operands / f32 accumulation
        scores = lax.dot_general(q_h, k_h, (((1,), (1,)), ((), ())),
                                 preferred_element_type=jnp.float32)       # [S, S]
        scores = scores + causal
        m = jnp.max(scores, axis=-1, keepdims=True)
        p = jnp.exp(scores - m)                                             # f32
        denom = jnp.sum(p, axis=-1, keepdims=True)
        attn_h = lax.dot_general(p.astype(jnp.bfloat16), v_h.astype(jnp.bfloat16),
                                 (((1,), (0,)), ((), ())),
                                 preferred_element_type=jnp.float32)       # [S, D]
        if _APPROX_SOFTMAX_RECIP:
            attn_h = attn_h * pl.reciprocal(denom, approx=True)
        else:
            attn_h = attn_h / denom
        attn_heads.append(attn_h.astype(jnp.bfloat16))

    # ---- expert output dense: one concatenated (lang | vis) matmul, no bias --
    attn = jnp.concatenate(attn_heads, axis=1)             # [S, H] bf16, in vregs
    out_cat = jnp.dot(attn, wo_ref[...],
                      preferred_element_type=jnp.float32)  # [S, 2H] f32
    o_ref[...] = jnp.where(jnp.broadcast_to(is_vis, (out_cat.shape[0], HIDDEN)),
                           out_cat[:, HIDDEN:], out_cat[:, :HIDDEN]
                           ).astype(o_ref.dtype)


# ---------------------------------------------------------------- wrapper ---
def vision_expert_attention(hidden_states, cos, sin, vis_mask, params):
    """hidden_states: [B,S,H] f32; cos/sin: [S,D] f32; vis_mask: [B,S] int."""
    b, s, h = hidden_states.shape

    # fold rotate_half's +/-1 sign into the sin table (kernel only rolls + muls)
    sign = jnp.concatenate([-jnp.ones((HEAD_DIM // 2,), jnp.float32),
                            jnp.ones((HEAD_DIM // 2,), jnp.float32)])
    sin_signed = (sin * sign[None, :]).astype(jnp.float32)

    # per-batch token-type mask as [B, S, 1] int32 (indexed by batch grid coord)
    mask3d = vis_mask.astype(jnp.int32)[:, :, None]

    # additive causal bias, fetched once (const index map)
    causal_bias = jnp.where(jnp.tril(jnp.ones((s, s), dtype=bool)),
                            jnp.float32(0.0), jnp.float32(NEG_MASK))

    # bf16 expert weights, concatenated along N: columns [0:*]=lang, [*:]=vision
    w_qkv_cat = jnp.concatenate([params["w_qkv_lang"], params["w_qkv_vis"]],
                                axis=1).astype(jnp.bfloat16)     # [H, 2*QKV_OUT]
    w_o_cat = jnp.concatenate([params["w_o_lang"], params["w_o_vis"]],
                              axis=1).astype(jnp.bfloat16)       # [H, 2H]
    b_qkv_vis = params["b_qkv_vis"].astype(jnp.float32)          # [1, QKV_OUT]

    const = lambda i: (0, 0)   # weights / tables: same block every grid step
    grid_spec = pltpu.PrefetchScalarGridSpec(
        num_scalar_prefetch=0,
        grid=(b,),
        in_specs=[
            pl.BlockSpec((None, s, h), lambda i: (i, 0, 0)),      # x
            pl.BlockSpec((None, s, 1), lambda i: (i, 0, 0)),      # per-batch mask
            pl.BlockSpec((s, HEAD_DIM), const),                   # cos
            pl.BlockSpec((s, HEAD_DIM), const),                   # sin (signed)
            pl.BlockSpec((s, s), const),                          # causal bias
            pl.BlockSpec((h, 2 * QKV_OUT), const),                # W_qkv lang|vis
            pl.BlockSpec((1, QKV_OUT), const),                    # b_qkv vision
            pl.BlockSpec((h, 2 * h), const),                      # W_o lang|vis
        ],
        out_specs=pl.BlockSpec((None, s, h), lambda i: (i, 0, 0)),
        scratch_shapes=[pltpu.VMEM((s, QKV_OUT), jnp.float32)],   # selected qkv
    )

    return pl.pallas_call(
        _fused_kernel,
        out_shape=jax.ShapeDtypeStruct((b, s, h), hidden_states.dtype),
        grid_spec=grid_spec,
        compiler_params=pltpu.CompilerParams(
            dimension_semantics=("parallel",)),                   # 2 TCs on v7x
    )(hidden_states, mask3d, cos, sin_signed, causal_bias,
      w_qkv_cat, b_qkv_vis, w_o_cat)


# -------------------------------------------------------- pure-JAX reference
def reference(hidden_states, cos, sin, vis_mask, params):
    """Same math as the module, with the same bf16-operand / f32-accum matmuls."""
    b, s, h = hidden_states.shape
    w_qkv_l = params["w_qkv_lang"].astype(jnp.bfloat16)
    w_qkv_v = params["w_qkv_vis"].astype(jnp.bfloat16)
    w_o_l = params["w_o_lang"].astype(jnp.bfloat16)
    w_o_v = params["w_o_vis"].astype(jnp.bfloat16)
    b_qkv_v = params["b_qkv_vis"].astype(jnp.float32)

    x = hidden_states.astype(jnp.bfloat16).reshape(b * s, h)
    m = vis_mask.reshape(b * s, 1) != 0

    qkv_l = jnp.dot(x, w_qkv_l, preferred_element_type=jnp.float32)
    qkv_v = jnp.dot(x, w_qkv_v, preferred_element_type=jnp.float32) + b_qkv_v
    qkv = jnp.where(m, qkv_v, qkv_l)

    q = qkv[:, :HIDDEN].reshape(b, s, NUM_HEADS, HEAD_DIM).transpose(0, 2, 1, 3)
    k = qkv[:, HIDDEN:HIDDEN + KV_SIZE].reshape(
        b, s, NUM_KV_HEADS, HEAD_DIM).transpose(0, 2, 1, 3)
    v = qkv[:, HIDDEN + KV_SIZE:].reshape(
        b, s, NUM_KV_HEADS, HEAD_DIM).transpose(0, 2, 1, 3)

    def rot(t):
        d = t.shape[-1] // 2
        return jnp.concatenate([-t[..., d:], t[..., :d]], axis=-1)

    c = cos[None, None]
    sn = sin[None, None]
    q = (q * c + rot(q) * sn) * SM_SCALE
    k = k * c + rot(k) * sn

    scores = jnp.einsum("bhqd,bhkd->bhqk",
                        q.astype(jnp.bfloat16), k.astype(jnp.bfloat16),
                        preferred_element_type=jnp.float32)
    bias = jnp.where(jnp.tril(jnp.ones((s, s), dtype=bool)),
                     jnp.float32(0.0), jnp.float32(NEG_MASK))
    scores = scores + bias[None, None]
    mmax = scores.max(axis=-1, keepdims=True)
    p = jnp.exp(scores - mmax)
    denom = p.sum(axis=-1, keepdims=True)
    attn = jnp.einsum("bhqk,bhkd->bhqd",
                      p.astype(jnp.bfloat16), v.astype(jnp.bfloat16),
                      preferred_element_type=jnp.float32) / denom
    attn = attn.astype(jnp.bfloat16).transpose(0, 2, 1, 3).reshape(b * s, h)

    out_l = jnp.dot(attn, w_o_l, preferred_element_type=jnp.float32)
    out_v = jnp.dot(attn, w_o_v, preferred_element_type=jnp.float32)
    return jnp.where(m, out_v, out_l).reshape(b, s, h).astype(hidden_states.dtype)


# ------------------------------------------------------------------- main ---
if __name__ == "__main__":
    key = jax.random.PRNGKey(0)
    ks = jax.random.split(key, 8)

    hidden_states = jax.random.normal(ks[0], (BATCH, SEQ, HIDDEN), jnp.float32)

    params = {
        "w_qkv_lang": 0.05 * jax.random.normal(ks[1], (HIDDEN, QKV_OUT), jnp.float32),
        "w_qkv_vis": 0.05 * jax.random.normal(ks[2], (HIDDEN, QKV_OUT), jnp.float32),
        "b_qkv_vis": 0.05 * jax.random.normal(ks[3], (1, QKV_OUT), jnp.float32),
        "w_o_lang": 0.05 * jax.random.normal(ks[4], (HIDDEN, HIDDEN), jnp.float32),
        "w_o_vis": 0.05 * jax.random.normal(ks[5], (HIDDEN, HIDDEN), jnp.float32),
    }

    # rotary tables, LLaMA-style
    inv_freq = 1.0 / (10000.0 ** (jnp.arange(0, HEAD_DIM, 2, dtype=jnp.float32)
                                  / HEAD_DIM))
    pos = jnp.arange(SEQ, dtype=jnp.float32)
    freqs = pos[:, None] * inv_freq[None, :]            # [S, D/2]
    emb = jnp.concatenate([freqs, freqs], axis=-1)      # [S, D]
    cos, sin = jnp.cos(emb), jnp.sin(emb)

    # per-batch token types: vision tokens are a contiguous prefix (cogvlm),
    # with a different prefix length per batch element.
    prefix_len = jnp.array([64, 32], dtype=jnp.int32)
    vis_mask = (jnp.arange(SEQ)[None, :] < prefix_len[:, None]).astype(jnp.int32)

    out = vision_expert_attention(hidden_states, cos, sin, vis_mask, params)
    out = jax.block_until_ready(out)

    ref = reference(hidden_states, cos, sin, vis_mask, params)
    assert out.shape == (BATCH, SEQ, HIDDEN)
    # tolerance covers bf16-operand MXU matmuls (both sides use the same casts)
    # plus the EUP approximate reciprocal in the softmax denominator.
    assert jnp.allclose(out, ref, atol=1e-2, rtol=1e-2), "mismatch vs reference"

    print("KERNEL_OK")
</pallas_src>

<mosaic_0001>
module attributes {stable_mosaic.version = 11 : i64} {
  func.func @_fused_kernel(%arg0: i32, %arg1: memref<1x128x256xf32, #tpu.memory_space<vmem>>, %arg2: memref<1x128x1xi32, #tpu.memory_space<vmem>>, %arg3: memref<128x128xf32, #tpu.memory_space<vmem>>, %arg4: memref<128x128xf32, #tpu.memory_space<vmem>>, %arg5: memref<128x128xf32, #tpu.memory_space<vmem>>, %arg6: memref<256x1536xbf16, #tpu.memory_space<vmem>>, %arg7: memref<1x768xf32, #tpu.memory_space<vmem>>, %arg8: memref<256x512xbf16, #tpu.memory_space<vmem>>, %arg9: memref<1x128x256xf32, #tpu.memory_space<vmem>>, %arg10: memref<128x768xf32, #tpu.memory_space<vmem>>) attributes {dimension_semantics = [#tpu.dimension_semantics<parallel>], iteration_bounds = array<i64: 2>, scalar_prefetch = 0 : i64, scratch_operands = 1 : i64, tpu.core_type = #tpu.core_type<tc>, window_params = [{transform_indices = @transform_0, window_bounds = array<i64: 1, 128, 256>}, {transform_indices = @transform_1, window_bounds = array<i64: 1, 128, 1>}, {pipeline_mode = #tpu.pipeline_mode<synchronous>, transform_indices = @transform_2, window_bounds = array<i64: 128, 128>}, {pipeline_mode = #tpu.pipeline_mode<synchronous>, transform_indices = @transform_3, window_bounds = array<i64: 128, 128>}, {pipeline_mode = #tpu.pipeline_mode<synchronous>, transform_indices = @transform_4, window_bounds = array<i64: 128, 128>}, {pipeline_mode = #tpu.pipeline_mode<synchronous>, transform_indices = @transform_5, window_bounds = array<i64: 256, 1536>}, {pipeline_mode = #tpu.pipeline_mode<synchronous>, transform_indices = @transform_6, window_bounds = array<i64: 1, 768>}, {pipeline_mode = #tpu.pipeline_mode<synchronous>, transform_indices = @transform_7, window_bounds = array<i64: 256, 512>}, {transform_indices = @transform_8, window_bounds = array<i64: 1, 128, 256>}]} {
    %c0 = arith.constant 0 : index
    %c0_0 = arith.constant 0 : index
    %c0_1 = arith.constant 0 : index
    %0 = vector.load %arg1[%c0, %c0_0, %c0_1] : memref<1x128x256xf32, #tpu.memory_space<vmem>>, vector<1x128x256xf32>
    %1 = vector.shape_cast %0 : vector<1x128x256xf32> to vector<128x256xf32>
    %2 = arith.truncf %1 : vector<128x256xf32> to vector<128x256xbf16>
    %c0_2 = arith.constant 0 : index
    %c0_3 = arith.constant 0 : index
    %c0_4 = arith.constant 0 : index
    %3 = vector.load %arg2[%c0_2, %c0_3, %c0_4] : memref<1x128x1xi32, #tpu.memory_space<vmem>>, vector<1x128x1xi32>
    %4 = vector.shape_cast %3 : vector<1x128x1xi32> to vector<128x1xi32>
    %c0_i32 = arith.constant 0 : i32
    %5 = vector.broadcast %c0_i32 : i32 to vector<128x1xi32>
    %6 = arith.cmpi ne, %4, %5 : vector<128x1xi32>
    %c0_5 = arith.constant 0 : index
    %c0_6 = arith.constant 0 : index
    %7 = vector.load %arg6[%c0_5, %c0_6] : memref<256x1536xbf16, #tpu.memory_space<vmem>>, vector<256x1536xbf16>
    %cst = arith.constant dense<0.000000e+00> : vector<128x1536xf32>
    %8 = tpu.matmul %2, %7, %cst {dimension_numbers = #tpu.dot_dimension_numbers<[1], [0], [0], [1], [0, 0, 1, 1], [], []>} : vector<128x256xbf16>, vector<256x1536xbf16>, vector<128x1536xf32> -> vector<128x1536xf32>
    %9 = vector.extract_strided_slice %8 {offsets = [0, 0], sizes = [128, 768], strides = [1, 1]} : vector<128x1536xf32> to vector<128x768xf32>
    %10 = vector.extract_strided_slice %8 {offsets = [0, 768], sizes = [128, 768], strides = [1, 1]} : vector<128x1536xf32> to vector<128x768xf32>
    %c0_7 = arith.constant 0 : index
    %c0_8 = arith.constant 0 : index
    %11 = vector.load %arg7[%c0_7, %c0_8] : memref<1x768xf32, #tpu.memory_space<vmem>>, vector<1x768xf32>
    %12 = vector.broadcast %11 : vector<1x768xf32> to vector<128x768xf32>
    %13 = arith.addf %10, %12 : vector<128x768xf32>
    %14 = vector.shape_cast %6 : vector<128x1xi1> to vector<128x1xi1>
    %15 = vector.broadcast %14 : vector<128x1xi1> to vector<128x768xi1>
    %16 = arith.select %15, %13, %9 : vector<128x768xi1>, vector<128x768xf32>
    %c0_9 = arith.constant 0 : index
    %c0_10 = arith.constant 0 : index
    %17 = vector.load %arg10[%c0_9, %c0_10] : memref<128x768xf32, #tpu.memory_space<vmem>>, vector<128x768xf32>
    tpu.vector_store %arg10[%c0_9, %c0_10], %16 {strides = array<i32>} : memref<128x768xf32, #tpu.memory_space<vmem>>, vector<128x768xf32>,
    %c0_11 = arith.constant 0 : index
    %c0_12 = arith.constant 0 : index
    %18 = vector.load %arg3[%c0_11, %c0_12] : memref<128x128xf32, #tpu.memory_space<vmem>>, vector<128x128xf32>
    %c0_13 = arith.constant 0 : index
    %c0_14 = arith.constant 0 : index
    %19 = vector.load %arg4[%c0_13, %c0_14] : memref<128x128xf32, #tpu.memory_space<vmem>>, vector<128x128xf32>
    %c0_15 = arith.constant 0 : index
    %c0_16 = arith.constant 0 : index
    %20 = vector.load %arg5[%c0_15, %c0_16] : memref<128x128xf32, #tpu.memory_space<vmem>>, vector<128x128xf32>
    %c0_17 = arith.constant 0 : index
    %c0_18 = arith.constant 0 : index
    %21 = vector.load %arg10[%c0_17, %c0_18] : memref<128x768xf32, #tpu.memory_space<vmem>>, vector<128x128xf32>
    %c0_19 = arith.constant 0 : index
    %c256 = arith.constant 256 : index
    %22 = vector.load %arg10[%c0_19, %c256] : memref<128x768xf32, #tpu.memory_space<vmem>>, vector<128x128xf32>
    %c0_20 = arith.constant 0 : index
    %c512 = arith.constant 512 : index
    %23 = vector.load %arg10[%c0_20, %c512] : memref<128x768xf32, #tpu.memory_space<vmem>>, vector<128x128xf32>
    %24 = arith.mulf %21, %18 : vector<128x128xf32>
    %c64_i32 = arith.constant 64 : i32
    %25 = tpu.dynamic_rotate %21 by %c64_i32 dim 1 : vector<128x128xf32>, i32 -> vector<128x128xf32>
    %26 = arith.mulf %25, %19 : vector<128x128xf32>
    %27 = arith.addf %24, %26 : vector<128x128xf32>
    %cst_21 = arith.constant 0.0883883461 : f32
    %28 = vector.broadcast %cst_21 : f32 to vector<128x128xf32>
    %29 = arith.mulf %27, %28 : vector<128x128xf32>
    %30 = arith.truncf %29 : vector<128x128xf32> to vector<128x128xbf16>
    %31 = arith.mulf %22, %18 : vector<128x128xf32>
    %c64_i32_22 = arith.constant 64 : i32
    %32 = tpu.dynamic_rotate %22 by %c64_i32_22 dim 1 : vector<128x128xf32>, i32 -> vector<128x128xf32>
    %33 = arith.mulf %32, %19 : vector<128x128xf32>
    %34 = arith.addf %31, %33 : vector<128x128xf32>
    %35 = arith.truncf %34 : vector<128x128xf32> to vector<128x128xbf16>
    %cst_23 = arith.constant dense<0.000000e+00> : vector<128x128xf32>
    %36 = tpu.matmul %30, %35, %cst_23 {dimension_numbers = #tpu.dot_dimension_numbers<[1], [1], [0], [0], [0, 0, 1, 0], [], []>} : vector<128x128xbf16>, vector<128x128xbf16>, vector<128x128xf32> -> vector<128x128xf32>
    %37 = arith.addf %36, %20 : vector<128x128xf32>
    %cst_24 = arith.constant dense<0xFF800000> : vector<128xf32>
    %38 = vector.multi_reduction <maximumf>, %37, %cst_24 [1] : vector<128x128xf32> to vector<128xf32>
    %39 = vector.shape_cast %38 : vector<128xf32> to vector<128x1xf32>
    %40 = vector.broadcast %39 : vector<128x1xf32> to vector<128x128xf32>
    %41 = arith.subf %37, %40 : vector<128x128xf32>
    %42 = math.exp %41 : vector<128x128xf32>
    %cst_25 = arith.constant dense<0.000000e+00> : vector<128xf32>
    %43 = vector.multi_reduction <add>, %42, %cst_25 [1] : vector<128x128xf32> to vector<128xf32>
    %44 = vector.shape_cast %43 : vector<128xf32> to vector<128x1xf32>
    %45 = arith.truncf %42 : vector<128x128xf32> to vector<128x128xbf16>
    %46 = arith.truncf %23 : vector<128x128xf32> to vector<128x128xbf16>
    %cst_26 = arith.constant dense<0.000000e+00> : vector<128x128xf32>
    %47 = tpu.matmul %45, %46, %cst_26 {dimension_numbers = #tpu.dot_dimension_numbers<[1], [0], [0], [1], [0, 0, 1, 1], [], []>} : vector<128x128xbf16>, vector<128x128xbf16>, vector<128x128xf32> -> vector<128x128xf32>
    %48 = tpu.reciprocal %44 {approx = true} : vector<128x1xf32> -> vector<128x1xf32>
    %49 = vector.broadcast %48 : vector<128x1xf32> to vector<128x128xf32>
    %50 = arith.mulf %47, %49 : vector<128x128xf32>
    %51 = arith.truncf %50 : vector<128x128xf32> to vector<128x128xbf16>
    %c0_27 = arith.constant 0 : index
    %c128 = arith.constant 128 : index
    %52 = vector.load %arg10[%c0_27, %c128] : memref<128x768xf32, #tpu.memory_space<vmem>>, vector<128x128xf32>
    %c0_28 = arith.constant 0 : index
    %c384 = arith.constant 384 : index
    %53 = vector.load %arg10[%c0_28, %c384] : memref<128x768xf32, #tpu.memory_space<vmem>>, vector<128x128xf32>
    %c0_29 = arith.constant 0 : index
    %c640 = arith.constant 640 : index
    %54 = vector.load %arg10[%c0_29, %c640] : memref<128x768xf32, #tpu.memory_space<vmem>>, vector<128x128xf32>
    %55 = arith.mulf %52, %18 : vector<128x128xf32>
    %c64_i32_30 = arith.constant 64 : i32
    %56 = tpu.dynamic_rotate %52 by %c64_i32_30 dim 1 : vector<128x128xf32>, i32 -> vector<128x128xf32>
    %57 = arith.mulf %56, %19 : vector<128x128xf32>
    %58 = arith.addf %55, %57 : vector<128x128xf32>
    %cst_31 = arith.constant 0.0883883461 : f32
    %59 = vector.broadcast %cst_31 : f32 to vector<128x128xf32>
    %60 = arith.mulf %58, %59 : vector<128x128xf32>
    %61 = arith.truncf %60 : vector<128x128xf32> to vector<128x128xbf16>
    %62 = arith.mulf %53, %18 : vector<128x128xf32>
    %c64_i32_32 = arith.constant 64 : i32
    %63 = tpu.dynamic_rotate %53 by %c64_i32_32 dim 1 : vector<128x128xf32>, i32 -> vector<128x128xf32>
    %64 = arith.mulf %63, %19 : vector<128x128xf32>
    %65 = arith.addf %62, %64 : vector<128x128xf32>
    %66 = arith.truncf %65 : vector<128x128xf32> to vector<128x128xbf16>
    %cst_33 = arith.constant dense<0.000000e+00> : vector<128x128xf32>
    %67 = tpu.matmul %61, %66, %cst_33 {dimension_numbers = #tpu.dot_dimension_numbers<[1], [1], [0], [0], [0, 0, 1, 0], [], []>} : vector<128x128xbf16>, vector<128x128xbf16>, vector<128x128xf32> -> vector<128x128xf32>
    %68 = arith.addf %67, %20 : vector<128x128xf32>
    %cst_34 = arith.constant dense<0xFF800000> : vector<128xf32>
    %69 = vector.multi_reduction <maximumf>, %68, %cst_34 [1] : vector<128x128xf32> to vector<128xf32>
    %70 = vector.shape_cast %69 : vector<128xf32> to vector<128x1xf32>
    %71 = vector.broadcast %70 : vector<128x1xf32> to vector<128x128xf32>
    %72 = arith.subf %68, %71 : vector<128x128xf32>
    %73 = math.exp %72 : vector<128x128xf32>
    %cst_35 = arith.constant dense<0.000000e+00> : vector<128xf32>
    %74 = vector.multi_reduction <add>, %73, %cst_35 [1] : vector<128x128xf32> to vector<128xf32>
    %75 = vector.shape_cast %74 : vector<128xf32> to vector<128x1xf32>
    %76 = arith.truncf %73 : vector<128x128xf32> to vector<128x128xbf16>
    %77 = arith.truncf %54 : vector<128x128xf32> to vector<128x128xbf16>
    %cst_36 = arith.constant dense<0.000000e+00> : vector<128x128xf32>
    %78 = tpu.matmul %76, %77, %cst_36 {dimension_numbers = #tpu.dot_dimension_numbers<[1], [0], [0], [1], [0, 0, 1, 1], [], []>} : vector<128x128xbf16>, vector<128x128xbf16>, vector<128x128xf32> -> vector<128x128xf32>
    %79 = tpu.reciprocal %75 {approx = true} : vector<128x1xf32> -> vector<128x1xf32>
    %80 = vector.broadcast %79 : vector<128x1xf32> to vector<128x128xf32>
    %81 = arith.mulf %78, %80 : vector<128x128xf32>
    %82 = arith.truncf %81 : vector<128x128xf32> to vector<128x128xbf16>
    %83 = tpu.concatenate %51, %82 in 1 : vector<128x128xbf16>, vector<128x128xbf16> -> vector<128x256xbf16>
    %c0_37 = arith.constant 0 : index
    %c0_38 = arith.constant 0 : index
    %84 = vector.load %arg8[%c0_37, %c0_38] : memref<256x512xbf16, #tpu.memory_space<vmem>>, vector<256x512xbf16>
    %cst_39 = arith.constant dense<0.000000e+00> : vector<128x512xf32>
    %85 = tpu.matmul %83, %84, %cst_39 {dimension_numbers = #tpu.dot_dimension_numbers<[1], [0], [0], [1], [0, 0, 1, 1], [], []>} : vector<128x256xbf16>, vector<256x512xbf16>, vector<128x512xf32> -> vector<128x512xf32>
    %86 = vector.shape_cast %6 : vector<128x1xi1> to vector<128x1xi1>
    %87 = vector.broadcast %86 : vector<128x1xi1> to vector<128x256xi1>
    %88 = vector.extract_strided_slice %85 {offsets = [0, 256], sizes = [128, 256], strides = [1, 1]} : vector<128x512xf32> to vector<128x256xf32>
    %89 = vector.extract_strided_slice %85 {offsets = [0, 0], sizes = [128, 256], strides = [1, 1]} : vector<128x512xf32> to vector<128x256xf32>
    %90 = arith.select %87, %88, %89 : vector<128x256xi1>, vector<128x256xf32>
    %c0_40 = arith.constant 0 : index
    %c0_41 = arith.constant 0 : index
    %c0_42 = arith.constant 0 : index
    %91 = vector.load %arg9[%c0_40, %c0_41, %c0_42] : memref<1x128x256xf32, #tpu.memory_space<vmem>>, vector<1x128x256xf32>
    %92 = vector.shape_cast %91 : vector<1x128x256xf32> to vector<128x256xf32>
    %93 = vector.shape_cast %90 : vector<128x256xf32> to vector<1x128x256xf32>
    tpu.vector_store %arg9[%c0_40, %c0_41, %c0_42], %93 {strides = array<i32>} : memref<1x128x256xf32, #tpu.memory_space<vmem>>, vector<1x128x256xf32>,
    return
  }
  func.func @transform_0(%arg0: i32) -> (i32, i32, i32) {
    %c0_i32 = arith.constant 0 : i32
    %c0_i32_0 = arith.constant 0 : i32
    %c0_i32_1 = arith.constant 0 : i32
    return %arg0, %c0_i32, %c0_i32_0 : i32, i32, i32
  }
  func.func @transform_1(%arg0: i32) -> (i32, i32, i32) {
    %c0_i32 = arith.constant 0 : i32
    %c0_i32_0 = arith.constant 0 : i32
    %c0_i32_1 = arith.constant 0 : i32
    return %arg0, %c0_i32, %c0_i32_0 : i32, i32, i32
  }
  func.func @transform_2(%arg0: i32) -> (i32, i32) {
    %c0_i32 = arith.constant 0 : i32
    %c0_i32_0 = arith.constant 0 : i32
    %c0_i32_1 = arith.constant 0 : i32
    return %c0_i32, %c0_i32_0 : i32, i32
  }
  func.func @transform_3(%arg0: i32) -> (i32, i32) {
    %c0_i32 = arith.constant 0 : i32
    %c0_i32_0 = arith.constant 0 : i32
    %c0_i32_1 = arith.constant 0 : i32
    return %c0_i32, %c0_i32_0 : i32, i32
  }
  func.func @transform_4(%arg0: i32) -> (i32, i32) {
    %c0_i32 = arith.constant 0 : i32
    %c0_i32_0 = arith.constant 0 : i32
    %c0_i32_1 = arith.constant 0 : i32
    return %c0_i32, %c0_i32_0 : i32, i32
  }
  func.func @transform_5(%arg0: i32) -> (i32, i32) {
    %c0_i32 = arith.constant 0 : i32
    %c0_i32_0 = arith.constant 0 : i32
    %c0_i32_1 = arith.constant 0 : i32
    return %c0_i32, %c0_i32_0 : i32, i32
  }
  func.func @transform_6(%arg0: i32) -> (i32, i32) {
    %c0_i32 = arith.constant 0 : i32
    %c0_i32_0 = arith.constant 0 : i32
    %c0_i32_1 = arith.constant 0 : i32
    return %c0_i32, %c0_i32_0 : i32, i32
  }
  func.func @transform_7(%arg0: i32) -> (i32, i32) {
    %c0_i32 = arith.constant 0 : i32
    %c0_i32_0 = arith.constant 0 : i32
    %c0_i32_1 = arith.constant 0 : i32
    return %c0_i32, %c0_i32_0 : i32, i32
  }
  func.func @transform_8(%arg0: i32) -> (i32, i32, i32) {
    %c0_i32 = arith.constant 0 : i32
    %c0_i32_0 = arith.constant 0 : i32
    %c0_i32_1 = arith.constant 0 : i32
    return %arg0, %c0_i32, %c0_i32_0 : i32, i32, i32
  }
}

</mosaic_0001>

<llo_original>
// kernel: tpu_custom_call.1
$region0: #{tpu_custom_call.1}
  #allocation0 [shape = 'u32[]', space=smem, size = 0x4, offset = 0x4, fixed_abs, tag = 'smem constant byte address 0x4 - core index']
  #allocation1 [shape = 'u32[144,128]{1,0:T(1,128)}', space=vmem, size = 0x12000, scoped, tag = 'internal scratch']
  #allocation2 [shape = 'f32[128,768]{1,0:T(8,128)}', space=vmem, size = 0x60000, scoped, tag = 'scratch operand']
  %s0 = inlined_call_operand.hbm [shape: f32[2,128,256], index: 0, kind: input, shape index: {}]
  %s1 = inlined_call_operand.vmem [shape: s32[2,128,1], index: 1, kind: input, shape index: {}]
  %s2 = inlined_call_operand.vmem [shape: f32[128,128], index: 2, kind: input, shape index: {}]
  %s3 = inlined_call_operand.vmem [shape: f32[128,128], index: 3, kind: input, shape index: {}]
  %s4 = inlined_call_operand.hbm [shape: f32[128,128], index: 4, kind: input, shape index: {}]
  %s5 = inlined_call_operand.hbm [shape: bf16[256,1536], index: 5, kind: input, shape index: {}]
  %s6 = inlined_call_operand.vmem [shape: f32[1,768], index: 6, kind: input, shape index: {}]
  %s7 = inlined_call_operand.hbm [shape: bf16[256,512], index: 7, kind: input, shape index: {}]
  %s8 = inlined_call_operand.hbm [shape: f32[2,128,256], index: 8, kind: output, shape index: {}]
  %s9 = sld [smem:[#allocation0]]
  $region81: #{tpu_custom_call.1} parent=0
    _
  %s11 = ssub.s32 1, %s9
  %s12 = scalar_select 0, %s11, %s9
  $region1: #{tpu_custom_call.1} parent=0
    #allocation3 [shape = 'u8[262144]{0}', space=vmem, size = 0x40000, scoped, tag = 'input window, operand 0']
    #allocation4 [shape = 's32[2]{0}', space=sflag, size = 0x8, scoped, tag = 'scoped memory for tpu_custom_call.1']
    #allocation5 [shape = 's32[2]{0}', space=sflag, size = 0x8, scoped, tag = 'scoped memory for tpu_custom_call.1']
    #allocation6 [shape = 'u8[65536]{0}', space=vmem, size = 0x10000, scoped, tag = 'input window, operand 4, single buffered']
    #allocation7 [shape = 's32[1]{0}', space=sflag, size = 0x4, scoped, tag = 'scoped memory for tpu_custom_call.1']
    #allocation8 [shape = 'u8[786432]{0}', space=vmem, size = 0xc0000, scoped, tag = 'input window, operand 5, single buffered']
    #allocation9 [shape = 'u8[262144]{0}', space=vmem, size = 0x40000, scoped, tag = 'input window, operand 7, single buffered']
    #allocation10 [shape = 's32[1]{0}', space=sflag, size = 0x4, scoped, tag = 'scoped memory for tpu_custom_call.1']
    #allocation11 [shape = 'u8[262144]{0}', space=vmem, size = 0x40000, scoped, tag = 'output window, operand 0']
    %13 = vsyncpa [#allocation4], 0
    %s14 = scalar_lea.sflag [#allocation4], 1
    %15 = vsyncpa %s14, 0
    %16 = vsyncpa [#allocation7], 0
    %17 = vsyncpa [#allocation10], 0
    %18 = vsyncpa [#allocation5], 0
    %s19 = scalar_lea.sflag [#allocation5], 1
    %20 = vsyncpa %s19, 0
    loop: start=0, step=1, limit=4
    $region2: #{tpu_custom_call.1} parent=1 // loop_pre_header
      _
    $region3: #{tpu_custom_call.1} parent=1 // loop_header
      %s22 = sphi 0, %s26
      %p23 = scmp.ge.s32.totalorder %s22, 4
      %s32 = sphi 0, %s34
      %s35 = sphi 0, %s32
      %s36 = sphi 0, %s35
      %s52 = sphi 0, %s36
      %s58 = sphi 0, %s60
      %s61 = sphi 0, %s58
      %s62 = sphi 0, %s61
      %s78 = sphi 0, %s62
      %s82 = sphi 0, %s82
      %s84 = sphi 0, %s82
      %s85 = sphi 0, %s84
      %s99 = sphi 0, %s85
      %s103 = sphi 0, %s103
      %s105 = sphi 0, %s103
      %s106 = sphi 0, %s105
      %s120 = sphi 0, %s106
      %s124 = sphi 0, %s124
      %s126 = sphi 0, %s124
      %s127 = sphi 0, %s126
      %s141 = sphi 0, %s127
      %s145 = sphi 0, %s145
      %s147 = sphi 0, %s145
      %s148 = sphi 0, %s147
      %s162 = sphi 0, %s148
      %s166 = sphi 0, %s166
      %s168 = sphi 0, %s166
      %s169 = sphi 0, %s168
      %s183 = sphi 0, %s169
      %s187 = sphi 0, %s187
      %s189 = sphi 0, %s187
      %s190 = sphi 0, %s189
      %s204 = sphi 0, %s190
      %s210 = sphi 0, %s212
      %s213 = sphi 0, %s210
      %s214 = sphi 0, %s213
      %s230 = sphi 0, %s214
    $region4: #{tpu_custom_call.1} parent=1 // loop_header_branch
      %25 = sbr.rel (%p23) target = $region8
    $region5: #{tpu_custom_call.1} parent=1 // loop_body
      %s27 = ssub.s32 %s22, 1
      %s28 = ssub.s32 %s22, 2
      %s29 = sadd.s32 %s22, 1
      %s30 = ssub.s32 %s22, %s29
      %p31 = scmp.eq.s32.totalorder %s30, 0
      %s33 = sadd.s32 %s32, 1
      %s34 = scalar_select %p31, %s32, %s33
      %p37 = pneg %p31
      %p38 = scmp.eq.s32.totalorder %s22, 1
      %p39 = por %p37, %p38
      %p40 = scmp.ne.s32.totalorder %s32, %s35
      %p41 = scmp.eq.s32.totalorder %s22, 0
      %p42 = por %p40, %p41
      %p43 = scmp.ne.s32.totalorder %s32, %s35
      %p44 = scmp.eq.s32.totalorder %s27, 1
      %p45 = por %p43, %p44
      %p46 = scmp.ne.s32.totalorder %s35, %s36
      %p47 = scmp.eq.s32.totalorder %s27, 0
      %p48 = por %p46, %p47
      %p49 = scmp.ne.s32.totalorder %s35, %s36
      %p50 = scmp.eq.s32.totalorder %s28, 1
      %p51 = por %p49, %p50
      %p53 = scmp.ne.s32.totalorder %s36, %s52
      %p54 = scmp.eq.s32.totalorder %s28, 0
      %p55 = por %p53, %p54
      %s56 = ssub.s32 %s22, %s29
      %p57 = scmp.eq.s32.totalorder %s56, 0
      %s59 = sadd.s32 %s58, 1
      %s60 = scalar_select %p57, %s58, %s59
      %p63 = pneg %p57
      %p64 = scmp.eq.s32.totalorder %s22, 1
      %p65 = por %p63, %p64
      %p66 = scmp.ne.s32.totalorder %s58, %s61
      %p67 = scmp.eq.s32.totalorder %s22, 0
      %p68 = por %p66, %p67
      %p69 = scmp.ne.s32.totalorder %s58, %s61
      %p70 = scmp.eq.s32.totalorder %s27, 1
      %p71 = por %p69, %p70
      %p72 = scmp.ne.s32.totalorder %s61, %s62
      %p73 = scmp.eq.s32.totalorder %s27, 0
      %p74 = por %p72, %p73
      %p75 = scmp.ne.s32.totalorder %s61, %s62
      %p76 = scmp.eq.s32.totalorder %s28, 1
      %p77 = por %p75, %p76
      %p79 = scmp.ne.s32.totalorder %s62, %s78
      %p80 = scmp.eq.s32.totalorder %s28, 0
      %p81 = por %p79, %p80
      %s83 = sadd.s32 %s82, 1
      %p86 = scmp.eq.s32.totalorder %s22, 1
      %p87 = scmp.ne.s32.totalorder %s82, %s84
      %p88 = scmp.eq.s32.totalorder %s22, 0
      %p89 = por %p87, %p88
      %p90 = scmp.ne.s32.totalorder %s82, %s84
      %p91 = scmp.eq.s32.totalorder %s27, 1
      %p92 = por %p90, %p91
      %p93 = scmp.ne.s32.totalorder %s84, %s85
      %p94 = scmp.eq.s32.totalorder %s27, 0
      %p95 = por %p93, %p94
      %p96 = scmp.ne.s32.totalorder %s84, %s85
      %p97 = scmp.eq.s32.totalorder %s28, 1
      %p98 = por %p96, %p97
      %p100 = scmp.ne.s32.totalorder %s85, %s99
      %p101 = scmp.eq.s32.totalorder %s28, 0
      %p102 = por %p100, %p101
      %s104 = sadd.s32 %s103, 1
      %p107 = scmp.eq.s32.totalorder %s22, 1
      %p108 = scmp.ne.s32.totalorder %s103, %s105
      %p109 = scmp.eq.s32.totalorder %s22, 0
      %p110 = por %p108, %p109
      %p111 = scmp.ne.s32.totalorder %s103, %s105
      %p112 = scmp.eq.s32.totalorder %s27, 1
      %p113 = por %p111, %p112
      %p114 = scmp.ne.s32.totalorder %s105, %s106
      %p115 = scmp.eq.s32.totalorder %s27, 0
      %p116 = por %p114, %p115
      %p117 = scmp.ne.s32.totalorder %s105, %s106
      %p118 = scmp.eq.s32.totalorder %s28, 1
      %p119 = por %p117, %p118
      %p121 = scmp.ne.s32.totalorder %s106, %s120
      %p122 = scmp.eq.s32.totalorder %s28, 0
      %p123 = por %p121, %p122
      %s125 = sadd.s32 %s124, 1
      %p128 = scmp.eq.s32.totalorder %s22, 1
      %p129 = scmp.ne.s32.totalorder %s124, %s126
      %p130 = scmp.eq.s32.totalorder %s22, 0
      %p131 = por %p129, %p130
      %p132 = scmp.ne.s32.totalorder %s124, %s126
      %p133 = scmp.eq.s32.totalorder %s27, 1
      %p134 = por %p132, %p133
      %p135 = scmp.ne.s32.totalorder %s126, %s127
      %p136 = scmp.eq.s32.totalorder %s27, 0
      %p137 = por %p135, %p136
      %p138 = scmp.ne.s32.totalorder %s126, %s127
      %p139 = scmp.eq.s32.totalorder %s28, 1
      %p140 = por %p138, %p139
      %p142 = scmp.ne.s32.totalorder %s127, %s141
      %p143 = scmp.eq.s32.totalorder %s28, 0
      %p144 = por %p142, %p143
      %s146 = sadd.s32 %s145, 1
      %p149 = scmp.eq.s32.totalorder %s22, 1
      %p150 = scmp.ne.s32.totalorder %s145, %s147
      %p151 = scmp.eq.s32.totalorder %s22, 0
      %p152 = por %p150, %p151
      %p153 = scmp.ne.s32.totalorder %s145, %s147
      %p154 = scmp.eq.s32.totalorder %s27, 1
      %p155 = por %p153, %p154
      %p156 = scmp.ne.s32.totalorder %s147, %s148
      %p157 = scmp.eq.s32.totalorder %s27, 0
      %p158 = por %p156, %p157
      %p159 = scmp.ne.s32.totalorder %s147, %s148
      %p160 = scmp.eq.s32.totalorder %s28, 1
      %p161 = por %p159, %p160
      %p163 = scmp.ne.s32.totalorder %s148, %s162
      %p164 = scmp.eq.s32.totalorder %s28, 0
      %p165 = por %p163, %p164
      %s167 = sadd.s32 %s166, 1
      %p170 = scmp.eq.s32.totalorder %s22, 1
      %p171 = scmp.ne.s32.totalorder %s166, %s168
      %p172 = scmp.eq.s32.totalorder %s22, 0
      %p173 = por %p171, %p172
      %p174 = scmp.ne.s32.totalorder %s166, %s168
      %p175 = scmp.eq.s32.totalorder %s27, 1
      %p176 = por %p174, %p175
      %p177 = scmp.ne.s32.totalorder %s168, %s169
      %p178 = scmp.eq.s32.totalorder %s27, 0
      %p179 = por %p177, %p178
      %p180 = scmp.ne.s32.totalorder %s168, %s169
      %p181 = scmp.eq.s32.totalorder %s28, 1
      %p182 = por %p180, %p181
      %p184 = scmp.ne.s32.totalorder %s169, %s183
      %p185 = scmp.eq.s32.totalorder %s28, 0
      %p186 = por %p184, %p185
      %s188 = sadd.s32 %s187, 1
      %p191 = scmp.eq.s32.totalorder %s22, 1
      %p192 = scmp.ne.s32.totalorder %s187, %s189
      %p193 = scmp.eq.s32.totalorder %s22, 0
      %p194 = por %p192, %p193
      %p195 = scmp.ne.s32.totalorder %s187, %s189
      %p196 = scmp.eq.s32.totalorder %s27, 1
      %p197 = por %p195, %p196
      %p198 = scmp.ne.s32.totalorder %s189, %s190
      %p199 = scmp.eq.s32.totalorder %s27, 0
      %p200 = por %p198, %p199
      %p201 = scmp.ne.s32.totalorder %s189, %s190
      %p202 = scmp.eq.s32.totalorder %s28, 1
      %p203 = por %p201, %p202
      %p205 = scmp.ne.s32.totalorder %s190, %s204
      %p206 = scmp.eq.s32.totalorder %s28, 0
      %p207 = por %p205, %p206
      %s208 = ssub.s32 %s22, %s29
      %p209 = scmp.eq.s32.totalorder %s208, 0
      %s211 = sadd.s32 %s210, 1
      %s212 = scalar_select %p209, %s210, %s211
      %p215 = pneg %p209
      %p216 = scmp.eq.s32.totalorder %s22, 1
      %p217 = por %p215, %p216
      %p218 = scmp.ne.s32.totalorder %s210, %s213
      %p219 = scmp.eq.s32.totalorder %s22, 0
      %p220 = por %p218, %p219
      %p221 = scmp.ne.s32.totalorder %s210, %s213
      %p222 = scmp.eq.s32.totalorder %s27, 1
      %p223 = por %p221, %p222
      %p224 = scmp.ne.s32.totalorder %s213, %s214
      %p225 = scmp.eq.s32.totalorder %s27, 0
      %p226 = por %p224, %p225
      %p227 = scmp.ne.s32.totalorder %s213, %s214
      %p228 = scmp.eq.s32.totalorder %s28, 1
      %p229 = por %p227, %p228
      %p231 = scmp.ne.s32.totalorder %s214, %s230
      %p232 = scmp.eq.s32.totalorder %s28, 0
      %p233 = por %p231, %p232
      %p234 = scmp.le.s32.totalorder 1, %s22
      %p235 = scmp.lt.s32.totalorder %s22, 3
      %p236 = pnand %p234, %p235
      %p237 = pneg %p236
      // Predicated region
      $region9: #{tpu_custom_call.1} parent=5 // pred_check
        _
      $region10: #{tpu_custom_call.1} parent=5 // pred_check_branch
        %239 = sbr.rel (%p236) target = $region12
      $region11: #{tpu_custom_call.1} parent=5 // pred_region
        %s240 = ssub.s32 %s22, 1
        // Predicated region
        $region13: #{tpu_custom_call.1} parent=11 // pred_check
          %p241 = pneg %p95
        $region14: #{tpu_custom_call.1} parent=11 // pred_check_branch
          %243 = sbr.rel (%p241) target = $region16
        $region15: #{tpu_custom_call.1} parent=11 // pred_region
          _
        $region16: #{tpu_custom_call.1} parent=11 // pred_fallthru
          _
        // Predicated region
        $region17: #{tpu_custom_call.1} parent=11 // pred_check
          %p244 = pneg %p116
        $region18: #{tpu_custom_call.1} parent=11 // pred_check_branch
          %246 = sbr.rel (%p244) target = $region20
        $region19: #{tpu_custom_call.1} parent=11 // pred_region
          _
        $region20: #{tpu_custom_call.1} parent=11 // pred_fallthru
          _
        // Predicated region
        $region21: #{tpu_custom_call.1} parent=11 // pred_check
          %p247 = pneg %p137
        $region22: #{tpu_custom_call.1} parent=11 // pred_check_branch
          %249 = sbr.rel (%p247) target = $region24
        $region23: #{tpu_custom_call.1} parent=11 // pred_region
          %s251 = ssub.s32 2048, 2048
          %252 = vsyncadd [#allocation7], %s251
          %s253 = sshll.u32 [#allocation6], 4
          %s254 = int_to_ptr.vmem [resolvable:$true] %s253
          %259 = dma.hbm_to_vmem [thread:$0]  %s4, 2048, %s254, [#allocation7], 128, 128, 8
        $region24: #{tpu_custom_call.1} parent=11 // pred_fallthru
          _
        // Predicated region
        $region25: #{tpu_custom_call.1} parent=11 // pred_check
          %p260 = pneg %p158
        $region26: #{tpu_custom_call.1} parent=11 // pred_check_branch
          %262 = sbr.rel (%p260) target = $region28
        $region27: #{tpu_custom_call.1} parent=11 // pred_region
          %s264 = ssub.s32 24576, 24576
          %265 = vsyncadd [#allocation7], %s264
          %s266 = sshll.u32 [#allocation8], 4
          %s267 = int_to_ptr.vmem [resolvable:$true] %s266
          %272 = dma.hbm_to_vmem [thread:$0]  %s5, 24576, %s267, [#allocation7], 768, 768, 48
        $region28: #{tpu_custom_call.1} parent=11 // pred_fallthru
          _
        // Predicated region
        $region29: #{tpu_custom_call.1} parent=11 // pred_check
          %p273 = pneg %p179
        $region30: #{tpu_custom_call.1} parent=11 // pred_check_branch
          %275 = sbr.rel (%p273) target = $region32
        $region31: #{tpu_custom_call.1} parent=11 // pred_region
          _
        $region32: #{tpu_custom_call.1} parent=11 // pred_fallthru
          _
        // Predicated region
        $region33: #{tpu_custom_call.1} parent=11 // pred_check
          %p276 = pneg %p200
        $region34: #{tpu_custom_call.1} parent=11 // pred_check_branch
          %278 = sbr.rel (%p276) target = $region36
        $region35: #{tpu_custom_call.1} parent=11 // pred_region
          %s280 = ssub.s32 8192, 8192
          %281 = vsyncadd [#allocation10], %s280
          %s282 = sshll.u32 [#allocation9], 4
          %s283 = int_to_ptr.vmem [resolvable:$true] %s282
          %288 = dma.hbm_to_vmem [thread:$0]  %s7, 8192, %s283, [#allocation10], 256, 256, 16
        $region36: #{tpu_custom_call.1} parent=11 // pred_fallthru
          _
      $region12: #{tpu_custom_call.1} parent=5 // pred_fallthru
        _
      %p289 = scmp.lt.s32.totalorder %s22, 2
      // Predicated region
      $region37: #{tpu_custom_call.1} parent=5 // pred_check
        %p290 = pneg %p289
      $region38: #{tpu_custom_call.1} parent=5 // pred_check_branch
        %292 = sbr.rel (%p290) target = $region40
      $region39: #{tpu_custom_call.1} parent=5 // pred_region
        // Predicated region
        $region41: #{tpu_custom_call.1} parent=39 // pred_check
          %p293 = pneg %p42
        $region42: #{tpu_custom_call.1} parent=39 // pred_check_branch
          %295 = sbr.rel (%p293) target = $region44
        $region43: #{tpu_custom_call.1} parent=39 // pred_region
          %s296 = sand.u32 %s32, 1
          %s297 = scalar_lea.sflag [#allocation4], %s296
          %s298 = sand.u32 %s32, 1
          %s299 = smul.addr %s298, 256
          %s300 = scalar_lea.vmem [#allocation3], %s299
          %s302 = ssub.s32 4096, 4096
          %303 = vsyncadd %s297, %s302
          %s304 = smul.addr %s22, 32
          %s305 = smul.addr %s304, 128
          %s306 = scalar_lea.hbm %s0, %s305
          %s307 = sshll.u32 %s300, 4
          %s308 = int_to_ptr.vmem [resolvable:$true] %s307
          %313 = dma.hbm_to_vmem [thread:$0]  %s306, 4096, %s308, %s297, 256, 256, 16
        $region44: #{tpu_custom_call.1} parent=39 // pred_fallthru
          _
        // Predicated region
        $region45: #{tpu_custom_call.1} parent=39 // pred_check
          %p314 = pneg %p68
        $region46: #{tpu_custom_call.1} parent=39 // pred_check_branch
          %316 = sbr.rel (%p314) target = $region48
        $region47: #{tpu_custom_call.1} parent=39 // pred_region
          %p317 = scmp.lt.s32.totalorder %s22, 1
          %s318 = scalar_select %p317, %s22, 1
          %s319 = smul.addr %s318, 16
          %s320 = smul.addr %s319, 8
          %s321 = scalar_lea.vmem %s1, %s320
        $region48: #{tpu_custom_call.1} parent=39 // pred_fallthru
          _
      $region40: #{tpu_custom_call.1} parent=5 // pred_fallthru
        _
      %p322 = scmp.le.s32.totalorder 1, %s22
      %p323 = scmp.lt.s32.totalorder %s22, 3
      %p324 = pnand %p322, %p323
      %p325 = pneg %p324
      // Predicated region
      $region49: #{tpu_custom_call.1} parent=5 // pred_check
        _
      $region50: #{tpu_custom_call.1} parent=5 // pred_check_branch
        %327 = sbr.rel (%p324) target = $region52
      $region51: #{tpu_custom_call.1} parent=5 // pred_region
        %s328 = ssub.s32 %s22, 1
        %s329 = sand.u32 %s35, 1
        %s330 = scalar_lea.sflag [#allocation4], %s329
        %s331 = sand.u32 %s35, 1
        %s332 = smul.addr %s331, 256
        %s333 = scalar_lea.vmem [#allocation3], %s332
        // Predicated region
        $region53: #{tpu_custom_call.1} parent=51 // pred_check
          %p334 = pneg %p48
        $region54: #{tpu_custom_call.1} parent=51 // pred_check_branch
          %336 = sbr.rel (%p334) target = $region56
        $region55: #{tpu_custom_call.1} parent=51 // pred_region
          %337 = dma.done %s330, 4096
        $region56: #{tpu_custom_call.1} parent=51 // pred_fallthru
          _
        // Predicated region
        $region57: #{tpu_custom_call.1} parent=51 // pred_check
          %p338 = pneg %p137
        $region58: #{tpu_custom_call.1} parent=51 // pred_check_branch
          %340 = sbr.rel (%p338) target = $region60
        $region59: #{tpu_custom_call.1} parent=51 // pred_region
          %341 = dma.done [#allocation7], 2048
        $region60: #{tpu_custom_call.1} parent=51 // pred_fallthru
          _
        // Predicated region
        $region61: #{tpu_custom_call.1} parent=51 // pred_check
          %p342 = pneg %p158
        $region62: #{tpu_custom_call.1} parent=51 // pred_check_branch
          %344 = sbr.rel (%p342) target = $region64
        $region63: #{tpu_custom_call.1} parent=51 // pred_region
          %345 = dma.done [#allocation7], 24576
        $region64: #{tpu_custom_call.1} parent=51 // pred_fallthru
          _
        // Predicated region
        $region65: #{tpu_custom_call.1} parent=51 // pred_check
          %p346 = pneg %p200
        $region66: #{tpu_custom_call.1} parent=51 // pred_check_branch
          %348 = sbr.rel (%p346) target = $region68
        $region67: #{tpu_custom_call.1} parent=51 // pred_region
          %349 = dma.done [#allocation10], 8192
        $region68: #{tpu_custom_call.1} parent=51 // pred_fallthru
          _
        %s350 = sand.u32 %s35, 1
        %s351 = scalar_lea.sflag [#allocation4], %s350
        %s352 = sand.u32 %s35, 1
        %s353 = smul.addr %s352, 256
        %s354 = scalar_lea.vmem [#allocation3], %s353
        %p355 = pneg %p48
        %p356 = pneg %p45
        %p357 = scmp.lt.s32.totalorder %s27, 1
        %s358 = scalar_select %p357, %s27, 1
        %s359 = smul.addr %s358, 16
        %s360 = smul.addr %s359, 8
        %s361 = scalar_lea.vmem %s1, %s360
        %p362 = pneg %p74
        %p363 = pneg %p71
        %p364 = pneg %p95
        %p365 = pneg %p92
        %p366 = pneg %p116
        %p367 = pneg %p113
        %p368 = pneg %p137
        %p369 = pneg %p134
        %p370 = pneg %p158
        %p371 = pneg %p155
        %p372 = pneg %p179
        %p373 = pneg %p176
        %p374 = pneg %p200
        %p375 = pneg %p197
        %p376 = pneg %p226
        %p377 = pneg %p223
        %s378 = sand.u32 %s213, 1
        %s379 = scalar_lea.sflag [#allocation5], %s378
        %s380 = sand.u32 %s213, 1
        %s381 = smul.addr %s380, 256
        %s382 = scalar_lea.vmem [#allocation11], %s381
        %p383 = scmp.lt.s32.totalorder %s27, 1
        %s384 = scalar_select %p383, %s27, 1
        %s385 = smul.addr %s384, 16
        %s386 = smul.addr %s385, 8
        %s387 = scalar_lea.vmem %s1, %s386
        %v389 = vld [vmem:[%s333] sm:$0xff]
        %v390 = vld [vmem:[%s333 + $0x8] sm:$0xff]
        %v391 = vld [vmem:[%s333 + $0x10] sm:$0xff]
        %v392 = vld [vmem:[%s333 + $0x18] sm:$0xff]
        %v393 = vld [vmem:[%s333 + $0x20] sm:$0xff]
        %v394 = vld [vmem:[%s333 + $0x28] sm:$0xff]
        %v395 = vld [vmem:[%s333 + $0x30] sm:$0xff]
        %v396 = vld [vmem:[%s333 + $0x38] sm:$0xff]
        %v397 = vld [vmem:[%s333 + $0x40] sm:$0xff]
        %v398 = vld [vmem:[%s333 + $0x48] sm:$0xff]
        %v399 = vld [vmem:[%s333 + $0x50] sm:$0xff]
        %v400 = vld [vmem:[%s333 + $0x58] sm:$0xff]
        %v401 = vld [vmem:[%s333 + $0x60] sm:$0xff]
        %v402 = vld [vmem:[%s333 + $0x68] sm:$0xff]
        %v403 = vld [vmem:[%s333 + $0x70] sm:$0xff]
        %v404 = vld [vmem:[%s333 + $0x78] sm:$0xff]
        %v405 = vld [vmem:[%s333 + $0x80] sm:$0xff]
        %v406 = vld [vmem:[%s333 + $0x88] sm:$0xff]
        %v407 = vld [vmem:[%s333 + $0x90] sm:$0xff]
        %v408 = vld [vmem:[%s333 + $0x98] sm:$0xff]
        %v409 = vld [vmem:[%s333 + $0xa0] sm:$0xff]
        %v410 = vld [vmem:[%s333 + $0xa8] sm:$0xff]
        %v411 = vld [vmem:[%s333 + $0xb0] sm:$0xff]
        %v412 = vld [vmem:[%s333 + $0xb8] sm:$0xff]
        %v413 = vld [vmem:[%s333 + $0xc0] sm:$0xff]
        %v414 = vld [vmem:[%s333 + $0xc8] sm:$0xff]
        %v415 = vld [vmem:[%s333 + $0xd0] sm:$0xff]
        %v416 = vld [vmem:[%s333 + $0xd8] sm:$0xff]
        %v417 = vld [vmem:[%s333 + $0xe0] sm:$0xff]
        %v418 = vld [vmem:[%s333 + $0xe8] sm:$0xff]
        %v419 = vld [vmem:[%s333 + $0xf0] sm:$0xff]
        %v420 = vld [vmem:[%s333 + $0xf8] sm:$0xff]
        %v421 = vpack.c.bf16 %v391, %v389
        %v422 = vpack.c.bf16 %v392, %v390
        %v423 = vpack.c.bf16 %v395, %v393
        %v424 = vpack.c.bf16 %v396, %v394
        %v425 = vpack.c.bf16 %v399, %v397
        %v426 = vpack.c.bf16 %v400, %v398
        %v427 = vpack.c.bf16 %v403, %v401
        %v428 = vpack.c.bf16 %v404, %v402
        %v429 = vpack.c.bf16 %v407, %v405
        %v430 = vpack.c.bf16 %v408, %v406
        %v431 = vpack.c.bf16 %v411, %v409
        %v432 = vpack.c.bf16 %v412, %v410
        %v433 = vpack.c.bf16 %v415, %v413
        %v434 = vpack.c.bf16 %v416, %v414
        %v435 = vpack.c.bf16 %v419, %v417
        %v436 = vpack.c.bf16 %v420, %v418
        %v437 = vld [vmem:[%s387] sm:$0xff]
        %v438 = vld [vmem:[%s387 + $0x8] sm:$0xff]
        %v439 = vld [vmem:[%s387 + $0x10] sm:$0xff]
        %v440 = vld [vmem:[%s387 + $0x18] sm:$0xff]
        %v441 = vld [vmem:[%s387 + $0x20] sm:$0xff]
        %v442 = vld [vmem:[%s387 + $0x28] sm:$0xff]
        %v443 = vld [vmem:[%s387 + $0x30] sm:$0xff]
        %v444 = vld [vmem:[%s387 + $0x38] sm:$0xff]
        %v445 = vld [vmem:[%s387 + $0x40] sm:$0xff]
        %v446 = vld [vmem:[%s387 + $0x48] sm:$0xff]
        %v447 = vld [vmem:[%s387 + $0x50] sm:$0xff]
        %v448 = vld [vmem:[%s387 + $0x58] sm:$0xff]
        %v449 = vld [vmem:[%s387 + $0x60] sm:$0xff]
        %v450 = vld [vmem:[%s387 + $0x68] sm:$0xff]
        %v451 = vld [vmem:[%s387 + $0x70] sm:$0xff]
        %v452 = vld [vmem:[%s387 + $0x78] sm:$0xff]
        %vm453 = vcmp.ne.s32.totalorder %v437, 0
        %vm454 = vcmp.ne.s32.totalorder %v438, 0
        %vm455 = vcmp.ne.s32.totalorder %v439, 0
        %vm456 = vcmp.ne.s32.totalorder %v440, 0
        %vm457 = vcmp.ne.s32.totalorder %v441, 0
        %vm458 = vcmp.ne.s32.totalorder %v442, 0
        %vm459 = vcmp.ne.s32.totalorder %v443, 0
        %vm460 = vcmp.ne.s32.totalorder %v444, 0
        %vm461 = vcmp.ne.s32.totalorder %v445, 0
        %vm462 = vcmp.ne.s32.totalorder %v446, 0
        %vm463 = vcmp.ne.s32.totalorder %v447, 0
        %vm464 = vcmp.ne.s32.totalorder %v448, 0
        %vm465 = vcmp.ne.s32.totalorder %v449, 0
        %vm466 = vcmp.ne.s32.totalorder %v450, 0
        %vm467 = vcmp.ne.s32.totalorder %v451, 0
        %vm468 = vcmp.ne.s32.totalorder %v452, 0
        %v469 = vld [vmem:[#allocation8] sm:$0xff]
        %v470 = vld [vmem:[#allocation8 + $0x8] sm:$0xff]
        %v471 = vld [vmem:[#allocation8 + $0x10] sm:$0xff]
        %v472 = vld [vmem:[#allocation8 + $0x18] sm:$0xff]
        %v473 = vld [vmem:[#allocation8 + $0x20] sm:$0xff]
        %v474 = vld [vmem:[#allocation8 + $0x28] sm:$0xff]
        %v475 = vld [vmem:[#allocation8 + $0x30] sm:$0xff]
        %v476 = vld [vmem:[#allocation8 + $0x38] sm:$0xff]
        %v477 = vld [vmem:[#allocation8 + $0x40] sm:$0xff]
        %v478 = vld [vmem:[#allocation8 + $0x48] sm:$0xff]
        %v479 = vld [vmem:[#allocation8 + $0x50] sm:$0xff]
        %v480 = vld [vmem:[#allocation8 + $0x58] sm:$0xff]
        %v481 = vld [vmem:[#allocation8 + $0x60] sm:$0xff]
        %v482 = vld [vmem:[#allocation8 + $0x68] sm:$0xff]
        %v483 = vld [vmem:[#allocation8 + $0x70] sm:$0xff]
        %v484 = vld [vmem:[#allocation8 + $0x78] sm:$0xff]
        %v485 = vld [vmem:[#allocation8 + $0x80] sm:$0xff]
        %v486 = vld [vmem:[#allocation8 + $0x88] sm:$0xff]
        %v487 = vld [vmem:[#allocation8 + $0x90] sm:$0xff]
        %v488 = vld [vmem:[#allocation8 + $0x98] sm:$0xff]
        %v489 = vld [vmem:[#allocation8 + $0xa0] sm:$0xff]
        %v490 = vld [vmem:[#allocation8 + $0xa8] sm:$0xff]
        %v491 = vld [vmem:[#allocation8 + $0xb0] sm:$0xff]
        %v492 = vld [vmem:[#allocation8 + $0xb8] sm:$0xff]
        %v493 = vld [vmem:[#allocation8 + $0xc0] sm:$0xff]
        %v494 = vld [vmem:[#allocation8 + $0xc8] sm:$0xff]
        %v495 = vld [vmem:[#allocation8 + $0xd0] sm:$0xff]
        %v496 = vld [vmem:[#allocation8 + $0xd8] sm:$0xff]
        %v497 = vld [vmem:[#allocation8 + $0xe0] sm:$0xff]
        %v498 = vld [vmem:[#allocation8 + $0xe8] sm:$0xff]
        %v499 = vld [vmem:[#allocation8 + $0xf0] sm:$0xff]
        %v500 = vld [vmem:[#allocation8 + $0xf8] sm:$0xff]
        %v501 = vld [vmem:[#allocation8 + $0x100] sm:$0xff]
        %v502 = vld [vmem:[#allocation8 + $0x108] sm:$0xff]
        %v503 = vld [vmem:[#allocation8 + $0x110] sm:$0xff]
        %v504 = vld [vmem:[#allocation8 + $0x118] sm:$0xff]
        %v505 = vld [vmem:[#allocation8 + $0x120] sm:$0xff]
        %v506 = vld [vmem:[#allocation8 + $0x128] sm:$0xff]
        %v507 = vld [vmem:[#allocation8 + $0x130] sm:$0xff]
        %v508 = vld [vmem:[#allocation8 + $0x138] sm:$0xff]
        %v509 = vld [vmem:[#allocation8 + $0x140] sm:$0xff]
        %v510 = vld [vmem:[#allocation8 + $0x148] sm:$0xff]
        %v511 = vld [vmem:[#allocation8 + $0x150] sm:$0xff]
        %v512 = vld [vmem:[#allocation8 + $0x158] sm:$0xff]
        %v513 = vld [vmem:[#allocation8 + $0x160] sm:$0xff]
        %v514 = vld [vmem:[#allocation8 + $0x168] sm:$0xff]
        %v515 = vld [vmem:[#allocation8 + $0x170] sm:$0xff]
        %v516 = vld [vmem:[#allocation8 + $0x178] sm:$0xff]
        %v517 = vld [vmem:[#allocation8 + $0x180] sm:$0xff]
        %v518 = vld [vmem:[#allocation8 + $0x188] sm:$0xff]
        %v519 = vld [vmem:[#allocation8 + $0x190] sm:$0xff]
        %v520 = vld [vmem:[#allocation8 + $0x198] sm:$0xff]
        %v521 = vld [vmem:[#allocation8 + $0x1a0] sm:$0xff]
        %v522 = vld [vmem:[#allocation8 + $0x1a8] sm:$0xff]
        %v523 = vld [vmem:[#allocation8 + $0x1b0] sm:$0xff]
        %v524 = vld [vmem:[#allocation8 + $0x1b8] sm:$0xff]
        %v525 = vld [vmem:[#allocation8 + $0x1c0] sm:$0xff]
        %v526 = vld [vmem:[#allocation8 + $0x1c8] sm:$0xff]
        %v527 = vld [vmem:[#allocation8 + $0x1d0] sm:$0xff]
        %v528 = vld [vmem:[#allocation8 + $0x1d8] sm:$0xff]
        %v529 = vld [vmem:[#allocation8 + $0x1e0] sm:$0xff]
        %v530 = vld [vmem:[#allocation8 + $0x1e8] sm:$0xff]
        %v531 = vld [vmem:[#allocation8 + $0x1f0] sm:$0xff]
        %v532 = vld [vmem:[#allocation8 + $0x1f8] sm:$0xff]
        %v533 = vld [vmem:[#allocation8 + $0x200] sm:$0xff]
        %v534 = vld [vmem:[#allocation8 + $0x208] sm:$0xff]
        %v535 = vld [vmem:[#allocation8 + $0x210] sm:$0xff]
        %v536 = vld [vmem:[#allocation8 + $0x218] sm:$0xff]
        %v537 = vld [vmem:[#allocation8 + $0x220] sm:$0xff]
        %v538 = vld [vmem:[#allocation8 + $0x228] sm:$0xff]
        %v539 = vld [vmem:[#allocation8 + $0x230] sm:$0xff]
        %v540 = vld [vmem:[#allocation8 + $0x238] sm:$0xff]
        %v541 = vld [vmem:[#allocation8 + $0x240] sm:$0xff]
        %v542 = vld [vmem:[#allocation8 + $0x248] sm:$0xff]
        %v543 = vld [vmem:[#allocation8 + $0x250] sm:$0xff]
        %v544 = vld [vmem:[#allocation8 + $0x258] sm:$0xff]
        %v545 = vld [vmem:[#allocation8 + $0x260] sm:$0xff]
        %v546 = vld [vmem:[#allocation8 + $0x268] sm:$0xff]
        %v547 = vld [vmem:[#allocation8 + $0x270] sm:$0xff]
        %v548 = vld [vmem:[#allocation8 + $0x278] sm:$0xff]
        %v549 = vld [vmem:[#allocation8 + $0x280] sm:$0xff]
        %v550 = vld [vmem:[#allocation8 + $0x288] sm:$0xff]
        %v551 = vld [vmem:[#allocation8 + $0x290] sm:$0xff]
        %v552 = vld [vmem:[#allocation8 + $0x298] sm:$0xff]
        %v553 = vld [vmem:[#allocation8 + $0x2a0] sm:$0xff]
        %v554 = vld [vmem:[#allocation8 + $0x2a8] sm:$0xff]
        %v555 = vld [vmem:[#allocation8 + $0x2b0] sm:$0xff]
        %v556 = vld [vmem:[#allocation8 + $0x2b8] sm:$0xff]
        %v557 = vld [vmem:[#allocation8 + $0x2c0] sm:$0xff]
        %v558 = vld [vmem:[#allocation8 + $0x2c8] sm:$0xff]
        %v559 = vld [vmem:[#allocation8 + $0x2d0] sm:$0xff]
        %v560 = vld [vmem:[#allocation8 + $0x2d8] sm:$0xff]
        %v561 = vld [vmem:[#allocation8 + $0x2e0] sm:$0xff]
        %v562 = vld [vmem:[#allocation8 + $0x2e8] sm:$0xff]
        %v563 = vld [vmem:[#allocation8 + $0x2f0] sm:$0xff]
        %v564 = vld [vmem:[#allocation8 + $0x2f8] sm:$0xff]
        %v565 = vld [vmem:[#allocation8 + $0x300] sm:$0xff]
        %v566 = vld [vmem:[#allocation8 + $0x308] sm:$0xff]
        %v567 = vld [vmem:[#allocation8 + $0x310] sm:$0xff]
        %v568 = vld [vmem:[#allocation8 + $0x318] sm:$0xff]
        %v569 = vld [vmem:[#allocation8 + $0x320] sm:$0xff]
        %v570 = vld [vmem:[#allocation8 + $0x328] sm:$0xff]
        %v571 = vld [vmem:[#allocation8 + $0x330] sm:$0xff]
        %v572 = vld [vmem:[#allocation8 + $0x338] sm:$0xff]
        %v573 = vld [vmem:[#allocation8 + $0x340] sm:$0xff]
        %v574 = vld [vmem:[#allocation8 + $0x348] sm:$0xff]
        %v575 = vld [vmem:[#allocation8 + $0x350] sm:$0xff]
        %v576 = vld [vmem:[#allocation8 + $0x358] sm:$0xff]
        %v577 = vld [vmem:[#allocation8 + $0x360] sm:$0xff]
        %v578 = vld [vmem:[#allocation8 + $0x368] sm:$0xff]
        %v579 = vld [vmem:[#allocation8 + $0x370] sm:$0xff]
        %v580 = vld [vmem:[#allocation8 + $0x378] sm:$0xff]
        %v581 = vld [vmem:[#allocation8 + $0x380] sm:$0xff]
        %v582 = vld [vmem:[#allocation8 + $0x388] sm:$0xff]
        %v583 = vld [vmem:[#allocation8 + $0x390] sm:$0xff]
        %v584 = vld [vmem:[#allocation8 + $0x398] sm:$0xff]
        %v585 = vld [vmem:[#allocation8 + $0x3a0] sm:$0xff]
        %v586 = vld [vmem:[#allocation8 + $0x3a8] sm:$0xff]
        %v587 = vld [vmem:[#allocation8 + $0x3b0] sm:$0xff]
        %v588 = vld [vmem:[#allocation8 + $0x3b8] sm:$0xff]
        %v589 = vld [vmem:[#allocation8 + $0x3c0] sm:$0xff]
        %v590 = vld [vmem:[#allocation8 + $0x3c8] sm:$0xff]
        %v591 = vld [vmem:[#allocation8 + $0x3d0] sm:$0xff]
        %v592 = vld [vmem:[#allocation8 + $0x3d8] sm:$0xff]
        %v593 = vld [vmem:[#allocation8 + $0x3e0] sm:$0xff]
        %v594 = vld [vmem:[#allocation8 + $0x3e8] sm:$0xff]
        %v595 = vld [vmem:[#allocation8 + $0x3f0] sm:$0xff]
        %v596 = vld [vmem:[#allocation8 + $0x3f8] sm:$0xff]
        %v597 = vld [vmem:[#allocation8 + $0x400] sm:$0xff]
        %v598 = vld [vmem:[#allocation8 + $0x408] sm:$0xff]
        %v599 = vld [vmem:[#allocation8 + $0x410] sm:$0xff]
        %v600 = vld [vmem:[#allocation8 + $0x418] sm:$0xff]
        %v601 = vld [vmem:[#allocation8 + $0x420] sm:$0xff]
        %v602 = vld [vmem:[#allocation8 + $0x428] sm:$0xff]
        %v603 = vld [vmem:[#allocation8 + $0x430] sm:$0xff]
        %v604 = vld [vmem:[#allocation8 + $0x438] sm:$0xff]
        %v605 = vld [vmem:[#allocation8 + $0x440] sm:$0xff]
        %v606 = vld [vmem:[#allocation8 + $0x448] sm:$0xff]
        %v607 = vld [vmem:[#allocation8 + $0x450] sm:$0xff]
        %v608 = vld [vmem:[#allocation8 + $0x458] sm:$0xff]
        %v609 = vld [vmem:[#allocation8 + $0x460] sm:$0xff]
        %v610 = vld [vmem:[#allocation8 + $0x468] sm:$0xff]
        %v611 = vld [vmem:[#allocation8 + $0x470] sm:$0xff]
        %v612 = vld [vmem:[#allocation8 + $0x478] sm:$0xff]
        %v613 = vld [vmem:[#allocation8 + $0x480] sm:$0xff]
        %v614 = vld [vmem:[#allocation8 + $0x488] sm:$0xff]
        %v615 = vld [vmem:[#allocation8 + $0x490] sm:$0xff]
        %v616 = vld [vmem:[#allocation8 + $0x498] sm:$0xff]
        %v617 = vld [vmem:[#allocation8 + $0x4a0] sm:$0xff]
        %v618 = vld [vmem:[#allocation8 + $0x4a8] sm:$0xff]
        %v619 = vld [vmem:[#allocation8 + $0x4b0] sm:$0xff]
        %v620 = vld [vmem:[#allocation8 + $0x4b8] sm:$0xff]
        %v621 = vld [vmem:[#allocation8 + $0x4c0] sm:$0xff]
        %v622 = vld [vmem:[#allocation8 + $0x4c8] sm:$0xff]
        %v623 = vld [vmem:[#allocation8 + $0x4d0] sm:$0xff]
        %v624 = vld [vmem:[#allocation8 + $0x4d8] sm:$0xff]
        %v625 = vld [vmem:[#allocation8 + $0x4e0] sm:$0xff]
        %v626 = vld [vmem:[#allocation8 + $0x4e8] sm:$0xff]
        %v627 = vld [vmem:[#allocation8 + $0x4f0] sm:$0xff]
        %v628 = vld [vmem:[#allocation8 + $0x4f8] sm:$0xff]
        %v629 = vld [vmem:[#allocation8 + $0x500] sm:$0xff]
        %v630 = vld [vmem:[#allocation8 + $0x508] sm:$0xff]
        %v631 = vld [vmem:[#allocation8 + $0x510] sm:$0xff]
        %v632 = vld [vmem:[#allocation8 + $0x518] sm:$0xff]
        %v633 = vld [vmem:[#allocation8 + $0x520] sm:$0xff]
        %v634 = vld [vmem:[#allocation8 + $0x528] sm:$0xff]
        %v635 = vld [vmem:[#allocation8 + $0x530] sm:$0xff]
        %v636 = vld [vmem:[#allocation8 + $0x538] sm:$0xff]
        %v637 = vld [vmem:[#allocation8 + $0x540] sm:$0xff]
        %v638 = vld [vmem:[#allocation8 + $0x548] sm:$0xff]
        %v639 = vld [vmem:[#allocation8 + $0x550] sm:$0xff]
        %v640 = vld [vmem:[#allocation8 + $0x558] sm:$0xff]
        %v641 = vld [vmem:[#allocation8 + $0x560] sm:$0xff]
        %v642 = vld [vmem:[#allocation8 + $0x568] sm:$0xff]
        %v643 = vld [vmem:[#allocation8 + $0x570] sm:$0xff]
        %v644 = vld [vmem:[#allocation8 + $0x578] sm:$0xff]
        %v645 = vld [vmem:[#allocation8 + $0x580] sm:$0xff]
        %v646 = vld [vmem:[#allocation8 + $0x588] sm:$0xff]
        %v647 = vld [vmem:[#allocation8 + $0x590] sm:$0xff]
        %v648 = vld [vmem:[#allocation8 + $0x598] sm:$0xff]
        %v649 = vld [vmem:[#allocation8 + $0x5a0] sm:$0xff]
        %v650 = vld [vmem:[#allocation8 + $0x5a8] sm:$0xff]
        %v651 = vld [vmem:[#allocation8 + $0x5b0] sm:$0xff]
        %v652 = vld [vmem:[#allocation8 + $0x5b8] sm:$0xff]
        %v653 = vld [vmem:[#allocation8 + $0x5c0] sm:$0xff]
        %v654 = vld [vmem:[#allocation8 + $0x5c8] sm:$0xff]
        %v655 = vld [vmem:[#allocation8 + $0x5d0] sm:$0xff]
        %v656 = vld [vmem:[#allocation8 + $0x5d8] sm:$0xff]
        %v657 = vld [vmem:[#allocation8 + $0x5e0] sm:$0xff]
        %v658 = vld [vmem:[#allocation8 + $0x5e8] sm:$0xff]
        %v659 = vld [vmem:[#allocation8 + $0x5f0] sm:$0xff]
        %v660 = vld [vmem:[#allocation8 + $0x5f8] sm:$0xff]
        %v853 = vunpack.c.l.b16 %v469
        %v854 = vunpack.c.h.b16 %v469
        %v855 = vunpack.c.l.b16 %v470
        %v856 = vunpack.c.h.b16 %v470
        %v857 = vunpack.c.l.b16 %v471
        %v858 = vunpack.c.h.b16 %v471
        %v859 = vunpack.c.l.b16 %v472
        %v860 = vunpack.c.h.b16 %v472
        %v861 = vunpack.c.l.b16 %v473
        %v862 = vunpack.c.h.b16 %v473
        %v863 = vunpack.c.l.b16 %v474
        %v864 = vunpack.c.h.b16 %v474
        %v865 = vunpack.c.l.b16 %v475
        %v866 = vunpack.c.h.b16 %v475
        %v867 = vunpack.c.l.b16 %v476
        %v868 = vunpack.c.h.b16 %v476
        %v869 = vunpack.c.l.b16 %v477
        %v870 = vunpack.c.h.b16 %v477
        %v871 = vunpack.c.l.b16 %v478
        %v872 = vunpack.c.h.b16 %v478
        %v873 = vunpack.c.l.b16 %v479
        %v874 = vunpack.c.h.b16 %v479
        %v875 = vunpack.c.l.b16 %v480
        %v876 = vunpack.c.h.b16 %v480
        %v877 = vunpack.c.l.b16 %v481
        %v878 = vunpack.c.h.b16 %v481
        %v879 = vunpack.c.l.b16 %v482
        %v880 = vunpack.c.h.b16 %v482
        %v881 = vunpack.c.l.b16 %v483
        %v882 = vunpack.c.h.b16 %v483
        %v883 = vunpack.c.l.b16 %v484
        %v884 = vunpack.c.h.b16 %v484
        %v885 = vunpack.c.l.b16 %v485
        %v886 = vunpack.c.h.b16 %v485
        %v887 = vunpack.c.l.b16 %v486
        %v888 = vunpack.c.h.b16 %v486
        %v889 = vunpack.c.l.b16 %v487
        %v890 = vunpack.c.h.b16 %v487
        %v891 = vunpack.c.l.b16 %v488
        %v892 = vunpack.c.h.b16 %v488
        %v893 = vunpack.c.l.b16 %v489
        %v894 = vunpack.c.h.b16 %v489
        %v895 = vunpack.c.l.b16 %v490
        %v896 = vunpack.c.h.b16 %v490
        %v897 = vunpack.c.l.b16 %v491
        %v898 = vunpack.c.h.b16 %v491
        %v899 = vunpack.c.l.b16 %v492
        %v900 = vunpack.c.h.b16 %v492
        %v901 = vunpack.c.l.b16 %v493
        %v902 = vunpack.c.h.b16 %v493
        %v903 = vunpack.c.l.b16 %v494
        %v904 = vunpack.c.h.b16 %v494
        %v905 = vunpack.c.l.b16 %v495
        %v906 = vunpack.c.h.b16 %v495
        %v907 = vunpack.c.l.b16 %v496
        %v908 = vunpack.c.h.b16 %v496
        %v909 = vunpack.c.l.b16 %v497
        %v910 = vunpack.c.h.b16 %v497
        %v911 = vunpack.c.l.b16 %v498
        %v912 = vunpack.c.h.b16 %v498
        %v913 = vunpack.c.l.b16 %v499
        %v914 = vunpack.c.h.b16 %v499
        %v915 = vunpack.c.l.b16 %v500
        %v916 = vunpack.c.h.b16 %v500
        %v917 = vunpack.c.l.b16 %v501
        %v918 = vunpack.c.h.b16 %v501
        %v919 = vunpack.c.l.b16 %v502
        %v920 = vunpack.c.h.b16 %v502
        %v921 = vunpack.c.l.b16 %v503
        %v922 = vunpack.c.h.b16 %v503
        %v923 = vunpack.c.l.b16 %v504
        %v924 = vunpack.c.h.b16 %v504
        %v925 = vunpack.c.l.b16 %v505
        %v926 = vunpack.c.h.b16 %v505
        %v927 = vunpack.c.l.b16 %v506
        %v928 = vunpack.c.h.b16 %v506
        %v929 = vunpack.c.l.b16 %v507
        %v930 = vunpack.c.h.b16 %v507
        %v931 = vunpack.c.l.b16 %v508
        %v932 = vunpack.c.h.b16 %v508
        %v933 = vunpack.c.l.b16 %v509
        %v934 = vunpack.c.h.b16 %v509
        %v935 = vunpack.c.l.b16 %v510
        %v936 = vunpack.c.h.b16 %v510
        %v937 = vunpack.c.l.b16 %v511
        %v938 = vunpack.c.h.b16 %v511
        %v939 = vunpack.c.l.b16 %v512
        %v940 = vunpack.c.h.b16 %v512
        %v941 = vunpack.c.l.b16 %v513
        %v942 = vunpack.c.h.b16 %v513
        %v943 = vunpack.c.l.b16 %v514
        %v944 = vunpack.c.h.b16 %v514
        %v945 = vunpack.c.l.b16 %v515
        %v946 = vunpack.c.h.b16 %v515
        %v947 = vunpack.c.l.b16 %v516
        %v948 = vunpack.c.h.b16 %v516
        %v949 = vunpack.c.l.b16 %v517
        %v950 = vunpack.c.h.b16 %v517
        %v951 = vunpack.c.l.b16 %v518
        %v952 = vunpack.c.h.b16 %v518
        %v953 = vunpack.c.l.b16 %v519
        %v954 = vunpack.c.h.b16 %v519
        %v955 = vunpack.c.l.b16 %v520
        %v956 = vunpack.c.h.b16 %v520
        %v957 = vunpack.c.l.b16 %v521
        %v958 = vunpack.c.h.b16 %v521
        %v959 = vunpack.c.l.b16 %v522
        %v960 = vunpack.c.h.b16 %v522
        %v961 = vunpack.c.l.b16 %v523
        %v962 = vunpack.c.h.b16 %v523
        %v963 = vunpack.c.l.b16 %v524
        %v964 = vunpack.c.h.b16 %v524
        %v965 = vunpack.c.l.b16 %v525
        %v966 = vunpack.c.h.b16 %v525
        %v967 = vunpack.c.l.b16 %v526
        %v968 = vunpack.c.h.b16 %v526
        %v969 = vunpack.c.l.b16 %v527
        %v970 = vunpack.c.h.b16 %v527
        %v971 = vunpack.c.l.b16 %v528
        %v972 = vunpack.c.h.b16 %v528
        %v973 = vunpack.c.l.b16 %v529
        %v974 = vunpack.c.h.b16 %v529
        %v975 = vunpack.c.l.b16 %v530
        %v976 = vunpack.c.h.b16 %v530
        %v977 = vunpack.c.l.b16 %v531
        %v978 = vunpack.c.h.b16 %v531
        %v979 = vunpack.c.l.b16 %v532
        %v980 = vunpack.c.h.b16 %v532
        %v981 = vunpack.c.l.b16 %v533
        %v982 = vunpack.c.h.b16 %v533
        %v983 = vunpack.c.l.b16 %v534
        %v984 = vunpack.c.h.b16 %v534
        %v985 = vunpack.c.l.b16 %v535
        %v986 = vunpack.c.h.b16 %v535
        %v987 = vunpack.c.l.b16 %v536
        %v988 = vunpack.c.h.b16 %v536
        %v989 = vunpack.c.l.b16 %v537
        %v990 = vunpack.c.h.b16 %v537
        %v991 = vunpack.c.l.b16 %v538
        %v992 = vunpack.c.h.b16 %v538
        %v993 = vunpack.c.l.b16 %v539
        %v994 = vunpack.c.h.b16 %v539
        %v995 = vunpack.c.l.b16 %v540
        %v996 = vunpack.c.h.b16 %v540
        %v997 = vunpack.c.l.b16 %v541
        %v998 = vunpack.c.h.b16 %v541
        %v999 = vunpack.c.l.b16 %v542
        %v1000 = vunpack.c.h.b16 %v542
        %v1001 = vunpack.c.l.b16 %v543
        %v1002 = vunpack.c.h.b16 %v543
        %v1003 = vunpack.c.l.b16 %v544
        %v1004 = vunpack.c.h.b16 %v544
        %v1005 = vunpack.c.l.b16 %v545
        %v1006 = vunpack.c.h.b16 %v545
        %v1007 = vunpack.c.l.b16 %v546
        %v1008 = vunpack.c.h.b16 %v546
        %v1009 = vunpack.c.l.b16 %v547
        %v1010 = vunpack.c.h.b16 %v547
        %v1011 = vunpack.c.l.b16 %v548
        %v1012 = vunpack.c.h.b16 %v548
        %v1013 = vunpack.c.l.b16 %v549
        %v1014 = vunpack.c.h.b16 %v549
        %v1015 = vunpack.c.l.b16 %v550
        %v1016 = vunpack.c.h.b16 %v550
        %v1017 = vunpack.c.l.b16 %v551
        %v1018 = vunpack.c.h.b16 %v551
        %v1019 = vunpack.c.l.b16 %v552
        %v1020 = vunpack.c.h.b16 %v552
        %v1021 = vunpack.c.l.b16 %v553
        %v1022 = vunpack.c.h.b16 %v553
        %v1023 = vunpack.c.l.b16 %v554
        %v1024 = vunpack.c.h.b16 %v554
        %v1025 = vunpack.c.l.b16 %v555
        %v1026 = vunpack.c.h.b16 %v555
        %v1027 = vunpack.c.l.b16 %v556
        %v1028 = vunpack.c.h.b16 %v556
        %v1029 = vunpack.c.l.b16 %v557
        %v1030 = vunpack.c.h.b16 %v557
        %v1031 = vunpack.c.l.b16 %v558
        %v1032 = vunpack.c.h.b16 %v558
        %v1033 = vunpack.c.l.b16 %v559
        %v1034 = vunpack.c.h.b16 %v559
        %v1035 = vunpack.c.l.b16 %v560
        %v1036 = vunpack.c.h.b16 %v560
        %v1037 = vunpack.c.l.b16 %v561
        %v1038 = vunpack.c.h.b16 %v561
        %v1039 = vunpack.c.l.b16 %v562
        %v1040 = vunpack.c.h.b16 %v562
        %v1041 = vunpack.c.l.b16 %v563
        %v1042 = vunpack.c.h.b16 %v563
        %v1043 = vunpack.c.l.b16 %v564
        %v1044 = vunpack.c.h.b16 %v564
        %v1045 = vunpack.c.l.b16 %v565
        %v1046 = vunpack.c.h.b16 %v565
        %v1047 = vunpack.c.l.b16 %v566
        %v1048 = vunpack.c.h.b16 %v566
        %v1049 = vunpack.c.l.b16 %v567
        %v1050 = vunpack.c.h.b16 %v567
        %v1051 = vunpack.c.l.b16 %v568
        %v1052 = vunpack.c.h.b16 %v568
        %v1053 = vunpack.c.l.b16 %v569
        %v1054 = vunpack.c.h.b16 %v569
        %v1055 = vunpack.c.l.b16 %v570
        %v1056 = vunpack.c.h.b16 %v570
        %v1057 = vunpack.c.l.b16 %v571
        %v1058 = vunpack.c.h.b16 %v571
        %v1059 = vunpack.c.l.b16 %v572
        %v1060 = vunpack.c.h.b16 %v572
        %v1061 = vunpack.c.l.b16 %v573
        %v1062 = vunpack.c.h.b16 %v573
        %v1063 = vunpack.c.l.b16 %v574
        %v1064 = vunpack.c.h.b16 %v574
        %v1065 = vunpack.c.l.b16 %v575
        %v1066 = vunpack.c.h.b16 %v575
        %v1067 = vunpack.c.l.b16 %v576
        %v1068 = vunpack.c.h.b16 %v576
        %v1069 = vunpack.c.l.b16 %v577
        %v1070 = vunpack.c.h.b16 %v577
        %v1071 = vunpack.c.l.b16 %v578
        %v1072 = vunpack.c.h.b16 %v578
        %v1073 = vunpack.c.l.b16 %v579
        %v1074 = vunpack.c.h.b16 %v579
        %v1075 = vunpack.c.l.b16 %v580
        %v1076 = vunpack.c.h.b16 %v580
        %v1077 = vunpack.c.l.b16 %v581
        %v1078 = vunpack.c.h.b16 %v581
        %v1079 = vunpack.c.l.b16 %v582
        %v1080 = vunpack.c.h.b16 %v582
        %v1081 = vunpack.c.l.b16 %v583
        %v1082 = vunpack.c.h.b16 %v583
        %v1083 = vunpack.c.l.b16 %v584
        %v1084 = vunpack.c.h.b16 %v584
        %v1085 = vunpack.c.l.b16 %v585
        %v1086 = vunpack.c.h.b16 %v585
        %v1087 = vunpack.c.l.b16 %v586
        %v1088 = vunpack.c.h.b16 %v586
        %v1089 = vunpack.c.l.b16 %v587
        %v1090 = vunpack.c.h.b16 %v587
        %v1091 = vunpack.c.l.b16 %v588
        %v1092 = vunpack.c.h.b16 %v588
        %v1093 = vunpack.c.l.b16 %v589
        %v1094 = vunpack.c.h.b16 %v589
        %v1095 = vunpack.c.l.b16 %v590
        %v1096 = vunpack.c.h.b16 %v590
        %v1097 = vunpack.c.l.b16 %v591
        %v1098 = vunpack.c.h.b16 %v591
        %v1099 = vunpack.c.l.b16 %v592
        %v1100 = vunpack.c.h.b16 %v592
        %v1101 = vunpack.c.l.b16 %v593
        %v1102 = vunpack.c.h.b16 %v593
        %v1103 = vunpack.c.l.b16 %v594
        %v1104 = vunpack.c.h.b16 %v594
        %v1105 = vunpack.c.l.b16 %v595
        %v1106 = vunpack.c.h.b16 %v595
        %v1107 = vunpack.c.l.b16 %v596
        %v1108 = vunpack.c.h.b16 %v596
        %v1109 = vunpack.c.l.b16 %v597
        %v1110 = vunpack.c.h.b16 %v597
        %v1111 = vunpack.c.l.b16 %v598
        %v1112 = vunpack.c.h.b16 %v598
        %v1113 = vunpack.c.l.b16 %v599
        %v1114 = vunpack.c.h.b16 %v599
        %v1115 = vunpack.c.l.b16 %v600
        %v1116 = vunpack.c.h.b16 %v600
        %v1117 = vunpack.c.l.b16 %v601
        %v1118 = vunpack.c.h.b16 %v601
        %v1119 = vunpack.c.l.b16 %v602
        %v1120 = vunpack.c.h.b16 %v602
        %v1121 = vunpack.c.l.b16 %v603
        %v1122 = vunpack.c.h.b16 %v603
        %v1123 = vunpack.c.l.b16 %v604
        %v1124 = vunpack.c.h.b16 %v604
        %v1125 = vunpack.c.l.b16 %v605
        %v1126 = vunpack.c.h.b16 %v605
        %v1127 = vunpack.c.l.b16 %v606
        %v1128 = vunpack.c.h.b16 %v606
        %v1129 = vunpack.c.l.b16 %v607
        %v1130 = vunpack.c.h.b16 %v607
        %v1131 = vunpack.c.l.b16 %v608
        %v1132 = vunpack.c.h.b16 %v608
        %v1133 = vunpack.c.l.b16 %v609
        %v1134 = vunpack.c.h.b16 %v609
        %v1135 = vunpack.c.l.b16 %v610
        %v1136 = vunpack.c.h.b16 %v610
        %v1137 = vunpack.c.l.b16 %v611
        %v1138 = vunpack.c.h.b16 %v611
        %v1139 = vunpack.c.l.b16 %v612
        %v1140 = vunpack.c.h.b16 %v612
        %v1141 = vunpack.c.l.b16 %v613
        %v1142 = vunpack.c.h.b16 %v613
        %v1143 = vunpack.c.l.b16 %v614
        %v1144 = vunpack.c.h.b16 %v614
        %v1145 = vunpack.c.l.b16 %v615
        %v1146 = vunpack.c.h.b16 %v615
        %v1147 = vunpack.c.l.b16 %v616
        %v1148 = vunpack.c.h.b16 %v616
        %v1149 = vunpack.c.l.b16 %v617
        %v1150 = vunpack.c.h.b16 %v617
        %v1151 = vunpack.c.l.b16 %v618
        %v1152 = vunpack.c.h.b16 %v618
        %v1153 = vunpack.c.l.b16 %v619
        %v1154 = vunpack.c.h.b16 %v619
        %v1155 = vunpack.c.l.b16 %v620
        %v1156 = vunpack.c.h.b16 %v620
        %v1157 = vunpack.c.l.b16 %v621
        %v1158 = vunpack.c.h.b16 %v621
        %v1159 = vunpack.c.l.b16 %v622
        %v1160 = vunpack.c.h.b16 %v622
        %v1161 = vunpack.c.l.b16 %v623
        %v1162 = vunpack.c.h.b16 %v623
        %v1163 = vunpack.c.l.b16 %v624
        %v1164 = vunpack.c.h.b16 %v624
        %v1165 = vunpack.c.l.b16 %v625
        %v1166 = vunpack.c.h.b16 %v625
        %v1167 = vunpack.c.l.b16 %v626
        %v1168 = vunpack.c.h.b16 %v626
        %v1169 = vunpack.c.l.b16 %v627
        %v1170 = vunpack.c.h.b16 %v627
        %v1171 = vunpack.c.l.b16 %v628
        %v1172 = vunpack.c.h.b16 %v628
        %v1173 = vunpack.c.l.b16 %v629
        %v1174 = vunpack.c.h.b16 %v629
        %v1175 = vunpack.c.l.b16 %v630
        %v1176 = vunpack.c.h.b16 %v630
        %v1177 = vunpack.c.l.b16 %v631
        %v1178 = vunpack.c.h.b16 %v631
        %v1179 = vunpack.c.l.b16 %v632
        %v1180 = vunpack.c.h.b16 %v632
        %v1181 = vunpack.c.l.b16 %v633
        %v1182 = vunpack.c.h.b16 %v633
        %v1183 = vunpack.c.l.b16 %v634
        %v1184 = vunpack.c.h.b16 %v634
        %v1185 = vunpack.c.l.b16 %v635
        %v1186 = vunpack.c.h.b16 %v635
        %v1187 = vunpack.c.l.b16 %v636
        %v1188 = vunpack.c.h.b16 %v636
        %v1189 = vunpack.c.l.b16 %v637
        %v1190 = vunpack.c.h.b16 %v637
        %v1191 = vunpack.c.l.b16 %v638
        %v1192 = vunpack.c.h.b16 %v638
        %v1193 = vunpack.c.l.b16 %v639
        %v1194 = vunpack.c.h.b16 %v639
        %v1195 = vunpack.c.l.b16 %v640
        %v1196 = vunpack.c.h.b16 %v640
        %v1197 = vunpack.c.l.b16 %v641
        %v1198 = vunpack.c.h.b16 %v641
        %v1199 = vunpack.c.l.b16 %v642
        %v1200 = vunpack.c.h.b16 %v642
        %v1201 = vunpack.c.l.b16 %v643
        %v1202 = vunpack.c.h.b16 %v643
        %v1203 = vunpack.c.l.b16 %v644
        %v1204 = vunpack.c.h.b16 %v644
        %v1205 = vunpack.c.l.b16 %v645
        %v1206 = vunpack.c.h.b16 %v645
        %v1207 = vunpack.c.l.b16 %v646
        %v1208 = vunpack.c.h.b16 %v646
        %v1209 = vunpack.c.l.b16 %v647
        %v1210 = vunpack.c.h.b16 %v647
        %v1211 = vunpack.c.l.b16 %v648
        %v1212 = vunpack.c.h.b16 %v648
        %v1213 = vunpack.c.l.b16 %v649
        %v1214 = vunpack.c.h.b16 %v649
        %v1215 = vunpack.c.l.b16 %v650
        %v1216 = vunpack.c.h.b16 %v650
        %v1217 = vunpack.c.l.b16 %v651
        %v1218 = vunpack.c.h.b16 %v651
        %v1219 = vunpack.c.l.b16 %v652
        %v1220 = vunpack.c.h.b16 %v652
        %v1221 = vunpack.c.l.b16 %v653
        %v1222 = vunpack.c.h.b16 %v653
        %v1223 = vunpack.c.l.b16 %v654
        %v1224 = vunpack.c.h.b16 %v654
        %v1225 = vunpack.c.l.b16 %v655
        %v1226 = vunpack.c.h.b16 %v655
        %v1227 = vunpack.c.l.b16 %v656
        %v1228 = vunpack.c.h.b16 %v656
        %v1229 = vunpack.c.l.b16 %v657
        %v1230 = vunpack.c.h.b16 %v657
        %v1231 = vunpack.c.l.b16 %v658
        %v1232 = vunpack.c.h.b16 %v658
        %v1233 = vunpack.c.l.b16 %v659
        %v1234 = vunpack.c.h.b16 %v659
        %v1235 = vunpack.c.l.b16 %v660
        %v1236 = vunpack.c.h.b16 %v660
        %v1237 = vpack.c.b16 %v865, %v853
        %v1238 = vpack.c.b16 %v866, %v854
        %v1239 = vpack.c.b16 %v867, %v855
        %v1240 = vpack.c.b16 %v868, %v856
        %v1241 = vpack.c.b16 %v869, %v857
        %v1242 = vpack.c.b16 %v870, %v858
        %v1243 = vpack.c.b16 %v871, %v859
        %v1244 = vpack.c.b16 %v872, %v860
        %v1245 = vpack.c.b16 %v873, %v861
        %v1246 = vpack.c.b16 %v874, %v862
        %v1247 = vpack.c.b16 %v875, %v863
        %v1248 = vpack.c.b16 %v876, %v864
        %v1249 = vpack.c.b16 %v889, %v877
        %v1250 = vpack.c.b16 %v890, %v878
        %v1251 = vpack.c.b16 %v891, %v879
        %v1252 = vpack.c.b16 %v892, %v880
        %v1253 = vpack.c.b16 %v893, %v881
        %v1254 = vpack.c.b16 %v894, %v882
        %v1255 = vpack.c.b16 %v895, %v883
        %v1256 = vpack.c.b16 %v896, %v884
        %v1257 = vpack.c.b16 %v897, %v885
        %v1258 = vpack.c.b16 %v898, %v886
        %v1259 = vpack.c.b16 %v899, %v887
        %v1260 = vpack.c.b16 %v900, %v888
        %v1261 = vpack.c.b16 %v913, %v901
        %v1262 = vpack.c.b16 %v914, %v902
        %v1263 = vpack.c.b16 %v915, %v903
        %v1264 = vpack.c.b16 %v916, %v904
        %v1265 = vpack.c.b16 %v917, %v905
        %v1266 = vpack.c.b16 %v918, %v906
        %v1267 = vpack.c.b16 %v919, %v907
        %v1268 = vpack.c.b16 %v920, %v908
        %v1269 = vpack.c.b16 %v921, %v909
        %v1270 = vpack.c.b16 %v922, %v910
        %v1271 = vpack.c.b16 %v923, %v911
        %v1272 = vpack.c.b16 %v924, %v912
        %v1273 = vpack.c.b16 %v937, %v925
        %v1274 = vpack.c.b16 %v938, %v926
        %v1275 = vpack.c.b16 %v939, %v927
        %v1276 = vpack.c.b16 %v940, %v928
        %v1277 = vpack.c.b16 %v941, %v929
        %v1278 = vpack.c.b16 %v942, %v930
        %v1279 = vpack.c.b16 %v943, %v931
        %v1280 = vpack.c.b16 %v944, %v932
        %v1281 = vpack.c.b16 %v945, %v933
        %v1282 = vpack.c.b16 %v946, %v934
        %v1283 = vpack.c.b16 %v947, %v935
        %v1284 = vpack.c.b16 %v948, %v936
        %v1285 = vpack.c.b16 %v961, %v949
        %v1286 = vpack.c.b16 %v962, %v950
        %v1287 = vpack.c.b16 %v963, %v951
        %v1288 = vpack.c.b16 %v964, %v952
        %v1289 = vpack.c.b16 %v965, %v953
        %v1290 = vpack.c.b16 %v966, %v954
        %v1291 = vpack.c.b16 %v967, %v955
        %v1292 = vpack.c.b16 %v968, %v956
        %v1293 = vpack.c.b16 %v969, %v957
        %v1294 = vpack.c.b16 %v970, %v958
        %v1295 = vpack.c.b16 %v971, %v959
        %v1296 = vpack.c.b16 %v972, %v960
        %v1297 = vpack.c.b16 %v985, %v973
        %v1298 = vpack.c.b16 %v986, %v974
        %v1299 = vpack.c.b16 %v987, %v975
        %v1300 = vpack.c.b16 %v988, %v976
        %v1301 = vpack.c.b16 %v989, %v977
        %v1302 = vpack.c.b16 %v990, %v978
        %v1303 = vpack.c.b16 %v991, %v979
        %v1304 = vpack.c.b16 %v992, %v980
        %v1305 = vpack.c.b16 %v993, %v981
        %v1306 = vpack.c.b16 %v994, %v982
        %v1307 = vpack.c.b16 %v995, %v983
        %v1308 = vpack.c.b16 %v996, %v984
        %v1309 = vpack.c.b16 %v1009, %v997
        %v1310 = vpack.c.b16 %v1010, %v998
        %v1311 = vpack.c.b16 %v1011, %v999
        %v1312 = vpack.c.b16 %v1012, %v1000
        %v1313 = vpack.c.b16 %v1013, %v1001
        %v1314 = vpack.c.b16 %v1014, %v1002
        %v1315 = vpack.c.b16 %v1015, %v1003
        %v1316 = vpack.c.b16 %v1016, %v1004
        %v1317 = vpack.c.b16 %v1017, %v1005
        %v1318 = vpack.c.b16 %v1018, %v1006
        %v1319 = vpack.c.b16 %v1019, %v1007
        %v1320 = vpack.c.b16 %v1020, %v1008
        %v1321 = vpack.c.b16 %v1033, %v1021
        %v1322 = vpack.c.b16 %v1034, %v1022
        %v1323 = vpack.c.b16 %v1035, %v1023
        %v1324 = vpack.c.b16 %v1036, %v1024
        %v1325 = vpack.c.b16 %v1037, %v1025
        %v1326 = vpack.c.b16 %v1038, %v1026
        %v1327 = vpack.c.b16 %v1039, %v1027
        %v1328 = vpack.c.b16 %v1040, %v1028
        %v1329 = vpack.c.b16 %v1041, %v1029
        %v1330 = vpack.c.b16 %v1042, %v1030
        %v1331 = vpack.c.b16 %v1043, %v1031
        %v1332 = vpack.c.b16 %v1044, %v1032
        %v1333 = vpack.c.b16 %v1057, %v1045
        %v1334 = vpack.c.b16 %v1058, %v1046
        %v1335 = vpack.c.b16 %v1059, %v1047
        %v1336 = vpack.c.b16 %v1060, %v1048
        %v1337 = vpack.c.b16 %v1061, %v1049
        %v1338 = vpack.c.b16 %v1062, %v1050
        %v1339 = vpack.c.b16 %v1063, %v1051
        %v1340 = vpack.c.b16 %v1064, %v1052
        %v1341 = vpack.c.b16 %v1065, %v1053
        %v1342 = vpack.c.b16 %v1066, %v1054
        %v1343 = vpack.c.b16 %v1067, %v1055
        %v1344 = vpack.c.b16 %v1068, %v1056
        %v1345 = vpack.c.b16 %v1081, %v1069
        %v1346 = vpack.c.b16 %v1082, %v1070
        %v1347 = vpack.c.b16 %v1083, %v1071
        %v1348 = vpack.c.b16 %v1084, %v1072
        %v1349 = vpack.c.b16 %v1085, %v1073
        %v1350 = vpack.c.b16 %v1086, %v1074
        %v1351 = vpack.c.b16 %v1087, %v1075
        %v1352 = vpack.c.b16 %v1088, %v1076
        %v1353 = vpack.c.b16 %v1089, %v1077
        %v1354 = vpack.c.b16 %v1090, %v1078
        %v1355 = vpack.c.b16 %v1091, %v1079
        %v1356 = vpack.c.b16 %v1092, %v1080
        %v1357 = vpack.c.b16 %v1105, %v1093
        %v1358 = vpack.c.b16 %v1106, %v1094
        %v1359 = vpack.c.b16 %v1107, %v1095
        %v1360 = vpack.c.b16 %v1108, %v1096
        %v1361 = vpack.c.b16 %v1109, %v1097
        %v1362 = vpack.c.b16 %v1110, %v1098
        %v1363 = vpack.c.b16 %v1111, %v1099
        %v1364 = vpack.c.b16 %v1112, %v1100
        %v1365 = vpack.c.b16 %v1113, %v1101
        %v1366 = vpack.c.b16 %v1114, %v1102
        %v1367 = vpack.c.b16 %v1115, %v1103
        %v1368 = vpack.c.b16 %v1116, %v1104
        %v1369 = vpack.c.b16 %v1129, %v1117
        %v1370 = vpack.c.b16 %v1130, %v1118
        %v1371 = vpack.c.b16 %v1131, %v1119
        %v1372 = vpack.c.b16 %v1132, %v1120
        %v1373 = vpack.c.b16 %v1133, %v1121
        %v1374 = vpack.c.b16 %v1134, %v1122
        %v1375 = vpack.c.b16 %v1135, %v1123
        %v1376 = vpack.c.b16 %v1136, %v1124
        %v1377 = vpack.c.b16 %v1137, %v1125
        %v1378 = vpack.c.b16 %v1138, %v1126
        %v1379 = vpack.c.b16 %v1139, %v1127
        %v1380 = vpack.c.b16 %v1140, %v1128
        %v1381 = vpack.c.b16 %v1153, %v1141
        %v1382 = vpack.c.b16 %v1154, %v1142
        %v1383 = vpack.c.b16 %v1155, %v1143
        %v1384 = vpack.c.b16 %v1156, %v1144
        %v1385 = vpack.c.b16 %v1157, %v1145
        %v1386 = vpack.c.b16 %v1158, %v1146
        %v1387 = vpack.c.b16 %v1159, %v1147
        %v1388 = vpack.c.b16 %v1160, %v1148
        %v1389 = vpack.c.b16 %v1161, %v1149
        %v1390 = vpack.c.b16 %v1162, %v1150
        %v1391 = vpack.c.b16 %v1163, %v1151
        %v1392 = vpack.c.b16 %v1164, %v1152
        %v1393 = vpack.c.b16 %v1177, %v1165
        %v1394 = vpack.c.b16 %v1178, %v1166
        %v1395 = vpack.c.b16 %v1179, %v1167
        %v1396 = vpack.c.b16 %v1180, %v1168
        %v1397 = vpack.c.b16 %v1181, %v1169
        %v1398 = vpack.c.b16 %v1182, %v1170
        %v1399 = vpack.c.b16 %v1183, %v1171
        %v1400 = vpack.c.b16 %v1184, %v1172
        %v1401 = vpack.c.b16 %v1185, %v1173
        %v1402 = vpack.c.b16 %v1186, %v1174
        %v1403 = vpack.c.b16 %v1187, %v1175
        %v1404 = vpack.c.b16 %v1188, %v1176
        %v1405 = vpack.c.b16 %v1201, %v1189
        %v1406 = vpack.c.b16 %v1202, %v1190
        %v1407 = vpack.c.b16 %v1203, %v1191
        %v1408 = vpack.c.b16 %v1204, %v1192
        %v1409 = vpack.c.b16 %v1205, %v1193
        %v1410 = vpack.c.b16 %v1206, %v1194
        %v1411 = vpack.c.b16 %v1207, %v1195
        %v1412 = vpack.c.b16 %v1208, %v1196
        %v1413 = vpack.c.b16 %v1209, %v1197
        %v1414 = vpack.c.b16 %v1210, %v1198
        %v1415 = vpack.c.b16 %v1211, %v1199
        %v1416 = vpack.c.b16 %v1212, %v1200
        %v1417 = vpack.c.b16 %v1225, %v1213
        %v1418 = vpack.c.b16 %v1226, %v1214
        %v1419 = vpack.c.b16 %v1227, %v1215
        %v1420 = vpack.c.b16 %v1228, %v1216
        %v1421 = vpack.c.b16 %v1229, %v1217
        %v1422 = vpack.c.b16 %v1230, %v1218
        %v1423 = vpack.c.b16 %v1231, %v1219
        %v1424 = vpack.c.b16 %v1232, %v1220
        %v1425 = vpack.c.b16 %v1233, %v1221
        %v1426 = vpack.c.b16 %v1234, %v1222
        %v1427 = vpack.c.b16 %v1235, %v1223
        %v1428 = vpack.c.b16 %v1236, %v1224
        %1621 = vmatprep.subr.bf16.mxu0 %v1322
        %1622 = vmatpush1.bf16.msra.mxu0 %v1321
        %1623 = vmatprep.subr.bf16.mxu0 %v1310
        %1624 = vmatpush1.bf16.msra.mxu0 %v1309
        %1625 = vmatprep.subr.bf16.mxu0 %v1298
        %1626 = vmatpush1.bf16.msra.mxu0 %v1297
        %1627 = vmatprep.subr.bf16.mxu0 %v1286
        %1628 = vmatpush1.bf16.msra.mxu0 %v1285
        %1629 = vmatprep.subr.bf16.mxu0 %v1274
        %1630 = vmatpush1.bf16.msra.mxu0 %v1273
        %1631 = vmatprep.subr.bf16.mxu0 %v1262
        %1632 = vmatpush1.bf16.msra.mxu0 %v1261
        %1633 = vmatprep.subr.bf16.mxu0 %v1250
        %1634 = vmatpush1.bf16.msra.mxu0 %v1249
        %1635 = vmatprep.subr.bf16.mxu0 %v1238
        %1636 = vmatpush1.bf16.msra.mxu0 %v1237
        %1637 = vmatprep.subr.bf16.mxu0 %v1418
        %1638 = vmatpush2.bf16.msra.mxu0 %v1417
        %1639 = vmatprep.subr.bf16.mxu0 %v1406
        %1640 = vmatpush2.bf16.msra.mxu0 %v1405
        %1641 = vmatprep.subr.bf16.mxu0 %v1394
        %1642 = vmatpush2.bf16.msra.mxu0 %v1393
        %1643 = vmatprep.subr.bf16.mxu0 %v1382
        %1644 = vmatpush2.bf16.msra.mxu0 %v1381
        %1645 = vmatprep.subr.bf16.mxu0 %v1370
        %1646 = vmatpush2.bf16.msra.mxu0 %v1369
        %1647 = vmatprep.subr.bf16.mxu0 %v1358
        %1648 = vmatpush2.bf16.msra.mxu0 %v1357
        %1649 = vmatprep.subr.bf16.mxu0 %v1346
        %1650 = vmatpush2.bf16.msra.mxu0 %v1345
        %1651 = vmatprep.subr.bf16.mxu0 %v1334
        %1652 = vmatpush2.bf16.msra.mxu0 %v1333
        %1653 = vmatprep.mubr.bf16.mxu0 %v422
        %1654 = vmatmul.mubr.bf16.gmra.mxu0 %v421
        %v1655 = vpop.f32.mrf.mxu0
        %v1656 = vadd.f32 0.0, %v1655
        %v1657 = vpop.f32.mrf.mxu0
        %v1658 = vadd.f32 0.0, %v1657
        %v1659 = vpop.f32.mrf.mxu0
        %v1660 = vadd.f32 0.0, %v1659
        %v1661 = vpop.f32.mrf.mxu0
        %v1662 = vadd.f32 0.0, %v1661
        %1663 = vmatprep.mubr.bf16.mxu0 %v424
        %1664 = vmatmul.mubr.bf16.gmra.mxu0 %v423
        %v1665 = vpop.f32.mrf.mxu0
        %v1666 = vadd.f32 0.0, %v1665
        %v1667 = vpop.f32.mrf.mxu0
        %v1668 = vadd.f32 0.0, %v1667
        %v1669 = vpop.f32.mrf.mxu0
        %v1670 = vadd.f32 0.0, %v1669
        %v1671 = vpop.f32.mrf.mxu0
        %v1672 = vadd.f32 0.0, %v1671
        %1673 = vmatprep.mubr.bf16.mxu0 %v426
        %1674 = vmatmul.mubr.bf16.gmra.mxu0 %v425
        %v1675 = vpop.f32.mrf.mxu0
        %v1676 = vadd.f32 0.0, %v1675
        %v1677 = vpop.f32.mrf.mxu0
        %v1678 = vadd.f32 0.0, %v1677
        %v1679 = vpop.f32.mrf.mxu0
        %v1680 = vadd.f32 0.0, %v1679
        %v1681 = vpop.f32.mrf.mxu0
        %v1682 = vadd.f32 0.0, %v1681
        %1683 = vmatprep.mubr.bf16.mxu0 %v428
        %1684 = vmatmul.mubr.bf16.gmra.mxu0 %v427
        %v1685 = vpop.f32.mrf.mxu0
        %v1686 = vadd.f32 0.0, %v1685
        %v1687 = vpop.f32.mrf.mxu0
        %v1688 = vadd.f32 0.0, %v1687
        %v1689 = vpop.f32.mrf.mxu0
        %v1690 = vadd.f32 0.0, %v1689
        %v1691 = vpop.f32.mrf.mxu0
        %v1692 = vadd.f32 0.0, %v1691
        %1693 = vmatprep.mubr.bf16.mxu0 %v430
        %1694 = vmatmul.mubr.bf16.gmra.mxu0 %v429
        %v1695 = vpop.f32.mrf.mxu0
        %v1696 = vadd.f32 0.0, %v1695
        %v1697 = vpop.f32.mrf.mxu0
        %v1698 = vadd.f32 0.0, %v1697
        %v1699 = vpop.f32.mrf.mxu0
        %v1700 = vadd.f32 0.0, %v1699
        %v1701 = vpop.f32.mrf.mxu0
        %v1702 = vadd.f32 0.0, %v1701
        %1703 = vmatprep.mubr.bf16.mxu0 %v432
        %1704 = vmatmul.mubr.bf16.gmra.mxu0 %v431
        %v1705 = vpop.f32.mrf.mxu0
        %v1706 = vadd.f32 0.0, %v1705
        %v1707 = vpop.f32.mrf.mxu0
        %v1708 = vadd.f32 0.0, %v1707
        %v1709 = vpop.f32.mrf.mxu0
        %v1710 = vadd.f32 0.0, %v1709
        %v1711 = vpop.f32.mrf.mxu0
        %v1712 = vadd.f32 0.0, %v1711
        %1713 = vmatprep.mubr.bf16.mxu0 %v434
        %1714 = vmatmul.mubr.bf16.gmra.mxu0 %v433
        %v1715 = vpop.f32.mrf.mxu0
        %v1716 = vadd.f32 0.0, %v1715
        %v1717 = vpop.f32.mrf.mxu0
        %v1718 = vadd.f32 0.0, %v1717
        %v1719 = vpop.f32.mrf.mxu0
        %v1720 = vadd.f32 0.0, %v1719
        %v1721 = vpop.f32.mrf.mxu0
        %v1722 = vadd.f32 0.0, %v1721
        %1723 = vmatprep.mubr.bf16.mxu0 %v436
        %1724 = vmatmul.mubr.bf16.gmra.mxu0 %v435
        %v1725 = vpop.f32.mrf.mxu0
        %v1726 = vadd.f32 0.0, %v1725
        %v1727 = vpop.f32.mrf.mxu0
        %v1728 = vadd.f32 0.0, %v1727
        %v1729 = vpop.f32.mrf.mxu0
        %v1730 = vadd.f32 0.0, %v1729
        %v1731 = vpop.f32.mrf.mxu0
        %v1732 = vadd.f32 0.0, %v1731
        %1733 = vdwg.mxu0
        %1734 = vmatprep.subr.bf16.mxu0 %v1324
        %1735 = vmatpush1.bf16.msra.mxu0 %v1323
        %1736 = vmatprep.subr.bf16.mxu0 %v1312
        %1737 = vmatpush1.bf16.msra.mxu0 %v1311
        %1738 = vmatprep.subr.bf16.mxu0 %v1300
        %1739 = vmatpush1.bf16.msra.mxu0 %v1299
        %1740 = vmatprep.subr.bf16.mxu0 %v1288
        %1741 = vmatpush1.bf16.msra.mxu0 %v1287
        %1742 = vmatprep.subr.bf16.mxu0 %v1276
        %1743 = vmatpush1.bf16.msra.mxu0 %v1275
        %1744 = vmatprep.subr.bf16.mxu0 %v1264
        %1745 = vmatpush1.bf16.msra.mxu0 %v1263
        %1746 = vmatprep.subr.bf16.mxu0 %v1252
        %1747 = vmatpush1.bf16.msra.mxu0 %v1251
        %1748 = vmatprep.subr.bf16.mxu0 %v1240
        %1749 = vmatpush1.bf16.msra.mxu0 %v1239
        %1750 = vmatprep.subr.bf16.mxu0 %v1420
        %1751 = vmatpush2.bf16.msra.mxu0 %v1419
        %1752 = vmatprep.subr.bf16.mxu0 %v1408
        %1753 = vmatpush2.bf16.msra.mxu0 %v1407
        %1754 = vmatprep.subr.bf16.mxu0 %v1396
        %1755 = vmatpush2.bf16.msra.mxu0 %v1395
        %1756 = vmatprep.subr.bf16.mxu0 %v1384
        %1757 = vmatpush2.bf16.msra.mxu0 %v1383
        %1758 = vmatprep.subr.bf16.mxu0 %v1372
        %1759 = vmatpush2.bf16.msra.mxu0 %v1371
        %1760 = vmatprep.subr.bf16.mxu0 %v1360
        %1761 = vmatpush2.bf16.msra.mxu0 %v1359
        %1762 = vmatprep.subr.bf16.mxu0 %v1348
        %1763 = vmatpush2.bf16.msra.mxu0 %v1347
        %1764 = vmatprep.subr.bf16.mxu0 %v1336
        %1765 = vmatpush2.bf16.msra.mxu0 %v1335
        %1766 = vmatprep.mubr.bf16.mxu0 %v422
        %1767 = vmatmul.mubr.bf16.gmra.mxu0 %v421
        %v1768 = vpop.f32.mrf.mxu0
        %v1769 = vadd.f32 0.0, %v1768
        %v1770 = vpop.f32.mrf.mxu0
        %v1771 = vadd.f32 0.0, %v1770
        %v1772 = vpop.f32.mrf.mxu0
        %v1773 = vadd.f32 0.0, %v1772
        %v1774 = vpop.f32.mrf.mxu0
        %v1775 = vadd.f32 0.0, %v1774
        %1776 = vmatprep.mubr.bf16.mxu0 %v424
        %1777 = vmatmul.mubr.bf16.gmra.mxu0 %v423
        %v1778 = vpop.f32.mrf.mxu0
        %v1779 = vadd.f32 0.0, %v1778
        %v1780 = vpop.f32.mrf.mxu0
        %v1781 = vadd.f32 0.0, %v1780
        %v1782 = vpop.f32.mrf.mxu0
        %v1783 = vadd.f32 0.0, %v1782
        %v1784 = vpop.f32.mrf.mxu0
        %v1785 = vadd.f32 0.0, %v1784
        %1786 = vmatprep.mubr.bf16.mxu0 %v426
        %1787 = vmatmul.mubr.bf16.gmra.mxu0 %v425
        %v1788 = vpop.f32.mrf.mxu0
        %v1789 = vadd.f32 0.0, %v1788
        %v1790 = vpop.f32.mrf.mxu0
        %v1791 = vadd.f32 0.0, %v1790
        %v1792 = vpop.f32.mrf.mxu0
        %v1793 = vadd.f32 0.0, %v1792
        %v1794 = vpop.f32.mrf.mxu0
        %v1795 = vadd.f32 0.0, %v1794
        %1796 = vmatprep.mubr.bf16.mxu0 %v428
        %1797 = vmatmul.mubr.bf16.gmra.mxu0 %v427
        %v1798 = vpop.f32.mrf.mxu0
        %v1799 = vadd.f32 0.0, %v1798
        %v1800 = vpop.f32.mrf.mxu0
        %v1801 = vadd.f32 0.0, %v1800
        %v1802 = vpop.f32.mrf.mxu0
        %v1803 = vadd.f32 0.0, %v1802
        %v1804 = vpop.f32.mrf.mxu0
        %v1805 = vadd.f32 0.0, %v1804
        %1806 = vmatprep.mubr.bf16.mxu0 %v430
        %1807 = vmatmul.mubr.bf16.gmra.mxu0 %v429
        %v1808 = vpop.f32.mrf.mxu0
        %v1809 = vadd.f32 0.0, %v1808
        %v1810 = vpop.f32.mrf.mxu0
        %v1811 = vadd.f32 0.0, %v1810
        %v1812 = vpop.f32.mrf.mxu0
        %v1813 = vadd.f32 0.0, %v1812
        %v1814 = vpop.f32.mrf.mxu0
        %v1815 = vadd.f32 0.0, %v1814
        %1816 = vmatprep.mubr.bf16.mxu0 %v432
        %1817 = vmatmul.mubr.bf16.gmra.mxu0 %v431
        %v1818 = vpop.f32.mrf.mxu0
        %v1819 = vadd.f32 0.0, %v1818
        %v1820 = vpop.f32.mrf.mxu0
        %v1821 = vadd.f32 0.0, %v1820
        %v1822 = vpop.f32.mrf.mxu0
        %v1823 = vadd.f32 0.0, %v1822
        %v1824 = vpop.f32.mrf.mxu0
        %v1825 = vadd.f32 0.0, %v1824
        %1826 = vmatprep.mubr.bf16.mxu0 %v434
        %1827 = vmatmul.mubr.bf16.gmra.mxu0 %v433
        %v1828 = vpop.f32.mrf.mxu0
        %v1829 = vadd.f32 0.0, %v1828
        %v1830 = vpop.f32.mrf.mxu0
        %v1831 = vadd.f32 0.0, %v1830
        %v1832 = vpop.f32.mrf.mxu0
        %v1833 = vadd.f32 0.0, %v1832
        %v1834 = vpop.f32.mrf.mxu0
        %v1835 = vadd.f32 0.0, %v1834
        %1836 = vmatprep.mubr.bf16.mxu0 %v436
        %1837 = vmatmul.mubr.bf16.gmra.mxu0 %v435
        %v1838 = vpop.f32.mrf.mxu0
        %v1839 = vadd.f32 0.0, %v1838
        %v1840 = vpop.f32.mrf.mxu0
        %v1841 = vadd.f32 0.0, %v1840
        %v1842 = vpop.f32.mrf.mxu0
        %v1843 = vadd.f32 0.0, %v1842
        %v1844 = vpop.f32.mrf.mxu0
        %v1845 = vadd.f32 0.0, %v1844
        %1846 = vdwg.mxu0
        %1847 = vmatprep.subr.bf16.mxu0 %v1326
        %1848 = vmatpush1.bf16.msra.mxu0 %v1325
        %1849 = vmatprep.subr.bf16.mxu0 %v1314
        %1850 = vmatpush1.bf16.msra.mxu0 %v1313
        %1851 = vmatprep.subr.bf16.mxu0 %v1302
        %1852 = vmatpush1.bf16.msra.mxu0 %v1301
        %1853 = vmatprep.subr.bf16.mxu0 %v1290
        %1854 = vmatpush1.bf16.msra.mxu0 %v1289
        %1855 = vmatprep.subr.bf16.mxu0 %v1278
        %1856 = vmatpush1.bf16.msra.mxu0 %v1277
        %1857 = vmatprep.subr.bf16.mxu0 %v1266
        %1858 = vmatpush1.bf16.msra.mxu0 %v1265
        %1859 = vmatprep.subr.bf16.mxu0 %v1254
        %1860 = vmatpush1.bf16.msra.mxu0 %v1253
        %1861 = vmatprep.subr.bf16.mxu0 %v1242
        %1862 = vmatpush1.bf16.msra.mxu0 %v1241
        %1863 = vmatprep.subr.bf16.mxu0 %v1422
        %1864 = vmatpush2.bf16.msra.mxu0 %v1421
        %1865 = vmatprep.subr.bf16.mxu0 %v1410
        %1866 = vmatpush2.bf16.msra.mxu0 %v1409
        %1867 = vmatprep.subr.bf16.mxu0 %v1398
        %1868 = vmatpush2.bf16.msra.mxu0 %v1397
        %1869 = vmatprep.subr.bf16.mxu0 %v1386
        %1870 = vmatpush2.bf16.msra.mxu0 %v1385
        %1871 = vmatprep.subr.bf16.mxu0 %v1374
        %1872 = vmatpush2.bf16.msra.mxu0 %v1373
        %1873 = vmatprep.subr.bf16.mxu0 %v1362
        %1874 = vmatpush2.bf16.msra.mxu0 %v1361
        %1875 = vmatprep.subr.bf16.mxu0 %v1350
        %1876 = vmatpush2.bf16.msra.mxu0 %v1349
        %1877 = vmatprep.subr.bf16.mxu0 %v1338
        %1878 = vmatpush2.bf16.msra.mxu0 %v1337
        %1879 = vmatprep.mubr.bf16.mxu0 %v422
        %1880 = vmatmul.mubr.bf16.gmra.mxu0 %v421
        %v1881 = vpop.f32.mrf.mxu0
        %v1882 = vadd.f32 0.0, %v1881
        %v1883 = vpop.f32.mrf.mxu0
        %v1884 = vadd.f32 0.0, %v1883
        %v1885 = vpop.f32.mrf.mxu0
        %v1886 = vadd.f32 0.0, %v1885
        %v1887 = vpop.f32.mrf.mxu0
        %v1888 = vadd.f32 0.0, %v1887
        %1889 = vmatprep.mubr.bf16.mxu0 %v424
        %1890 = vmatmul.mubr.bf16.gmra.mxu0 %v423
        %v1891 = vpop.f32.mrf.mxu0
        %v1892 = vadd.f32 0.0, %v1891
        %v1893 = vpop.f32.mrf.mxu0
        %v1894 = vadd.f32 0.0, %v1893
        %v1895 = vpop.f32.mrf.mxu0
        %v1896 = vadd.f32 0.0, %v1895
        %v1897 = vpop.f32.mrf.mxu0
        %v1898 = vadd.f32 0.0, %v1897
        %1899 = vmatprep.mubr.bf16.mxu0 %v426
        %1900 = vmatmul.mubr.bf16.gmra.mxu0 %v425
        %v1901 = vpop.f32.mrf.mxu0
        %v1902 = vadd.f32 0.0, %v1901
        %v1903 = vpop.f32.mrf.mxu0
        %v1904 = vadd.f32 0.0, %v1903
        %v1905 = vpop.f32.mrf.mxu0
        %v1906 = vadd.f32 0.0, %v1905
        %v1907 = vpop.f32.mrf.mxu0
        %v1908 = vadd.f32 0.0, %v1907
        %1909 = vmatprep.mubr.bf16.mxu0 %v428
        %1910 = vmatmul.mubr.bf16.gmra.mxu0 %v427
        %v1911 = vpop.f32.mrf.mxu0
        %v1912 = vadd.f32 0.0, %v1911
        %v1913 = vpop.f32.mrf.mxu0
        %v1914 = vadd.f32 0.0, %v1913
        %v1915 = vpop.f32.mrf.mxu0
        %v1916 = vadd.f32 0.0, %v1915
        %v1917 = vpop.f32.mrf.mxu0
        %v1918 = vadd.f32 0.0, %v1917
        %1919 = vmatprep.mubr.bf16.mxu0 %v430
        %1920 = vmatmul.mubr.bf16.gmra.mxu0 %v429
        %v1921 = vpop.f32.mrf.mxu0
        %v1922 = vadd.f32 0.0, %v1921
        %v1923 = vpop.f32.mrf.mxu0
        %v1924 = vadd.f32 0.0, %v1923
        %v1925 = vpop.f32.mrf.mxu0
        %v1926 = vadd.f32 0.0, %v1925
        %v1927 = vpop.f32.mrf.mxu0
        %v1928 = vadd.f32 0.0, %v1927
        %1929 = vmatprep.mubr.bf16.mxu0 %v432
        %1930 = vmatmul.mubr.bf16.gmra.mxu0 %v431
        %v1931 = vpop.f32.mrf.mxu0
        %v1932 = vadd.f32 0.0, %v1931
        %v1933 = vpop.f32.mrf.mxu0
        %v1934 = vadd.f32 0.0, %v1933
        %v1935 = vpop.f32.mrf.mxu0
        %v1936 = vadd.f32 0.0, %v1935
        %v1937 = vpop.f32.mrf.mxu0
        %v1938 = vadd.f32 0.0, %v1937
        %1939 = vmatprep.mubr.bf16.mxu0 %v434
        %1940 = vmatmul.mubr.bf16.gmra.mxu0 %v433
        %v1941 = vpop.f32.mrf.mxu0
        %v1942 = vadd.f32 0.0, %v1941
        %v1943 = vpop.f32.mrf.mxu0
        %v1944 = vadd.f32 0.0, %v1943
        %v1945 = vpop.f32.mrf.mxu0
        %v1946 = vadd.f32 0.0, %v1945
        %v1947 = vpop.f32.mrf.mxu0
        %v1948 = vadd.f32 0.0, %v1947
        %1949 = vmatprep.mubr.bf16.mxu0 %v436
        %1950 = vmatmul.mubr.bf16.gmra.mxu0 %v435
        %v1951 = vpop.f32.mrf.mxu0
        %v1952 = vadd.f32 0.0, %v1951
        %v1953 = vpop.f32.mrf.mxu0
        %v1954 = vadd.f32 0.0, %v1953
        %v1955 = vpop.f32.mrf.mxu0
        %v1956 = vadd.f32 0.0, %v1955
        %v1957 = vpop.f32.mrf.mxu0
        %v1958 = vadd.f32 0.0, %v1957
        %1959 = vdwg.mxu0
        %1960 = vmatprep.subr.bf16.mxu0 %v1328
        %1961 = vmatpush1.bf16.msra.mxu0 %v1327
        %1962 = vmatprep.subr.bf16.mxu0 %v1316
        %1963 = vmatpush1.bf16.msra.mxu0 %v1315
        %1964 = vmatprep.subr.bf16.mxu0 %v1304
        %1965 = vmatpush1.bf16.msra.mxu0 %v1303
        %1966 = vmatprep.subr.bf16.mxu0 %v1292
        %1967 = vmatpush1.bf16.msra.mxu0 %v1291
        %1968 = vmatprep.subr.bf16.mxu0 %v1280
        %1969 = vmatpush1.bf16.msra.mxu0 %v1279
        %1970 = vmatprep.subr.bf16.mxu0 %v1268
        %1971 = vmatpush1.bf16.msra.mxu0 %v1267
        %1972 = vmatprep.subr.bf16.mxu0 %v1256
        %1973 = vmatpush1.bf16.msra.mxu0 %v1255
        %1974 = vmatprep.subr.bf16.mxu0 %v1244
        %1975 = vmatpush1.bf16.msra.mxu0 %v1243
        %1976 = vmatprep.subr.bf16.mxu0 %v1424
        %1977 = vmatpush2.bf16.msra.mxu0 %v1423
        %1978 = vmatprep.subr.bf16.mxu0 %v1412
        %1979 = vmatpush2.bf16.msra.mxu0 %v1411
        %1980 = vmatprep.subr.bf16.mxu0 %v1400
        %1981 = vmatpush2.bf16.msra.mxu0 %v1399
        %1982 = vmatprep.subr.bf16.mxu0 %v1388
        %1983 = vmatpush2.bf16.msra.mxu0 %v1387
        %1984 = vmatprep.subr.bf16.mxu0 %v1376
        %1985 = vmatpush2.bf16.msra.mxu0 %v1375
        %1986 = vmatprep.subr.bf16.mxu0 %v1364
        %1987 = vmatpush2.bf16.msra.mxu0 %v1363
        %1988 = vmatprep.subr.bf16.mxu0 %v1352
        %1989 = vmatpush2.bf16.msra.mxu0 %v1351
        %1990 = vmatprep.subr.bf16.mxu0 %v1340
        %1991 = vmatpush2.bf16.msra.mxu0 %v1339
        %1992 = vmatprep.mubr.bf16.mxu0 %v422
        %1993 = vmatmul.mubr.bf16.gmra.mxu0 %v421
        %v1994 = vpop.f32.mrf.mxu0
        %v1995 = vadd.f32 0.0, %v1994
        %v1996 = vpop.f32.mrf.mxu0
        %v1997 = vadd.f32 0.0, %v1996
        %v1998 = vpop.f32.mrf.mxu0
        %v1999 = vadd.f32 0.0, %v1998
        %v2000 = vpop.f32.mrf.mxu0
        %v2001 = vadd.f32 0.0, %v2000
        %2002 = vmatprep.mubr.bf16.mxu0 %v424
        %2003 = vmatmul.mubr.bf16.gmra.mxu0 %v423
        %v2004 = vpop.f32.mrf.mxu0
        %v2005 = vadd.f32 0.0, %v2004
        %v2006 = vpop.f32.mrf.mxu0
        %v2007 = vadd.f32 0.0, %v2006
        %v2008 = vpop.f32.mrf.mxu0
        %v2009 = vadd.f32 0.0, %v2008
        %v2010 = vpop.f32.mrf.mxu0
        %v2011 = vadd.f32 0.0, %v2010
        %2012 = vmatprep.mubr.bf16.mxu0 %v426
        %2013 = vmatmul.mubr.bf16.gmra.mxu0 %v425
        %v2014 = vpop.f32.mrf.mxu0
        %v2015 = vadd.f32 0.0, %v2014
        %v2016 = vpop.f32.mrf.mxu0
        %v2017 = vadd.f32 0.0, %v2016
        %v2018 = vpop.f32.mrf.mxu0
        %v2019 = vadd.f32 0.0, %v2018
        %v2020 = vpop.f32.mrf.mxu0
        %v2021 = vadd.f32 0.0, %v2020
        %2022 = vmatprep.mubr.bf16.mxu0 %v428
        %2023 = vmatmul.mubr.bf16.gmra.mxu0 %v427
        %v2024 = vpop.f32.mrf.mxu0
        %v2025 = vadd.f32 0.0, %v2024
        %v2026 = vpop.f32.mrf.mxu0
        %v2027 = vadd.f32 0.0, %v2026
        %v2028 = vpop.f32.mrf.mxu0
        %v2029 = vadd.f32 0.0, %v2028
        %v2030 = vpop.f32.mrf.mxu0
        %v2031 = vadd.f32 0.0, %v2030
        %2032 = vmatprep.mubr.bf16.mxu0 %v430
        %2033 = vmatmul.mubr.bf16.gmra.mxu0 %v429
        %v2034 = vpop.f32.mrf.mxu0
        %v2035 = vadd.f32 0.0, %v2034
        %v2036 = vpop.f32.mrf.mxu0
        %v2037 = vadd.f32 0.0, %v2036
        %v2038 = vpop.f32.mrf.mxu0
        %v2039 = vadd.f32 0.0, %v2038
        %v2040 = vpop.f32.mrf.mxu0
        %v2041 = vadd.f32 0.0, %v2040
        %2042 = vmatprep.mubr.bf16.mxu0 %v432
        %2043 = vmatmul.mubr.bf16.gmra.mxu0 %v431
        %v2044 = vpop.f32.mrf.mxu0
        %v2045 = vadd.f32 0.0, %v2044
        %v2046 = vpop.f32.mrf.mxu0
        %v2047 = vadd.f32 0.0, %v2046
        %v2048 = vpop.f32.mrf.mxu0
        %v2049 = vadd.f32 0.0, %v2048
        %v2050 = vpop.f32.mrf.mxu0
        %v2051 = vadd.f32 0.0, %v2050
        %2052 = vmatprep.mubr.bf16.mxu0 %v434
        %2053 = vmatmul.mubr.bf16.gmra.mxu0 %v433
        %v2054 = vpop.f32.mrf.mxu0
        %v2055 = vadd.f32 0.0, %v2054
        %v2056 = vpop.f32.mrf.mxu0
        %v2057 = vadd.f32 0.0, %v2056
        %v2058 = vpop.f32.mrf.mxu0
        %v2059 = vadd.f32 0.0, %v2058
        %v2060 = vpop.f32.mrf.mxu0
        %v2061 = vadd.f32 0.0, %v2060
        %2062 = vmatprep.mubr.bf16.mxu0 %v436
        %2063 = vmatmul.mubr.bf16.gmra.mxu0 %v435
        %v2064 = vpop.f32.mrf.mxu0
        %v2065 = vadd.f32 0.0, %v2064
        %v2066 = vpop.f32.mrf.mxu0
        %v2067 = vadd.f32 0.0, %v2066
        %v2068 = vpop.f32.mrf.mxu0
        %v2069 = vadd.f32 0.0, %v2068
        %v2070 = vpop.f32.mrf.mxu0
        %v2071 = vadd.f32 0.0, %v2070
        %2072 = vdwg.mxu0
        %2073 = vmatprep.subr.bf16.mxu0 %v1330
        %2074 = vmatpush1.bf16.msra.mxu0 %v1329
        %2075 = vmatprep.subr.bf16.mxu0 %v1318
        %2076 = vmatpush1.bf16.msra.mxu0 %v1317
        %2077 = vmatprep.subr.bf16.mxu0 %v1306
        %2078 = vmatpush1.bf16.msra.mxu0 %v1305
        %2079 = vmatprep.subr.bf16.mxu0 %v1294
        %2080 = vmatpush1.bf16.msra.mxu0 %v1293
        %2081 = vmatprep.subr.bf16.mxu0 %v1282
        %2082 = vmatpush1.bf16.msra.mxu0 %v1281
        %2083 = vmatprep.subr.bf16.mxu0 %v1270
        %2084 = vmatpush1.bf16.msra.mxu0 %v1269
        %2085 = vmatprep.subr.bf16.mxu0 %v1258
        %2086 = vmatpush1.bf16.msra.mxu0 %v1257
        %2087 = vmatprep.subr.bf16.mxu0 %v1246
        %2088 = vmatpush1.bf16.msra.mxu0 %v1245
        %2089 = vmatprep.subr.bf16.mxu0 %v1426
        %2090 = vmatpush2.bf16.msra.mxu0 %v1425
        %2091 = vmatprep.subr.bf16.mxu0 %v1414
        %2092 = vmatpush2.bf16.msra.mxu0 %v1413
        %2093 = vmatprep.subr.bf16.mxu0 %v1402
        %2094 = vmatpush2.bf16.msra.mxu0 %v1401
        %2095 = vmatprep.subr.bf16.mxu0 %v1390
        %2096 = vmatpush2.bf16.msra.mxu0 %v1389
        %2097 = vmatprep.subr.bf16.mxu0 %v1378
        %2098 = vmatpush2.bf16.msra.mxu0 %v1377
        %2099 = vmatprep.subr.bf16.mxu0 %v1366
        %2100 = vmatpush2.bf16.msra.mxu0 %v1365
        %2101 = vmatprep.subr.bf16.mxu0 %v1354
        %2102 = vmatpush2.bf16.msra.mxu0 %v1353
        %2103 = vmatprep.subr.bf16.mxu0 %v1342
        %2104 = vmatpush2.bf16.msra.mxu0 %v1341
        %2105 = vmatprep.mubr.bf16.mxu0 %v422
        %2106 = vmatmul.mubr.bf16.gmra.mxu0 %v421
        %v2107 = vpop.f32.mrf.mxu0
        %v2108 = vadd.f32 0.0, %v2107
        %v2109 = vpop.f32.mrf.mxu0
        %v2110 = vadd.f32 0.0, %v2109
        %v2111 = vpop.f32.mrf.mxu0
        %v2112 = vadd.f32 0.0, %v2111
        %v2113 = vpop.f32.mrf.mxu0
        %v2114 = vadd.f32 0.0, %v2113
        %2115 = vmatprep.mubr.bf16.mxu0 %v424
        %2116 = vmatmul.mubr.bf16.gmra.mxu0 %v423
        %v2117 = vpop.f32.mrf.mxu0
        %v2118 = vadd.f32 0.0, %v2117
        %v2119 = vpop.f32.mrf.mxu0
        %v2120 = vadd.f32 0.0, %v2119
        %v2121 = vpop.f32.mrf.mxu0
        %v2122 = vadd.f32 0.0, %v2121
        %v2123 = vpop.f32.mrf.mxu0
        %v2124 = vadd.f32 0.0, %v2123
        %2125 = vmatprep.mubr.bf16.mxu0 %v426
        %2126 = vmatmul.mubr.bf16.gmra.mxu0 %v425
        %v2127 = vpop.f32.mrf.mxu0
        %v2128 = vadd.f32 0.0, %v2127
        %v2129 = vpop.f32.mrf.mxu0
        %v2130 = vadd.f32 0.0, %v2129
        %v2131 = vpop.f32.mrf.mxu0
        %v2132 = vadd.f32 0.0, %v2131
        %v2133 = vpop.f32.mrf.mxu0
        %v2134 = vadd.f32 0.0, %v2133
        %2135 = vmatprep.mubr.bf16.mxu0 %v428
        %2136 = vmatmul.mubr.bf16.gmra.mxu0 %v427
        %v2137 = vpop.f32.mrf.mxu0
        %v2138 = vadd.f32 0.0, %v2137
        %v2139 = vpop.f32.mrf.mxu0
        %v2140 = vadd.f32 0.0, %v2139
        %v2141 = vpop.f32.mrf.mxu0
        %v2142 = vadd.f32 0.0, %v2141
        %v2143 = vpop.f32.mrf.mxu0
        %v2144 = vadd.f32 0.0, %v2143
        %2145 = vmatprep.mubr.bf16.mxu0 %v430
        %2146 = vmatmul.mubr.bf16.gmra.mxu0 %v429
        %v2147 = vpop.f32.mrf.mxu0
        %v2148 = vadd.f32 0.0, %v2147
        %v2149 = vpop.f32.mrf.mxu0
        %v2150 = vadd.f32 0.0, %v2149
        %v2151 = vpop.f32.mrf.mxu0
        %v2152 = vadd.f32 0.0, %v2151
        %v2153 = vpop.f32.mrf.mxu0
        %v2154 = vadd.f32 0.0, %v2153
        %2155 = vmatprep.mubr.bf16.mxu0 %v432
        %2156 = vmatmul.mubr.bf16.gmra.mxu0 %v431
        %v2157 = vpop.f32.mrf.mxu0
        %v2158 = vadd.f32 0.0, %v2157
        %v2159 = vpop.f32.mrf.mxu0
        %v2160 = vadd.f32 0.0, %v2159
        %v2161 = vpop.f32.mrf.mxu0
        %v2162 = vadd.f32 0.0, %v2161
        %v2163 = vpop.f32.mrf.mxu0
        %v2164 = vadd.f32 0.0, %v2163
        %2165 = vmatprep.mubr.bf16.mxu0 %v434
        %2166 = vmatmul.mubr.bf16.gmra.mxu0 %v433
        %v2167 = vpop.f32.mrf.mxu0
        %v2168 = vadd.f32 0.0, %v2167
        %v2169 = vpop.f32.mrf.mxu0
        %v2170 = vadd.f32 0.0, %v2169
        %v2171 = vpop.f32.mrf.mxu0
        %v2172 = vadd.f32 0.0, %v2171
        %v2173 = vpop.f32.mrf.mxu0
        %v2174 = vadd.f32 0.0, %v2173
        %2175 = vmatprep.mubr.bf16.mxu0 %v436
        %2176 = vmatmul.mubr.bf16.gmra.mxu0 %v435
        %v2177 = vpop.f32.mrf.mxu0
        %v2178 = vadd.f32 0.0, %v2177
        %v2179 = vpop.f32.mrf.mxu0
        %v2180 = vadd.f32 0.0, %v2179
        %v2181 = vpop.f32.mrf.mxu0
        %v2182 = vadd.f32 0.0, %v2181
        %v2183 = vpop.f32.mrf.mxu0
        %v2184 = vadd.f32 0.0, %v2183
        %2185 = vdwg.mxu0
        %2186 = vmatprep.subr.bf16.mxu0 %v1332
        %2187 = vmatpush1.bf16.msra.mxu0 %v1331
        %2188 = vmatprep.subr.bf16.mxu0 %v1320
        %2189 = vmatpush1.bf16.msra.mxu0 %v1319
        %2190 = vmatprep.subr.bf16.mxu0 %v1308
        %2191 = vmatpush1.bf16.msra.mxu0 %v1307
        %2192 = vmatprep.subr.bf16.mxu0 %v1296
        %2193 = vmatpush1.bf16.msra.mxu0 %v1295
        %2194 = vmatprep.subr.bf16.mxu0 %v1284
        %2195 = vmatpush1.bf16.msra.mxu0 %v1283
        %2196 = vmatprep.subr.bf16.mxu0 %v1272
        %2197 = vmatpush1.bf16.msra.mxu0 %v1271
        %2198 = vmatprep.subr.bf16.mxu0 %v1260
        %2199 = vmatpush1.bf16.msra.mxu0 %v1259
        %2200 = vmatprep.subr.bf16.mxu0 %v1248
        %2201 = vmatpush1.bf16.msra.mxu0 %v1247
        %2202 = vmatprep.subr.bf16.mxu0 %v1428
        %2203 = vmatpush2.bf16.msra.mxu0 %v1427
        %2204 = vmatprep.subr.bf16.mxu0 %v1416
        %2205 = vmatpush2.bf16.msra.mxu0 %v1415
        %2206 = vmatprep.subr.bf16.mxu0 %v1404
        %2207 = vmatpush2.bf16.msra.mxu0 %v1403
        %2208 = vmatprep.subr.bf16.mxu0 %v1392
        %2209 = vmatpush2.bf16.msra.mxu0 %v1391
        %2210 = vmatprep.subr.bf16.mxu0 %v1380
        %2211 = vmatpush2.bf16.msra.mxu0 %v1379
        %2212 = vmatprep.subr.bf16.mxu0 %v1368
        %2213 = vmatpush2.bf16.msra.mxu0 %v1367
        %2214 = vmatprep.subr.bf16.mxu0 %v1356
        %2215 = vmatpush2.bf16.msra.mxu0 %v1355
        %2216 = vmatprep.subr.bf16.mxu0 %v1344
        %2217 = vmatpush2.bf16.msra.mxu0 %v1343
        %2218 = vmatprep.mubr.bf16.mxu0 %v422
        %2219 = vmatmul.mubr.bf16.gmra.mxu0 %v421
        %v2220 = vpop.f32.mrf.mxu0
        %v2221 = vadd.f32 0.0, %v2220
        %v2222 = vpop.f32.mrf.mxu0
        %v2223 = vadd.f32 0.0, %v2222
        %v2224 = vpop.f32.mrf.mxu0
        %v2225 = vadd.f32 0.0, %v2224
        %v2226 = vpop.f32.mrf.mxu0
        %v2227 = vadd.f32 0.0, %v2226
        %2228 = vmatprep.mubr.bf16.mxu0 %v424
        %2229 = vmatmul.mubr.bf16.gmra.mxu0 %v423
        %v2230 = vpop.f32.mrf.mxu0
        %v2231 = vadd.f32 0.0, %v2230
        %v2232 = vpop.f32.mrf.mxu0
        %v2233 = vadd.f32 0.0, %v2232
        %v2234 = vpop.f32.mrf.mxu0
        %v2235 = vadd.f32 0.0, %v2234
        %v2236 = vpop.f32.mrf.mxu0
        %v2237 = vadd.f32 0.0, %v2236
        %2238 = vmatprep.mubr.bf16.mxu0 %v426
        %2239 = vmatmul.mubr.bf16.gmra.mxu0 %v425
        %v2240 = vpop.f32.mrf.mxu0
        %v2241 = vadd.f32 0.0, %v2240
        %v2242 = vpop.f32.mrf.mxu0
        %v2243 = vadd.f32 0.0, %v2242
        %v2244 = vpop.f32.mrf.mxu0
        %v2245 = vadd.f32 0.0, %v2244
        %v2246 = vpop.f32.mrf.mxu0
        %v2247 = vadd.f32 0.0, %v2246
        %2248 = vmatprep.mubr.bf16.mxu0 %v428
        %2249 = vmatmul.mubr.bf16.gmra.mxu0 %v427
        %v2250 = vpop.f32.mrf.mxu0
        %v2251 = vadd.f32 0.0, %v2250
        %v2252 = vpop.f32.mrf.mxu0
        %v2253 = vadd.f32 0.0, %v2252
        %v2254 = vpop.f32.mrf.mxu0
        %v2255 = vadd.f32 0.0, %v2254
        %v2256 = vpop.f32.mrf.mxu0
        %v2257 = vadd.f32 0.0, %v2256
        %2258 = vmatprep.mubr.bf16.mxu0 %v430
        %2259 = vmatmul.mubr.bf16.gmra.mxu0 %v429
        %v2260 = vpop.f32.mrf.mxu0
        %v2261 = vadd.f32 0.0, %v2260
        %v2262 = vpop.f32.mrf.mxu0
        %v2263 = vadd.f32 0.0, %v2262
        %v2264 = vpop.f32.mrf.mxu0
        %v2265 = vadd.f32 0.0, %v2264
        %v2266 = vpop.f32.mrf.mxu0
        %v2267 = vadd.f32 0.0, %v2266
        %2268 = vmatprep.mubr.bf16.mxu0 %v432
        %2269 = vmatmul.mubr.bf16.gmra.mxu0 %v431
        %v2270 = vpop.f32.mrf.mxu0
        %v2271 = vadd.f32 0.0, %v2270
        %v2272 = vpop.f32.mrf.mxu0
        %v2273 = vadd.f32 0.0, %v2272
        %v2274 = vpop.f32.mrf.mxu0
        %v2275 = vadd.f32 0.0, %v2274
        %v2276 = vpop.f32.mrf.mxu0
        %v2277 = vadd.f32 0.0, %v2276
        %2278 = vmatprep.mubr.bf16.mxu0 %v434
        %2279 = vmatmul.mubr.bf16.gmra.mxu0 %v433
        %v2280 = vpop.f32.mrf.mxu0
        %v2281 = vadd.f32 0.0, %v2280
        %v2282 = vpop.f32.mrf.mxu0
        %v2283 = vadd.f32 0.0, %v2282
        %v2284 = vpop.f32.mrf.mxu0
        %v2285 = vadd.f32 0.0, %v2284
        %v2286 = vpop.f32.mrf.mxu0
        %v2287 = vadd.f32 0.0, %v2286
        %2288 = vmatprep.mubr.bf16.mxu0 %v436
        %2289 = vmatmul.mubr.bf16.gmra.mxu0 %v435
        %v2290 = vpop.f32.mrf.mxu0
        %v2291 = vadd.f32 0.0, %v2290
        %v2292 = vpop.f32.mrf.mxu0
        %v2293 = vadd.f32 0.0, %v2292
        %v2294 = vpop.f32.mrf.mxu0
        %v2295 = vadd.f32 0.0, %v2294
        %v2296 = vpop.f32.mrf.mxu0
        %v2297 = vadd.f32 0.0, %v2296
        %2298 = vdwg.mxu0
        %v2299 = vld [vmem:[%s6] sm:$0x3f]
        %v2301 = vlaneseq
        %v2302 = vshrl.u32 %v2301, 7
        %v2303 = vsub.s32 0, %v2302
        %v2304 = vrot.slane %v2299, %v2303
        %v2305 = vlaneseq
        %v2306 = vshrl.u32 %v2305, 7
        %v2307 = vsub.s32 1, %v2306
        %v2308 = vrot.slane %v2299, %v2307
        %v2309 = vlaneseq
        %v2310 = vshrl.u32 %v2309, 7
        %v2311 = vsub.s32 2, %v2310
        %v2312 = vrot.slane %v2299, %v2311
        %v2313 = vlaneseq
        %v2314 = vshrl.u32 %v2313, 7
        %v2315 = vsub.s32 3, %v2314
        %v2316 = vrot.slane %v2299, %v2315
        %v2317 = vlaneseq
        %v2318 = vshrl.u32 %v2317, 7
        %v2319 = vsub.s32 4, %v2318
        %v2320 = vrot.slane %v2299, %v2319
        %v2321 = vlaneseq
        %v2322 = vshrl.u32 %v2321, 7
        %v2323 = vsub.s32 5, %v2322
        %v2324 = vrot.slane %v2299, %v2323
        %v2331 = vadd.f32 %v1995, %v2304
        %v2332 = vadd.f32 %v1997, %v2308
        %v2333 = vadd.f32 %v2108, %v2312
        %v2334 = vadd.f32 %v2110, %v2316
        %v2335 = vadd.f32 %v2221, %v2320
        %v2336 = vadd.f32 %v2223, %v2324
        %v2337 = vadd.f32 %v1999, %v2304
        %v2338 = vadd.f32 %v2001, %v2308
        %v2339 = vadd.f32 %v2112, %v2312
        %v2340 = vadd.f32 %v2114, %v2316
        %v2341 = vadd.f32 %v2225, %v2320
        %v2342 = vadd.f32 %v2227, %v2324
        %v2343 = vadd.f32 %v2005, %v2304
        %v2344 = vadd.f32 %v2007, %v2308
        %v2345 = vadd.f32 %v2118, %v2312
        %v2346 = vadd.f32 %v2120, %v2316
        %v2347 = vadd.f32 %v2231, %v2320
        %v2348 = vadd.f32 %v2233, %v2324
        %v2349 = vadd.f32 %v2009, %v2304
        %v2350 = vadd.f32 %v2011, %v2308
        %v2351 = vadd.f32 %v2122, %v2312
        %v2352 = vadd.f32 %v2124, %v2316
        %v2353 = vadd.f32 %v2235, %v2320
        %v2354 = vadd.f32 %v2237, %v2324
        %v2355 = vadd.f32 %v2015, %v2304
        %v2356 = vadd.f32 %v2017, %v2308
        %v2357 = vadd.f32 %v2128, %v2312
        %v2358 = vadd.f32 %v2130, %v2316
        %v2359 = vadd.f32 %v2241, %v2320
        %v2360 = vadd.f32 %v2243, %v2324
        %v2361 = vadd.f32 %v2019, %v2304
        %v2362 = vadd.f32 %v2021, %v2308
        %v2363 = vadd.f32 %v2132, %v2312
        %v2364 = vadd.f32 %v2134, %v2316
        %v2365 = vadd.f32 %v2245, %v2320
        %v2366 = vadd.f32 %v2247, %v2324
        %v2367 = vadd.f32 %v2025, %v2304
        %v2368 = vadd.f32 %v2027, %v2308
        %v2369 = vadd.f32 %v2138, %v2312
        %v2370 = vadd.f32 %v2140, %v2316
        %v2371 = vadd.f32 %v2251, %v2320
        %v2372 = vadd.f32 %v2253, %v2324
        %v2373 = vadd.f32 %v2029, %v2304
        %v2374 = vadd.f32 %v2031, %v2308
        %v2375 = vadd.f32 %v2142, %v2312
        %v2376 = vadd.f32 %v2144, %v2316
        %v2377 = vadd.f32 %v2255, %v2320
        %v2378 = vadd.f32 %v2257, %v2324
        %v2379 = vadd.f32 %v2035, %v2304
        %v2380 = vadd.f32 %v2037, %v2308
        %v2381 = vadd.f32 %v2148, %v2312
        %v2382 = vadd.f32 %v2150, %v2316
        %v2383 = vadd.f32 %v2261, %v2320
        %v2384 = vadd.f32 %v2263, %v2324
        %v2385 = vadd.f32 %v2039, %v2304
        %v2386 = vadd.f32 %v2041, %v2308
        %v2387 = vadd.f32 %v2152, %v2312
        %v2388 = vadd.f32 %v2154, %v2316
        %v2389 = vadd.f32 %v2265, %v2320
        %v2390 = vadd.f32 %v2267, %v2324
        %v2391 = vadd.f32 %v2045, %v2304
        %v2392 = vadd.f32 %v2047, %v2308
        %v2393 = vadd.f32 %v2158, %v2312
        %v2394 = vadd.f32 %v2160, %v2316
        %v2395 = vadd.f32 %v2271, %v2320
        %v2396 = vadd.f32 %v2273, %v2324
        %v2397 = vadd.f32 %v2049, %v2304
        %v2398 = vadd.f32 %v2051, %v2308
        %v2399 = vadd.f32 %v2162, %v2312
        %v2400 = vadd.f32 %v2164, %v2316
        %v2401 = vadd.f32 %v2275, %v2320
        %v2402 = vadd.f32 %v2277, %v2324
        %v2403 = vadd.f32 %v2055, %v2304
        %v2404 = vadd.f32 %v2057, %v2308
        %v2405 = vadd.f32 %v2168, %v2312
        %v2406 = vadd.f32 %v2170, %v2316
        %v2407 = vadd.f32 %v2281, %v2320
        %v2408 = vadd.f32 %v2283, %v2324
        %v2409 = vadd.f32 %v2059, %v2304
        %v2410 = vadd.f32 %v2061, %v2308
        %v2411 = vadd.f32 %v2172, %v2312
        %v2412 = vadd.f32 %v2174, %v2316
        %v2413 = vadd.f32 %v2285, %v2320
        %v2414 = vadd.f32 %v2287, %v2324
        %v2415 = vadd.f32 %v2065, %v2304
        %v2416 = vadd.f32 %v2067, %v2308
        %v2417 = vadd.f32 %v2178, %v2312
        %v2418 = vadd.f32 %v2180, %v2316
        %v2419 = vadd.f32 %v2291, %v2320
        %v2420 = vadd.f32 %v2293, %v2324
        %v2421 = vadd.f32 %v2069, %v2304
        %v2422 = vadd.f32 %v2071, %v2308
        %v2423 = vadd.f32 %v2182, %v2312
        %v2424 = vadd.f32 %v2184, %v2316
        %v2425 = vadd.f32 %v2295, %v2320
        %v2426 = vadd.f32 %v2297, %v2324
        %v2427 = vsel %vm453, 1, 0
        %v2428 = vsel %vm454, 1, 0
        %v2429 = vsel %vm455, 1, 0
        %v2430 = vsel %vm456, 1, 0
        %v2431 = vsel %vm457, 1, 0
        %v2432 = vsel %vm458, 1, 0
        %v2433 = vsel %vm459, 1, 0
        %v2434 = vsel %vm460, 1, 0
        %v2435 = vsel %vm461, 1, 0
        %v2436 = vsel %vm462, 1, 0
        %v2437 = vsel %vm463, 1, 0
        %v2438 = vsel %vm464, 1, 0
        %v2439 = vsel %vm465, 1, 0
        %v2440 = vsel %vm466, 1, 0
        %v2441 = vsel %vm467, 1, 0
        %v2442 = vsel %vm468, 1, 0
        %2443 = vset.pattern.permute.xlu0 0
        %2444 = vperm.xlu0 %2443, %v2427
        %v2445 = vpop.permute.xlu0 %2444
        %2446 = vset.pattern.permute.xlu0 0
        %2447 = vperm.xlu0 %2446, %v2428
        %v2448 = vpop.permute.xlu0 %2447
        %2449 = vset.pattern.permute.xlu0 0
        %2450 = vperm.xlu0 %2449, %v2429
        %v2451 = vpop.permute.xlu0 %2450
        %2452 = vset.pattern.permute.xlu0 0
        %2453 = vperm.xlu0 %2452, %v2430
        %v2454 = vpop.permute.xlu0 %2453
        %2455 = vset.pattern.permute.xlu0 0
        %2456 = vperm.xlu0 %2455, %v2431
        %v2457 = vpop.permute.xlu0 %2456
        %2458 = vset.pattern.permute.xlu0 0
        %2459 = vperm.xlu0 %2458, %v2432
        %v2460 = vpop.permute.xlu0 %2459
        %2461 = vset.pattern.permute.xlu0 0
        %2462 = vperm.xlu0 %2461, %v2433
        %v2463 = vpop.permute.xlu0 %2462
        %2464 = vset.pattern.permute.xlu0 0
        %2465 = vperm.xlu0 %2464, %v2434
        %v2466 = vpop.permute.xlu0 %2465
        %2467 = vset.pattern.permute.xlu0 0
        %2468 = vperm.xlu0 %2467, %v2435
        %v2469 = vpop.permute.xlu0 %2468
        %2470 = vset.pattern.permute.xlu0 0
        %2471 = vperm.xlu0 %2470, %v2436
        %v2472 = vpop.permute.xlu0 %2471
        %2473 = vset.pattern.permute.xlu0 0
        %2474 = vperm.xlu0 %2473, %v2437
        %v2475 = vpop.permute.xlu0 %2474
        %2476 = vset.pattern.permute.xlu0 0
        %2477 = vperm.xlu0 %2476, %v2438
        %v2478 = vpop.permute.xlu0 %2477
        %2479 = vset.pattern.permute.xlu0 0
        %2480 = vperm.xlu0 %2479, %v2439
        %v2481 = vpop.permute.xlu0 %2480
        %2482 = vset.pattern.permute.xlu0 0
        %2483 = vperm.xlu0 %2482, %v2440
        %v2484 = vpop.permute.xlu0 %2483
        %2485 = vset.pattern.permute.xlu0 0
        %2486 = vperm.xlu0 %2485, %v2441
        %v2487 = vpop.permute.xlu0 %2486
        %2488 = vset.pattern.permute.xlu0 0
        %2489 = vperm.xlu0 %2488, %v2442
        %v2490 = vpop.permute.xlu0 %2489
        %vm2491 = vcmp.eq.s32.totalorder %v2445, 1
        %vm2492 = vcmp.eq.s32.totalorder %v2448, 1
        %vm2493 = vcmp.eq.s32.totalorder %v2451, 1
        %vm2494 = vcmp.eq.s32.totalorder %v2454, 1
        %vm2495 = vcmp.eq.s32.totalorder %v2457, 1
        %vm2496 = vcmp.eq.s32.totalorder %v2460, 1
        %vm2497 = vcmp.eq.s32.totalorder %v2463, 1
        %vm2498 = vcmp.eq.s32.totalorder %v2466, 1
        %vm2499 = vcmp.eq.s32.totalorder %v2469, 1
        %vm2500 = vcmp.eq.s32.totalorder %v2472, 1
        %vm2501 = vcmp.eq.s32.totalorder %v2475, 1
        %vm2502 = vcmp.eq.s32.totalorder %v2478, 1
        %vm2503 = vcmp.eq.s32.totalorder %v2481, 1
        %vm2504 = vcmp.eq.s32.totalorder %v2484, 1
        %vm2505 = vcmp.eq.s32.totalorder %v2487, 1
        %vm2506 = vcmp.eq.s32.totalorder %v2490, 1
        %v2507 = vsel %vm2491, %v2331, %v1656
        %v2508 = vsel %vm2491, %v2332, %v1658
        %v2509 = vsel %vm2491, %v2333, %v1769
        %v2510 = vsel %vm2491, %v2334, %v1771
        %v2511 = vsel %vm2491, %v2335, %v1882
        %v2512 = vsel %vm2491, %v2336, %v1884
        %v2513 = vsel %vm2492, %v2337, %v1660
        %v2514 = vsel %vm2492, %v2338, %v1662
        %v2515 = vsel %vm2492, %v2339, %v1773
        %v2516 = vsel %vm2492, %v2340, %v1775
        %v2517 = vsel %vm2492, %v2341, %v1886
        %v2518 = vsel %vm2492, %v2342, %v1888
        %v2519 = vsel %vm2493, %v2343, %v1666
        %v2520 = vsel %vm2493, %v2344, %v1668
        %v2521 = vsel %vm2493, %v2345, %v1779
        %v2522 = vsel %vm2493, %v2346, %v1781
        %v2523 = vsel %vm2493, %v2347, %v1892
        %v2524 = vsel %vm2493, %v2348, %v1894
        %v2525 = vsel %vm2494, %v2349, %v1670
        %v2526 = vsel %vm2494, %v2350, %v1672
        %v2527 = vsel %vm2494, %v2351, %v1783
        %v2528 = vsel %vm2494, %v2352, %v1785
        %v2529 = vsel %vm2494, %v2353, %v1896
        %v2530 = vsel %vm2494, %v2354, %v1898
        %v2531 = vsel %vm2495, %v2355, %v1676
        %v2532 = vsel %vm2495, %v2356, %v1678
        %v2533 = vsel %vm2495, %v2357, %v1789
        %v2534 = vsel %vm2495, %v2358, %v1791
        %v2535 = vsel %vm2495, %v2359, %v1902
        %v2536 = vsel %vm2495, %v2360, %v1904
        %v2537 = vsel %vm2496, %v2361, %v1680
        %v2538 = vsel %vm2496, %v2362, %v1682
        %v2539 = vsel %vm2496, %v2363, %v1793
        %v2540 = vsel %vm2496, %v2364, %v1795
        %v2541 = vsel %vm2496, %v2365, %v1906
        %v2542 = vsel %vm2496, %v2366, %v1908
        %v2543 = vsel %vm2497, %v2367, %v1686
        %v2544 = vsel %vm2497, %v2368, %v1688
        %v2545 = vsel %vm2497, %v2369, %v1799
        %v2546 = vsel %vm2497, %v2370, %v1801
        %v2547 = vsel %vm2497, %v2371, %v1912
        %v2548 = vsel %vm2497, %v2372, %v1914
        %v2549 = vsel %vm2498, %v2373, %v1690
        %v2550 = vsel %vm2498, %v2374, %v1692
        %v2551 = vsel %vm2498, %v2375, %v1803
        %v2552 = vsel %vm2498, %v2376, %v1805
        %v2553 = vsel %vm2498, %v2377, %v1916
        %v2554 = vsel %vm2498, %v2378, %v1918
        %v2555 = vsel %vm2499, %v2379, %v1696
        %v2556 = vsel %vm2499, %v2380, %v1698
        %v2557 = vsel %vm2499, %v2381, %v1809
        %v2558 = vsel %vm2499, %v2382, %v1811
        %v2559 = vsel %vm2499, %v2383, %v1922
        %v2560 = vsel %vm2499, %v2384, %v1924
        %v2561 = vsel %vm2500, %v2385, %v1700
        %v2562 = vsel %vm2500, %v2386, %v1702
        %v2563 = vsel %vm2500, %v2387, %v1813
        %v2564 = vsel %vm2500, %v2388, %v1815
        %v2565 = vsel %vm2500, %v2389, %v1926
        %v2566 = vsel %vm2500, %v2390, %v1928
        %v2567 = vsel %vm2501, %v2391, %v1706
        %v2568 = vsel %vm2501, %v2392, %v1708
        %v2569 = vsel %vm2501, %v2393, %v1819
        %v2570 = vsel %vm2501, %v2394, %v1821
        %v2571 = vsel %vm2501, %v2395, %v1932
        %v2572 = vsel %vm2501, %v2396, %v1934
        %v2573 = vsel %vm2502, %v2397, %v1710
        %v2574 = vsel %vm2502, %v2398, %v1712
        %v2575 = vsel %vm2502, %v2399, %v1823
        %v2576 = vsel %vm2502, %v2400, %v1825
        %v2577 = vsel %vm2502, %v2401, %v1936
        %v2578 = vsel %vm2502, %v2402, %v1938
        %v2579 = vsel %vm2503, %v2403, %v1716
        %v2580 = vsel %vm2503, %v2404, %v1718
        %v2581 = vsel %vm2503, %v2405, %v1829
        %v2582 = vsel %vm2503, %v2406, %v1831
        %v2583 = vsel %vm2503, %v2407, %v1942
        %v2584 = vsel %vm2503, %v2408, %v1944
        %v2585 = vsel %vm2504, %v2409, %v1720
        %v2586 = vsel %vm2504, %v2410, %v1722
        %v2587 = vsel %vm2504, %v2411, %v1833
        %v2588 = vsel %vm2504, %v2412, %v1835
        %v2589 = vsel %vm2504, %v2413, %v1946
        %v2590 = vsel %vm2504, %v2414, %v1948
        %v2591 = vsel %vm2505, %v2415, %v1726
        %v2592 = vsel %vm2505, %v2416, %v1728
        %v2593 = vsel %vm2505, %v2417, %v1839
        %v2594 = vsel %vm2505, %v2418, %v1841
        %v2595 = vsel %vm2505, %v2419, %v1952
        %v2596 = vsel %vm2505, %v2420, %v1954
        %v2597 = vsel %vm2506, %v2421, %v1730
        %v2598 = vsel %vm2506, %v2422, %v1732
        %v2599 = vsel %vm2506, %v2423, %v1843
        %v2600 = vsel %vm2506, %v2424, %v1845
        %v2601 = vsel %vm2506, %v2425, %v1956
        %v2602 = vsel %vm2506, %v2426, %v1958
        %2603 = vst [vmem:[#allocation2] sm:$0xff] %v2507
        %2604 = vst [vmem:[#allocation2 + $0x8] sm:$0xff] %v2508
        %2605 = vst [vmem:[#allocation2 + $0x10] sm:$0xff] %v2509
        %2606 = vst [vmem:[#allocation2 + $0x18] sm:$0xff] %v2510
        %2607 = vst [vmem:[#allocation2 + $0x20] sm:$0xff] %v2511
        %2608 = vst [vmem:[#allocation2 + $0x28] sm:$0xff] %v2512
        %2609 = vst [vmem:[#allocation2 + $0x30] sm:$0xff] %v2513
        %2610 = vst [vmem:[#allocation2 + $0x38] sm:$0xff] %v2514
        %2611 = vst [vmem:[#allocation2 + $0x40] sm:$0xff] %v2515
        %2612 = vst [vmem:[#allocation2 + $0x48] sm:$0xff] %v2516
        %2613 = vst [vmem:[#allocation2 + $0x50] sm:$0xff] %v2517
        %2614 = vst [vmem:[#allocation2 + $0x58] sm:$0xff] %v2518
        %2615 = vst [vmem:[#allocation2 + $0x60] sm:$0xff] %v2519
        %2616 = vst [vmem:[#allocation2 + $0x68] sm:$0xff] %v2520
        %2617 = vst [vmem:[#allocation2 + $0x70] sm:$0xff] %v2521
        %2618 = vst [vmem:[#allocation2 + $0x78] sm:$0xff] %v2522
        %2619 = vst [vmem:[#allocation2 + $0x80] sm:$0xff] %v2523
        %2620 = vst [vmem:[#allocation2 + $0x88] sm:$0xff] %v2524
        %2621 = vst [vmem:[#allocation2 + $0x90] sm:$0xff] %v2525
        %2622 = vst [vmem:[#allocation2 + $0x98] sm:$0xff] %v2526
        %2623 = vst [vmem:[#allocation2 + $0xa0] sm:$0xff] %v2527
        %2624 = vst [vmem:[#allocation2 + $0xa8] sm:$0xff] %v2528
        %2625 = vst [vmem:[#allocation2 + $0xb0] sm:$0xff] %v2529
        %2626 = vst [vmem:[#allocation2 + $0xb8] sm:$0xff] %v2530
        %2627 = vst [vmem:[#allocation2 + $0xc0] sm:$0xff] %v2531
        %2628 = vst [vmem:[#allocation2 + $0xc8] sm:$0xff] %v2532
        %2629 = vst [vmem:[#allocation2 + $0xd0] sm:$0xff] %v2533
        %2630 = vst [vmem:[#allocation2 + $0xd8] sm:$0xff] %v2534
        %2631 = vst [vmem:[#allocation2 + $0xe0] sm:$0xff] %v2535
        %2632 = vst [vmem:[#allocation2 + $0xe8] sm:$0xff] %v2536
        %2633 = vst [vmem:[#allocation2 + $0xf0] sm:$0xff] %v2537
        %2634 = vst [vmem:[#allocation2 + $0xf8] sm:$0xff] %v2538
        %2635 = vst [vmem:[#allocation2 + $0x100] sm:$0xff] %v2539
        %2636 = vst [vmem:[#allocation2 + $0x108] sm:$0xff] %v2540
        %2637 = vst [vmem:[#allocation2 + $0x110] sm:$0xff] %v2541
        %2638 = vst [vmem:[#allocation2 + $0x118] sm:$0xff] %v2542
        %2639 = vst [vmem:[#allocation2 + $0x120] sm:$0xff] %v2543
        %2640 = vst [vmem:[#allocation2 + $0x128] sm:$0xff] %v2544
        %2641 = vst [vmem:[#allocation2 + $0x130] sm:$0xff] %v2545
        %2642 = vst [vmem:[#allocation2 + $0x138] sm:$0xff] %v2546
        %2643 = vst [vmem:[#allocation2 + $0x140] sm:$0xff] %v2547
        %2644 = vst [vmem:[#allocation2 + $0x148] sm:$0xff] %v2548
        %2645 = vst [vmem:[#allocation2 + $0x150] sm:$0xff] %v2549
        %2646 = vst [vmem:[#allocation2 + $0x158] sm:$0xff] %v2550
        %2647 = vst [vmem:[#allocation2 + $0x160] sm:$0xff] %v2551
        %2648 = vst [vmem:[#allocation2 + $0x168] sm:$0xff] %v2552
        %2649 = vst [vmem:[#allocation2 + $0x170] sm:$0xff] %v2553
        %2650 = vst [vmem:[#allocation2 + $0x178] sm:$0xff] %v2554
        %2651 = vst [vmem:[#allocation2 + $0x180] sm:$0xff] %v2555
        %2652 = vst [vmem:[#allocation2 + $0x188] sm:$0xff] %v2556
        %2653 = vst [vmem:[#allocation2 + $0x190] sm:$0xff] %v2557
        %2654 = vst [vmem:[#allocation2 + $0x198] sm:$0xff] %v2558
        %2655 = vst [vmem:[#allocation2 + $0x1a0] sm:$0xff] %v2559
        %2656 = vst [vmem:[#allocation2 + $0x1a8] sm:$0xff] %v2560
        %2657 = vst [vmem:[#allocation2 + $0x1b0] sm:$0xff] %v2561
        %2658 = vst [vmem:[#allocation2 + $0x1b8] sm:$0xff] %v2562
        %2659 = vst [vmem:[#allocation2 + $0x1c0] sm:$0xff] %v2563
        %2660 = vst [vmem:[#allocation2 + $0x1c8] sm:$0xff] %v2564
        %2661 = vst [vmem:[#allocation2 + $0x1d0] sm:$0xff] %v2565
        %2662 = vst [vmem:[#allocation2 + $0x1d8] sm:$0xff] %v2566
        %2663 = vst [vmem:[#allocation2 + $0x1e0] sm:$0xff] %v2567
        %2664 = vst [vmem:[#allocation2 + $0x1e8] sm:$0xff] %v2568
        %2665 = vst [vmem:[#allocation2 + $0x1f0] sm:$0xff] %v2569
        %2666 = vst [vmem:[#allocation2 + $0x1f8] sm:$0xff] %v2570
        %2667 = vst [vmem:[#allocation2 + $0x200] sm:$0xff] %v2571
        %2668 = vst [vmem:[#allocation2 + $0x208] sm:$0xff] %v2572
        %2669 = vst [vmem:[#allocation2 + $0x210] sm:$0xff] %v2573
        %2670 = vst [vmem:[#allocation2 + $0x218] sm:$0xff] %v2574
        %2671 = vst [vmem:[#allocation2 + $0x220] sm:$0xff] %v2575
        %2672 = vst [vmem:[#allocation2 + $0x228] sm:$0xff] %v2576
        %2673 = vst [vmem:[#allocation2 + $0x230] sm:$0xff] %v2577
        %2674 = vst [vmem:[#allocation2 + $0x238] sm:$0xff] %v2578
        %2675 = vst [vmem:[#allocation2 + $0x240] sm:$0xff] %v2579
        %2676 = vst [vmem:[#allocation2 + $0x248] sm:$0xff] %v2580
        %2677 = vst [vmem:[#allocation2 + $0x250] sm:$0xff] %v2581
        %2678 = vst [vmem:[#allocation2 + $0x258] sm:$0xff] %v2582
        %2679 = vst [vmem:[#allocation2 + $0x260] sm:$0xff] %v2583
        %2680 = vst [vmem:[#allocation2 + $0x268] sm:$0xff] %v2584
        %2681 = vst [vmem:[#allocation2 + $0x270] sm:$0xff] %v2585
        %2682 = vst [vmem:[#allocation2 + $0x278] sm:$0xff] %v2586
        %2683 = vst [vmem:[#allocation2 + $0x280] sm:$0xff] %v2587
        %2684 = vst [vmem:[#allocation2 + $0x288] sm:$0xff] %v2588
        %2685 = vst [vmem:[#allocation2 + $0x290] sm:$0xff] %v2589
        %2686 = vst [vmem:[#allocation2 + $0x298] sm:$0xff] %v2590
        %2687 = vst [vmem:[#allocation2 + $0x2a0] sm:$0xff] %v2591
        %2688 = vst [vmem:[#allocation2 + $0x2a8] sm:$0xff] %v2592
        %2689 = vst [vmem:[#allocation2 + $0x2b0] sm:$0xff] %v2593
        %2690 = vst [vmem:[#allocation2 + $0x2b8] sm:$0xff] %v2594
        %2691 = vst [vmem:[#allocation2 + $0x2c0] sm:$0xff] %v2595
        %2692 = vst [vmem:[#allocation2 + $0x2c8] sm:$0xff] %v2596
        %2693 = vst [vmem:[#allocation2 + $0x2d0] sm:$0xff] %v2597
        %2694 = vst [vmem:[#allocation2 + $0x2d8] sm:$0xff] %v2598
        %2695 = vst [vmem:[#allocation2 + $0x2e0] sm:$0xff] %v2599
        %2696 = vst [vmem:[#allocation2 + $0x2e8] sm:$0xff] %v2600
        %2697 = vst [vmem:[#allocation2 + $0x2f0] sm:$0xff] %v2601
        %2698 = vst [vmem:[#allocation2 + $0x2f8] sm:$0xff] %v2602
        %v2699 = vld [vmem:[%s2] sm:$0xff]
        %v2700 = vld [vmem:[%s2 + $0x8] sm:$0xff]
        %v2701 = vld [vmem:[%s2 + $0x10] sm:$0xff]
        %v2702 = vld [vmem:[%s2 + $0x18] sm:$0xff]
        %v2703 = vld [vmem:[%s2 + $0x20] sm:$0xff]
        %v2704 = vld [vmem:[%s2 + $0x28] sm:$0xff]
        %v2705 = vld [vmem:[%s2 + $0x30] sm:$0xff]
        %v2706 = vld [vmem:[%s2 + $0x38] sm:$0xff]
        %v2707 = vld [vmem:[%s2 + $0x40] sm:$0xff]
        %v2708 = vld [vmem:[%s2 + $0x48] sm:$0xff]
        %v2709 = vld [vmem:[%s2 + $0x50] sm:$0xff]
        %v2710 = vld [vmem:[%s2 + $0x58] sm:$0xff]
        %v2711 = vld [vmem:[%s2 + $0x60] sm:$0xff]
        %v2712 = vld [vmem:[%s2 + $0x68] sm:$0xff]
        %v2713 = vld [vmem:[%s2 + $0x70] sm:$0xff]
        %v2714 = vld [vmem:[%s2 + $0x78] sm:$0xff]
        %v2715 = vld [vmem:[%s3] sm:$0xff]
        %v2716 = vld [vmem:[%s3 + $0x8] sm:$0xff]
        %v2717 = vld [vmem:[%s3 + $0x10] sm:$0xff]
        %v2718 = vld [vmem:[%s3 + $0x18] sm:$0xff]
        %v2719 = vld [vmem:[%s3 + $0x20] sm:$0xff]
        %v2720 = vld [vmem:[%s3 + $0x28] sm:$0xff]
        %v2721 = vld [vmem:[%s3 + $0x30] sm:$0xff]
        %v2722 = vld [vmem:[%s3 + $0x38] sm:$0xff]
        %v2723 = vld [vmem:[%s3 + $0x40] sm:$0xff]
        %v2724 = vld [vmem:[%s3 + $0x48] sm:$0xff]
        %v2725 = vld [vmem:[%s3 + $0x50] sm:$0xff]
        %v2726 = vld [vmem:[%s3 + $0x58] sm:$0xff]
        %v2727 = vld [vmem:[%s3 + $0x60] sm:$0xff]
        %v2728 = vld [vmem:[%s3 + $0x68] sm:$0xff]
        %v2729 = vld [vmem:[%s3 + $0x70] sm:$0xff]
        %v2730 = vld [vmem:[%s3 + $0x78] sm:$0xff]
        %v2731 = vld [vmem:[#allocation6] sm:$0xff]
        %v2732 = vld [vmem:[#allocation6 + $0x8] sm:$0xff]
        %v2733 = vld [vmem:[#allocation6 + $0x10] sm:$0xff]
        %v2734 = vld [vmem:[#allocation6 + $0x18] sm:$0xff]
        %v2735 = vld [vmem:[#allocation6 + $0x20] sm:$0xff]
        %v2736 = vld [vmem:[#allocation6 + $0x28] sm:$0xff]
        %v2737 = vld [vmem:[#allocation6 + $0x30] sm:$0xff]
        %v2738 = vld [vmem:[#allocation6 + $0x38] sm:$0xff]
        %v2739 = vld [vmem:[#allocation6 + $0x40] sm:$0xff]
        %v2740 = vld [vmem:[#allocation6 + $0x48] sm:$0xff]
        %v2741 = vld [vmem:[#allocation6 + $0x50] sm:$0xff]
        %v2742 = vld [vmem:[#allocation6 + $0x58] sm:$0xff]
        %v2743 = vld [vmem:[#allocation6 + $0x60] sm:$0xff]
        %v2744 = vld [vmem:[#allocation6 + $0x68] sm:$0xff]
        %v2745 = vld [vmem:[#allocation6 + $0x70] sm:$0xff]
        %v2746 = vld [vmem:[#allocation6 + $0x78] sm:$0xff]
        %v2747 = vld [vmem:[#allocation2] sm:$0xff]
        %v2748 = vld [vmem:[#allocation2 + $0x30] sm:$0xff]
        %v2749 = vld [vmem:[#allocation2 + $0x60] sm:$0xff]
        %v2750 = vld [vmem:[#allocation2 + $0x90] sm:$0xff]
        %v2751 = vld [vmem:[#allocation2 + $0xc0] sm:$0xff]
        %v2752 = vld [vmem:[#allocation2 + $0xf0] sm:$0xff]
        %v2753 = vld [vmem:[#allocation2 + $0x120] sm:$0xff]
        %v2754 = vld [vmem:[#allocation2 + $0x150] sm:$0xff]
        %v2755 = vld [vmem:[#allocation2 + $0x180] sm:$0xff]
        %v2756 = vld [vmem:[#allocation2 + $0x1b0] sm:$0xff]
        %v2757 = vld [vmem:[#allocation2 + $0x1e0] sm:$0xff]
        %v2758 = vld [vmem:[#allocation2 + $0x210] sm:$0xff]
        %v2759 = vld [vmem:[#allocation2 + $0x240] sm:$0xff]
        %v2760 = vld [vmem:[#allocation2 + $0x270] sm:$0xff]
        %v2761 = vld [vmem:[#allocation2 + $0x2a0] sm:$0xff]
        %v2762 = vld [vmem:[#allocation2 + $0x2d0] sm:$0xff]
        %v2763 = vld [vmem:[#allocation2 + $0x10] sm:$0xff]
        %v2764 = vld [vmem:[#allocation2 + $0x40] sm:$0xff]
        %v2765 = vld [vmem:[#allocation2 + $0x70] sm:$0xff]
        %v2766 = vld [vmem:[#allocation2 + $0xa0] sm:$0xff]
        %v2767 = vld [vmem:[#allocation2 + $0xd0] sm:$0xff]
        %v2768 = vld [vmem:[#allocation2 + $0x100] sm:$0xff]
        %v2769 = vld [vmem:[#allocation2 + $0x130] sm:$0xff]
        %v2770 = vld [vmem:[#allocation2 + $0x160] sm:$0xff]
        %v2771 = vld [vmem:[#allocation2 + $0x190] sm:$0xff]
        %v2772 = vld [vmem:[#allocation2 + $0x1c0] sm:$0xff]
        %v2773 = vld [vmem:[#allocation2 + $0x1f0] sm:$0xff]
        %v2774 = vld [vmem:[#allocation2 + $0x220] sm:$0xff]
        %v2775 = vld [vmem:[#allocation2 + $0x250] sm:$0xff]
        %v2776 = vld [vmem:[#allocation2 + $0x280] sm:$0xff]
        %v2777 = vld [vmem:[#allocation2 + $0x2b0] sm:$0xff]
        %v2778 = vld [vmem:[#allocation2 + $0x2e0] sm:$0xff]
        %v2779 = vld [vmem:[#allocation2 + $0x20] sm:$0xff]
        %v2780 = vld [vmem:[#allocation2 + $0x50] sm:$0xff]
        %v2781 = vld [vmem:[#allocation2 + $0x80] sm:$0xff]
        %v2782 = vld [vmem:[#allocation2 + $0xb0] sm:$0xff]
        %v2783 = vld [vmem:[#allocation2 + $0xe0] sm:$0xff]
        %v2784 = vld [vmem:[#allocation2 + $0x110] sm:$0xff]
        %v2785 = vld [vmem:[#allocation2 + $0x140] sm:$0xff]
        %v2786 = vld [vmem:[#allocation2 + $0x170] sm:$0xff]
        %v2787 = vld [vmem:[#allocation2 + $0x1a0] sm:$0xff]
        %v2788 = vld [vmem:[#allocation2 + $0x1d0] sm:$0xff]
        %v2789 = vld [vmem:[#allocation2 + $0x200] sm:$0xff]
        %v2790 = vld [vmem:[#allocation2 + $0x230] sm:$0xff]
        %v2791 = vld [vmem:[#allocation2 + $0x260] sm:$0xff]
        %v2792 = vld [vmem:[#allocation2 + $0x290] sm:$0xff]
        %v2793 = vld [vmem:[#allocation2 + $0x2c0] sm:$0xff]
        %v2794 = vld [vmem:[#allocation2 + $0x2f0] sm:$0xff]
        %v2795 = vmul.f32 %v2747, %v2699
        %v2796 = vmul.f32 %v2748, %v2700
        %v2797 = vmul.f32 %v2749, %v2701
        %v2798 = vmul.f32 %v2750, %v2702
        %v2799 = vmul.f32 %v2751, %v2703
        %v2800 = vmul.f32 %v2752, %v2704
        %v2801 = vmul.f32 %v2753, %v2705
        %v2802 = vmul.f32 %v2754, %v2706
        %v2803 = vmul.f32 %v2755, %v2707
        %v2804 = vmul.f32 %v2756, %v2708
        %v2805 = vmul.f32 %v2757, %v2709
        %v2806 = vmul.f32 %v2758, %v2710
        %v2807 = vmul.f32 %v2759, %v2711
        %v2808 = vmul.f32 %v2760, %v2712
        %v2809 = vmul.f32 %v2761, %v2713
        %v2810 = vmul.f32 %v2762, %v2714
        %2811 = vrot.lane.b32.xlu0 %v2747, 64
        %v2812 = vpop.permute.xlu0 %2811
        %2813 = vrot.lane.b32.xlu0 %v2748, 64
        %v2814 = vpop.permute.xlu0 %2813
        %2815 = vrot.lane.b32.xlu0 %v2749, 64
        %v2816 = vpop.permute.xlu0 %2815
        %2817 = vrot.lane.b32.xlu0 %v2750, 64
        %v2818 = vpop.permute.xlu0 %2817
        %2819 = vrot.lane.b32.xlu0 %v2751, 64
        %v2820 = vpop.permute.xlu0 %2819
        %2821 = vrot.lane.b32.xlu0 %v2752, 64
        %v2822 = vpop.permute.xlu0 %2821
        %2823 = vrot.lane.b32.xlu0 %v2753, 64
        %v2824 = vpop.permute.xlu0 %2823
        %2825 = vrot.lane.b32.xlu0 %v2754, 64
        %v2826 = vpop.permute.xlu0 %2825
        %2827 = vrot.lane.b32.xlu0 %v2755, 64
        %v2828 = vpop.permute.xlu0 %2827
        %2829 = vrot.lane.b32.xlu0 %v2756, 64
        %v2830 = vpop.permute.xlu0 %2829
        %2831 = vrot.lane.b32.xlu0 %v2757, 64
        %v2832 = vpop.permute.xlu0 %2831
        %2833 = vrot.lane.b32.xlu0 %v2758, 64
        %v2834 = vpop.permute.xlu0 %2833
        %2835 = vrot.lane.b32.xlu0 %v2759, 64
        %v2836 = vpop.permute.xlu0 %2835
        %2837 = vrot.lane.b32.xlu0 %v2760, 64
        %v2838 = vpop.permute.xlu0 %2837
        %2839 = vrot.lane.b32.xlu0 %v2761, 64
        %v2840 = vpop.permute.xlu0 %2839
        %2841 = vrot.lane.b32.xlu0 %v2762, 64
        %v2842 = vpop.permute.xlu0 %2841
        %v2843 = vmul.f32 %v2812, %v2715
        %v2844 = vmul.f32 %v2814, %v2716
        %v2845 = vmul.f32 %v2816, %v2717
        %v2846 = vmul.f32 %v2818, %v2718
        %v2847 = vmul.f32 %v2820, %v2719
        %v2848 = vmul.f32 %v2822, %v2720
        %v2849 = vmul.f32 %v2824, %v2721
        %v2850 = vmul.f32 %v2826, %v2722
        %v2851 = vmul.f32 %v2828, %v2723
        %v2852 = vmul.f32 %v2830, %v2724
        %v2853 = vmul.f32 %v2832, %v2725
        %v2854 = vmul.f32 %v2834, %v2726
        %v2855 = vmul.f32 %v2836, %v2727
        %v2856 = vmul.f32 %v2838, %v2728
        %v2857 = vmul.f32 %v2840, %v2729
        %v2858 = vmul.f32 %v2842, %v2730
        %v2859 = vadd.f32 %v2795, %v2843
        %v2860 = vadd.f32 %v2796, %v2844
        %v2861 = vadd.f32 %v2797, %v2845
        %v2862 = vadd.f32 %v2798, %v2846
        %v2863 = vadd.f32 %v2799, %v2847
        %v2864 = vadd.f32 %v2800, %v2848
        %v2865 = vadd.f32 %v2801, %v2849
        %v2866 = vadd.f32 %v2802, %v2850
        %v2867 = vadd.f32 %v2803, %v2851
        %v2868 = vadd.f32 %v2804, %v2852
        %v2869 = vadd.f32 %v2805, %v2853
        %v2870 = vadd.f32 %v2806, %v2854
        %v2871 = vadd.f32 %v2807, %v2855
        %v2872 = vadd.f32 %v2808, %v2856
        %v2873 = vadd.f32 %v2809, %v2857
        %v2874 = vadd.f32 %v2810, %v2858
        %v2875 = vmul.f32 %v2859, 0.088388346
        %v2876 = vmul.f32 %v2860, 0.088388346
        %v2877 = vmul.f32 %v2861, 0.088388346
        %v2878 = vmul.f32 %v2862, 0.088388346
        %v2879 = vmul.f32 %v2863, 0.088388346
        %v2880 = vmul.f32 %v2864, 0.088388346
        %v2881 = vmul.f32 %v2865, 0.088388346
        %v2882 = vmul.f32 %v2866, 0.088388346
        %v2883 = vmul.f32 %v2867, 0.088388346
        %v2884 = vmul.f32 %v2868, 0.088388346
        %v2885 = vmul.f32 %v2869, 0.088388346
        %v2886 = vmul.f32 %v2870, 0.088388346
        %v2887 = vmul.f32 %v2871, 0.088388346
        %v2888 = vmul.f32 %v2872, 0.088388346
        %v2889 = vmul.f32 %v2873, 0.088388346
        %v2890 = vmul.f32 %v2874, 0.088388346
        %v2891 = vpack.c.bf16 %v2876, %v2875
        %v2892 = vpack.c.bf16 %v2878, %v2877
        %v2893 = vpack.c.bf16 %v2880, %v2879
        %v2894 = vpack.c.bf16 %v2882, %v2881
        %v2895 = vpack.c.bf16 %v2884, %v2883
        %v2896 = vpack.c.bf16 %v2886, %v2885
        %v2897 = vpack.c.bf16 %v2888, %v2887
        %v2898 = vpack.c.bf16 %v2890, %v2889
        %v2899 = vmul.f32 %v2763, %v2699
        %v2900 = vmul.f32 %v2764, %v2700
        %v2901 = vmul.f32 %v2765, %v2701
        %v2902 = vmul.f32 %v2766, %v2702
        %v2903 = vmul.f32 %v2767, %v2703
        %v2904 = vmul.f32 %v2768, %v2704
        %v2905 = vmul.f32 %v2769, %v2705
        %v2906 = vmul.f32 %v2770, %v2706
        %v2907 = vmul.f32 %v2771, %v2707
        %v2908 = vmul.f32 %v2772, %v2708
        %v2909 = vmul.f32 %v2773, %v2709
        %v2910 = vmul.f32 %v2774, %v2710
        %v2911 = vmul.f32 %v2775, %v2711
        %v2912 = vmul.f32 %v2776, %v2712
        %v2913 = vmul.f32 %v2777, %v2713
        %v2914 = vmul.f32 %v2778, %v2714
        %2915 = vrot.lane.b32.xlu0 %v2763, 64
        %v2916 = vpop.permute.xlu0 %2915
        %2917 = vrot.lane.b32.xlu0 %v2764, 64
        %v2918 = vpop.permute.xlu0 %2917
        %2919 = vrot.lane.b32.xlu0 %v2765, 64
        %v2920 = vpop.permute.xlu0 %2919
        %2921 = vrot.lane.b32.xlu0 %v2766, 64
        %v2922 = vpop.permute.xlu0 %2921
        %2923 = vrot.lane.b32.xlu0 %v2767, 64
        %v2924 = vpop.permute.xlu0 %2923
        %2925 = vrot.lane.b32.xlu0 %v2768, 64
        %v2926 = vpop.permute.xlu0 %2925
        %2927 = vrot.lane.b32.xlu0 %v2769, 64
        %v2928 = vpop.permute.xlu0 %2927
        %2929 = vrot.lane.b32.xlu0 %v2770, 64
        %v2930 = vpop.permute.xlu0 %2929
        %2931 = vrot.lane.b32.xlu0 %v2771, 64
        %v2932 = vpop.permute.xlu0 %2931
        %2933 = vrot.lane.b32.xlu0 %v2772, 64
        %v2934 = vpop.permute.xlu0 %2933
        %2935 = vrot.lane.b32.xlu0 %v2773, 64
        %v2936 = vpop.permute.xlu0 %2935
        %2937 = vrot.lane.b32.xlu0 %v2774, 64
        %v2938 = vpop.permute.xlu0 %2937
        %2939 = vrot.lane.b32.xlu0 %v2775, 64
        %v2940 = vpop.permute.xlu0 %2939
        %2941 = vrot.lane.b32.xlu0 %v2776, 64
        %v2942 = vpop.permute.xlu0 %2941
        %2943 = vrot.lane.b32.xlu0 %v2777, 64
        %v2944 = vpop.permute.xlu0 %2943
        %2945 = vrot.lane.b32.xlu0 %v2778, 64
        %v2946 = vpop.permute.xlu0 %2945
        %v2947 = vmul.f32 %v2916, %v2715
        %v2948 = vmul.f32 %v2918, %v2716
        %v2949 = vmul.f32 %v2920, %v2717
        %v2950 = vmul.f32 %v2922, %v2718
        %v2951 = vmul.f32 %v2924, %v2719
        %v2952 = vmul.f32 %v2926, %v2720
        %v2953 = vmul.f32 %v2928, %v2721
        %v2954 = vmul.f32 %v2930, %v2722
        %v2955 = vmul.f32 %v2932, %v2723
        %v2956 = vmul.f32 %v2934, %v2724
        %v2957 = vmul.f32 %v2936, %v2725
        %v2958 = vmul.f32 %v2938, %v2726
        %v2959 = vmul.f32 %v2940, %v2727
        %v2960 = vmul.f32 %v2942, %v2728
        %v2961 = vmul.f32 %v2944, %v2729
        %v2962 = vmul.f32 %v2946, %v2730
        %v2963 = vadd.f32 %v2899, %v2947
        %v2964 = vadd.f32 %v2900, %v2948
        %v2965 = vadd.f32 %v2901, %v2949
        %v2966 = vadd.f32 %v2902, %v2950
        %v2967 = vadd.f32 %v2903, %v2951
        %v2968 = vadd.f32 %v2904, %v2952
        %v2969 = vadd.f32 %v2905, %v2953
        %v2970 = vadd.f32 %v2906, %v2954
        %v2971 = vadd.f32 %v2907, %v2955
        %v2972 = vadd.f32 %v2908, %v2956
        %v2973 = vadd.f32 %v2909, %v2957
        %v2974 = vadd.f32 %v2910, %v2958
        %v2975 = vadd.f32 %v2911, %v2959
        %v2976 = vadd.f32 %v2912, %v2960
        %v2977 = vadd.f32 %v2913, %v2961
        %v2978 = vadd.f32 %v2914, %v2962
        %v2979 = vpack.c.bf16 %v2964, %v2963
        %v2980 = vpack.c.bf16 %v2966, %v2965
        %v2981 = vpack.c.bf16 %v2968, %v2967
        %v2982 = vpack.c.bf16 %v2970, %v2969
        %v2983 = vpack.c.bf16 %v2972, %v2971
        %v2984 = vpack.c.bf16 %v2974, %v2973
        %v2985 = vpack.c.bf16 %v2976, %v2975
        %v2986 = vpack.c.bf16 %v2978, %v2977
        %2987 = vmatprep.subr.bf16.mxu0 0
        %2988 = vmatpush1.bf16.xpose.msra.mxu0 %v2986
        %2989 = vmatprep.subr.bf16.mxu0 0
        %2990 = vmatpush1.bf16.xpose.msra.mxu0 %v2985
        %2991 = vmatprep.subr.bf16.mxu0 0
        %2992 = vmatpush1.bf16.xpose.msra.mxu0 %v2984
        %2993 = vmatprep.subr.bf16.mxu0 0
        %2994 = vmatpush1.bf16.xpose.msra.mxu0 %v2983
        %2995 = vmatprep.subr.bf16.mxu0 0
        %2996 = vmatpush1.bf16.xpose.msra.mxu0 %v2982
        %2997 = vmatprep.subr.bf16.mxu0 0
        %2998 = vmatpush1.bf16.xpose.msra.mxu0 %v2981
        %2999 = vmatprep.subr.bf16.mxu0 0
        %3000 = vmatpush1.bf16.xpose.msra.mxu0 %v2980
        %3001 = vmatprep.subr.bf16.mxu0 0
        %3002 = vmatpush1.bf16.xpose.msra.mxu0 %v2979
        %3003 = vmatprep.subr.bf16.mxu0 0
        %3004 = vmatpush2.bf16.xpose.msra.mxu0 0
        %3005 = vmatprep.subr.bf16.mxu0 0
        %3006 = vmatpush2.bf16.xpose.msra.mxu0 0
        %3007 = vmatprep.subr.bf16.mxu0 0
        %3008 = vmatpush2.bf16.xpose.msra.mxu0 0
        %3009 = vmatprep.subr.bf16.mxu0 0
        %3010 = vmatpush2.bf16.xpose.msra.mxu0 0
        %3011 = vmatprep.subr.bf16.mxu0 0
        %3012 = vmatpush2.bf16.xpose.msra.mxu0 0
        %3013 = vmatprep.subr.bf16.mxu0 0
        %3014 = vmatpush2.bf16.xpose.msra.mxu0 0
        %3015 = vmatprep.subr.bf16.mxu0 0
        %3016 = vmatpush2.bf16.xpose.msra.mxu0 0
        %3017 = vmatprep.subr.bf16.mxu0 0
        %3018 = vmatpush2.bf16.xpose.msra.mxu0 0
        %3019 = vmatprep.mubr.bf16.mxu0 0
        %3020 = vmatmul.mubr.bf16.gmra.mxu0 %v2891
        %v3021 = vpop.f32.mrf.mxu0
        %v3022 = vadd.f32 %v2731, %v3021
        %v3023 = vpop.f32.mrf.mxu0
        %v3024 = vpop.f32.mrf.mxu0
        %v3025 = vadd.f32 %v2732, %v3024
        %v3026 = vpop.f32.mrf.mxu0
        %3027 = vmatprep.mubr.bf16.mxu0 0
        %3028 = vmatmul.mubr.bf16.gmra.mxu0 %v2892
        %v3029 = vpop.f32.mrf.mxu0
        %v3030 = vadd.f32 %v2733, %v3029
        %v3031 = vpop.f32.mrf.mxu0
        %v3032 = vpop.f32.mrf.mxu0
        %v3033 = vadd.f32 %v2734, %v3032
        %v3034 = vpop.f32.mrf.mxu0
        %3035 = vmatprep.mubr.bf16.mxu0 0
        %3036 = vmatmul.mubr.bf16.gmra.mxu0 %v2893
        %v3037 = vpop.f32.mrf.mxu0
        %v3038 = vadd.f32 %v2735, %v3037
        %v3039 = vpop.f32.mrf.mxu0
        %v3040 = vpop.f32.mrf.mxu0
        %v3041 = vadd.f32 %v2736, %v3040
        %v3042 = vpop.f32.mrf.mxu0
        %3043 = vmatprep.mubr.bf16.mxu0 0
        %3044 = vmatmul.mubr.bf16.gmra.mxu0 %v2894
        %v3045 = vpop.f32.mrf.mxu0
        %v3046 = vadd.f32 %v2737, %v3045
        %v3047 = vpop.f32.mrf.mxu0
        %v3048 = vpop.f32.mrf.mxu0
        %v3049 = vadd.f32 %v2738, %v3048
        %v3050 = vpop.f32.mrf.mxu0
        %3051 = vmatprep.mubr.bf16.mxu0 0
        %3052 = vmatmul.mubr.bf16.gmra.mxu0 %v2895
        %v3053 = vpop.f32.mrf.mxu0
        %v3054 = vadd.f32 %v2739, %v3053
        %v3055 = vpop.f32.mrf.mxu0
        %v3056 = vpop.f32.mrf.mxu0
        %v3057 = vadd.f32 %v2740, %v3056
        %v3058 = vpop.f32.mrf.mxu0
        %3059 = vmatprep.mubr.bf16.mxu0 0
        %3060 = vmatmul.mubr.bf16.gmra.mxu0 %v2896
        %v3061 = vpop.f32.mrf.mxu0
        %v3062 = vadd.f32 %v2741, %v3061
        %v3063 = vpop.f32.mrf.mxu0
        %v3064 = vpop.f32.mrf.mxu0
        %v3065 = vadd.f32 %v2742, %v3064
        %v3066 = vpop.f32.mrf.mxu0
        %3067 = vmatprep.mubr.bf16.mxu0 0
        %3068 = vmatmul.mubr.bf16.gmra.mxu0 %v2897
        %v3069 = vpop.f32.mrf.mxu0
        %v3070 = vadd.f32 %v2743, %v3069
        %v3071 = vpop.f32.mrf.mxu0
        %v3072 = vpop.f32.mrf.mxu0
        %v3073 = vadd.f32 %v2744, %v3072
        %v3074 = vpop.f32.mrf.mxu0
        %3075 = vmatprep.mubr.bf16.mxu0 0
        %3076 = vmatmul.mubr.bf16.gmra.mxu0 %v2898
        %v3077 = vpop.f32.mrf.mxu0
        %v3078 = vadd.f32 %v2745, %v3077
        %v3079 = vpop.f32.mrf.mxu0
        %v3080 = vpop.f32.mrf.mxu0
        %v3081 = vadd.f32 %v2746, %v3080
        %v3082 = vpop.f32.mrf.mxu0
        %3083 = vdwg.mxu0
        %3084 = vmax.xlane.f32.xlu0 %v3022
        %v3085 = vpop.xlane.xlu0 %3084
        %3086 = vmax.xlane.f32.xlu0 %v3025
        %v3087 = vpop.xlane.xlu0 %3086
        %3088 = vmax.xlane.f32.xlu0 %v3030
        %v3089 = vpop.xlane.xlu0 %3088
        %3090 = vmax.xlane.f32.xlu0 %v3033
        %v3091 = vpop.xlane.xlu0 %3090
        %3092 = vmax.xlane.f32.xlu0 %v3038
        %v3093 = vpop.xlane.xlu0 %3092
        %3094 = vmax.xlane.f32.xlu0 %v3041
        %v3095 = vpop.xlane.xlu0 %3094
        %3096 = vmax.xlane.f32.xlu0 %v3046
        %v3097 = vpop.xlane.xlu0 %3096
        %3098 = vmax.xlane.f32.xlu0 %v3049
        %v3099 = vpop.xlane.xlu0 %3098
        %3100 = vmax.xlane.f32.xlu0 %v3054
        %v3101 = vpop.xlane.xlu0 %3100
        %3102 = vmax.xlane.f32.xlu0 %v3057
        %v3103 = vpop.xlane.xlu0 %3102
        %3104 = vmax.xlane.f32.xlu0 %v3062
        %v3105 = vpop.xlane.xlu0 %3104
        %3106 = vmax.xlane.f32.xlu0 %v3065
        %v3107 = vpop.xlane.xlu0 %3106
        %3108 = vmax.xlane.f32.xlu0 %v3070
        %v3109 = vpop.xlane.xlu0 %3108
        %3110 = vmax.xlane.f32.xlu0 %v3073
        %v3111 = vpop.xlane.xlu0 %3110
        %3112 = vmax.xlane.f32.xlu0 %v3078
        %v3113 = vpop.xlane.xlu0 %3112
        %3114 = vmax.xlane.f32.xlu0 %v3081
        %v3115 = vpop.xlane.xlu0 %3114
        %v3116 = vsub.f32 %v3022, %v3085
        %v3117 = vsub.f32 %v3025, %v3087
        %v3118 = vsub.f32 %v3030, %v3089
        %v3119 = vsub.f32 %v3033, %v3091
        %v3120 = vsub.f32 %v3038, %v3093
        %v3121 = vsub.f32 %v3041, %v3095
        %v3122 = vsub.f32 %v3046, %v3097
        %v3123 = vsub.f32 %v3049, %v3099
        %v3124 = vsub.f32 %v3054, %v3101
        %v3125 = vsub.f32 %v3057, %v3103
        %v3126 = vsub.f32 %v3062, %v3105
        %v3127 = vsub.f32 %v3065, %v3107
        %v3128 = vsub.f32 %v3070, %v3109
        %v3129 = vsub.f32 %v3073, %v3111
        %v3130 = vsub.f32 %v3078, %v3113
        %v3131 = vsub.f32 %v3081, %v3115
        %v3132 = vmul.f32 %v3116, 1.442695
        %v3133 = vpow.pop %v3132
        %v3134 = vmul.f32 %v3117, 1.442695
        %v3135 = vpow.pop %v3134
        %v3136 = vmul.f32 %v3118, 1.442695
        %v3137 = vpow.pop %v3136
        %v3138 = vmul.f32 %v3119, 1.442695
        %v3139 = vpow.pop %v3138
        %v3140 = vmul.f32 %v3120, 1.442695
        %v3141 = vpow.pop %v3140
        %v3142 = vmul.f32 %v3121, 1.442695
        %v3143 = vpow.pop %v3142
        %v3144 = vmul.f32 %v3122, 1.442695
        %v3145 = vpow.pop %v3144
        %v3146 = vmul.f32 %v3123, 1.442695
        %v3147 = vpow.pop %v3146
        %v3148 = vmul.f32 %v3124, 1.442695
        %v3149 = vpow.pop %v3148
        %v3150 = vmul.f32 %v3125, 1.442695
        %v3151 = vpow.pop %v3150
        %v3152 = vmul.f32 %v3126, 1.442695
        %v3153 = vpow.pop %v3152
        %v3154 = vmul.f32 %v3127, 1.442695
        %v3155 = vpow.pop %v3154
        %v3156 = vmul.f32 %v3128, 1.442695
        %v3157 = vpow.pop %v3156
        %v3158 = vmul.f32 %v3129, 1.442695
        %v3159 = vpow.pop %v3158
        %v3160 = vmul.f32 %v3130, 1.442695
        %v3161 = vpow.pop %v3160
        %v3162 = vmul.f32 %v3131, 1.442695
        %v3163 = vpow.pop %v3162
        %3164 = vadd.xlane.f32.xlu0 %v3133
        %v3165 = vpop.xlane.xlu0 %3164
        %3166 = vadd.xlane.f32.xlu0 %v3135
        %v3167 = vpop.xlane.xlu0 %3166
        %3168 = vadd.xlane.f32.xlu0 %v3137
        %v3169 = vpop.xlane.xlu0 %3168
        %3170 = vadd.xlane.f32.xlu0 %v3139
        %v3171 = vpop.xlane.xlu0 %3170
        %3172 = vadd.xlane.f32.xlu0 %v3141
        %v3173 = vpop.xlane.xlu0 %3172
        %3174 = vadd.xlane.f32.xlu0 %v3143
        %v3175 = vpop.xlane.xlu0 %3174
        %3176 = vadd.xlane.f32.xlu0 %v3145
        %v3177 = vpop.xlane.xlu0 %3176
        %3178 = vadd.xlane.f32.xlu0 %v3147
        %v3179 = vpop.xlane.xlu0 %3178
        %3180 = vadd.xlane.f32.xlu0 %v3149
        %v3181 = vpop.xlane.xlu0 %3180
        %3182 = vadd.xlane.f32.xlu0 %v3151
        %v3183 = vpop.xlane.xlu0 %3182
        %3184 = vadd.xlane.f32.xlu0 %v3153
        %v3185 = vpop.xlane.xlu0 %3184
        %3186 = vadd.xlane.f32.xlu0 %v3155
        %v3187 = vpop.xlane.xlu0 %3186
        %3188 = vadd.xlane.f32.xlu0 %v3157
        %v3189 = vpop.xlane.xlu0 %3188
        %3190 = vadd.xlane.f32.xlu0 %v3159
        %v3191 = vpop.xlane.xlu0 %3190
        %3192 = vadd.xlane.f32.xlu0 %v3161
        %v3193 = vpop.xlane.xlu0 %3192
        %3194 = vadd.xlane.f32.xlu0 %v3163
        %v3195 = vpop.xlane.xlu0 %3194
        %v3196 = vpack.c.bf16 %v3135, %v3133
        %v3197 = vpack.c.bf16 %v3139, %v3137
        %v3198 = vpack.c.bf16 %v3143, %v3141
        %v3199 = vpack.c.bf16 %v3147, %v3145
        %v3200 = vpack.c.bf16 %v3151, %v3149
        %v3201 = vpack.c.bf16 %v3155, %v3153
        %v3202 = vpack.c.bf16 %v3159, %v3157
        %v3203 = vpack.c.bf16 %v3163, %v3161
        %v3204 = vpack.c.bf16 %v2780, %v2779
        %v3205 = vpack.c.bf16 %v2782, %v2781
        %v3206 = vpack.c.bf16 %v2784, %v2783
        %v3207 = vpack.c.bf16 %v2786, %v2785
        %v3208 = vpack.c.bf16 %v2788, %v2787
        %v3209 = vpack.c.bf16 %v2790, %v2789
        %v3210 = vpack.c.bf16 %v2792, %v2791
        %v3211 = vpack.c.bf16 %v2794, %v2793
        %3212 = vmatprep.subr.bf16.mxu0 0
        %3213 = vmatpush1.bf16.msra.mxu0 %v3211
        %3214 = vmatprep.subr.bf16.mxu0 0
        %3215 = vmatpush1.bf16.msra.mxu0 %v3210
        %3216 = vmatprep.subr.bf16.mxu0 0
        %3217 = vmatpush1.bf16.msra.mxu0 %v3209
        %3218 = vmatprep.subr.bf16.mxu0 0
        %3219 = vmatpush1.bf16.msra.mxu0 %v3208
        %3220 = vmatprep.subr.bf16.mxu0 0
        %3221 = vmatpush1.bf16.msra.mxu0 %v3207
        %3222 = vmatprep.subr.bf16.mxu0 0
        %3223 = vmatpush1.bf16.msra.mxu0 %v3206
        %3224 = vmatprep.subr.bf16.mxu0 0
        %3225 = vmatpush1.bf16.msra.mxu0 %v3205
        %3226 = vmatprep.subr.bf16.mxu0 0
        %3227 = vmatpush1.bf16.msra.mxu0 %v3204
        %3228 = vmatprep.subr.bf16.mxu0 0
        %3229 = vmatpush2.bf16.msra.mxu0 0
        %3230 = vmatprep.subr.bf16.mxu0 0
        %3231 = vmatpush2.bf16.msra.mxu0 0
        %3232 = vmatprep.subr.bf16.mxu0 0
        %3233 = vmatpush2.bf16.msra.mxu0 0
        %3234 = vmatprep.subr.bf16.mxu0 0
        %3235 = vmatpush2.bf16.msra.mxu0 0
        %3236 = vmatprep.subr.bf16.mxu0 0
        %3237 = vmatpush2.bf16.msra.mxu0 0
        %3238 = vmatprep.subr.bf16.mxu0 0
        %3239 = vmatpush2.bf16.msra.mxu0 0
        %3240 = vmatprep.subr.bf16.mxu0 0
        %3241 = vmatpush2.bf16.msra.mxu0 0
        %3242 = vmatprep.subr.bf16.mxu0 0
        %3243 = vmatpush2.bf16.msra.mxu0 0
        %3244 = vmatprep.mubr.bf16.mxu0 0
        %3245 = vmatmul.mubr.bf16.gmra.mxu0 %v3196
        %v3246 = vpop.f32.mrf.mxu0
        %v3247 = vadd.f32 0.0, %v3246
        %v3248 = vpop.f32.mrf.mxu0
        %v3249 = vpop.f32.mrf.mxu0
        %v3250 = vadd.f32 0.0, %v3249
        %v3251 = vpop.f32.mrf.mxu0
        %3252 = vmatprep.mubr.bf16.mxu0 0
        %3253 = vmatmul.mubr.bf16.gmra.mxu0 %v3197
        %v3254 = vpop.f32.mrf.mxu0
        %v3255 = vadd.f32 0.0, %v3254
        %v3256 = vpop.f32.mrf.mxu0
        %v3257 = vpop.f32.mrf.mxu0
        %v3258 = vadd.f32 0.0, %v3257
        %v3259 = vpop.f32.mrf.mxu0
        %3260 = vmatprep.mubr.bf16.mxu0 0
        %3261 = vmatmul.mubr.bf16.gmra.mxu0 %v3198
        %v3262 = vpop.f32.mrf.mxu0
        %v3263 = vadd.f32 0.0, %v3262
        %v3264 = vpop.f32.mrf.mxu0
        %v3265 = vpop.f32.mrf.mxu0
        %v3266 = vadd.f32 0.0, %v3265
        %v3267 = vpop.f32.mrf.mxu0
        %3268 = vmatprep.mubr.bf16.mxu0 0
        %3269 = vmatmul.mubr.bf16.gmra.mxu0 %v3199
        %v3270 = vpop.f32.mrf.mxu0
        %v3271 = vadd.f32 0.0, %v3270
        %v3272 = vpop.f32.mrf.mxu0
        %v3273 = vpop.f32.mrf.mxu0
        %v3274 = vadd.f32 0.0, %v3273
        %v3275 = vpop.f32.mrf.mxu0
        %3276 = vmatprep.mubr.bf16.mxu0 0
        %3277 = vmatmul.mubr.bf16.gmra.mxu0 %v3200
        %v3278 = vpop.f32.mrf.mxu0
        %v3279 = vadd.f32 0.0, %v3278
        %v3280 = vpop.f32.mrf.mxu0
        %v3281 = vpop.f32.mrf.mxu0
        %v3282 = vadd.f32 0.0, %v3281
        %v3283 = vpop.f32.mrf.mxu0
        %3284 = vmatprep.mubr.bf16.mxu0 0
        %3285 = vmatmul.mubr.bf16.gmra.mxu0 %v3201
        %v3286 = vpop.f32.mrf.mxu0
        %v3287 = vadd.f32 0.0, %v3286
        %v3288 = vpop.f32.mrf.mxu0
        %v3289 = vpop.f32.mrf.mxu0
        %v3290 = vadd.f32 0.0, %v3289
        %v3291 = vpop.f32.mrf.mxu0
        %3292 = vmatprep.mubr.bf16.mxu0 0
        %3293 = vmatmul.mubr.bf16.gmra.mxu0 %v3202
        %v3294 = vpop.f32.mrf.mxu0
        %v3295 = vadd.f32 0.0, %v3294
        %v3296 = vpop.f32.mrf.mxu0
        %v3297 = vpop.f32.mrf.mxu0
        %v3298 = vadd.f32 0.0, %v3297
        %v3299 = vpop.f32.mrf.mxu0
        %3300 = vmatprep.mubr.bf16.mxu0 0
        %3301 = vmatmul.mubr.bf16.gmra.mxu0 %v3203
        %v3302 = vpop.f32.mrf.mxu0
        %v3303 = vadd.f32 0.0, %v3302
        %v3304 = vpop.f32.mrf.mxu0
        %v3305 = vpop.f32.mrf.mxu0
        %v3306 = vadd.f32 0.0, %v3305
        %v3307 = vpop.f32.mrf.mxu0
        %3308 = vdwg.mxu0
        %v3309 = vrcp.pop %v3165
        %v3310 = vrcp.pop %v3167
        %v3311 = vrcp.pop %v3169
        %v3312 = vrcp.pop %v3171
        %v3313 = vrcp.pop %v3173
        %v3314 = vrcp.pop %v3175
        %v3315 = vrcp.pop %v3177
        %v3316 = vrcp.pop %v3179
        %v3317 = vrcp.pop %v3181
        %v3318 = vrcp.pop %v3183
        %v3319 = vrcp.pop %v3185
        %v3320 = vrcp.pop %v3187
        %v3321 = vrcp.pop %v3189
        %v3322 = vrcp.pop %v3191
        %v3323 = vrcp.pop %v3193
        %v3324 = vrcp.pop %v3195
        %v3325 = vmul.f32 %v3247, %v3309
        %v3326 = vmul.f32 %v3250, %v3310
        %v3327 = vmul.f32 %v3255, %v3311
        %v3328 = vmul.f32 %v3258, %v3312
        %v3329 = vmul.f32 %v3263, %v3313
        %v3330 = vmul.f32 %v3266, %v3314
        %v3331 = vmul.f32 %v3271, %v3315
        %v3332 = vmul.f32 %v3274, %v3316
        %v3333 = vmul.f32 %v3279, %v3317
        %v3334 = vmul.f32 %v3282, %v3318
        %v3335 = vmul.f32 %v3287, %v3319
        %v3336 = vmul.f32 %v3290, %v3320
        %v3337 = vmul.f32 %v3295, %v3321
        %v3338 = vmul.f32 %v3298, %v3322
        %v3339 = vmul.f32 %v3303, %v3323
        %v3340 = vmul.f32 %v3306, %v3324
        %v3341 = vpack.c.bf16 %v3326, %v3325
        %v3342 = vpack.c.bf16 %v3328, %v3327
        %v3343 = vpack.c.bf16 %v3330, %v3329
        %v3344 = vpack.c.bf16 %v3332, %v3331
        %v3345 = vpack.c.bf16 %v3334, %v3333
        %v3346 = vpack.c.bf16 %v3336, %v3335
        %v3347 = vpack.c.bf16 %v3338, %v3337
        %v3348 = vpack.c.bf16 %v3340, %v3339
        %v3349 = vld [vmem:[#allocation2 + $0x8] sm:$0xff]
        %v3350 = vld [vmem:[#allocation2 + $0x38] sm:$0xff]
        %v3351 = vld [vmem:[#allocation2 + $0x68] sm:$0xff]
        %v3352 = vld [vmem:[#allocation2 + $0x98] sm:$0xff]
        %v3353 = vld [vmem:[#allocation2 + $0xc8] sm:$0xff]
        %v3354 = vld [vmem:[#allocation2 + $0xf8] sm:$0xff]
        %v3355 = vld [vmem:[#allocation2 + $0x128] sm:$0xff]
        %v3356 = vld [vmem:[#allocation2 + $0x158] sm:$0xff]
        %v3357 = vld [vmem:[#allocation2 + $0x188] sm:$0xff]
        %v3358 = vld [vmem:[#allocation2 + $0x1b8] sm:$0xff]
        %v3359 = vld [vmem:[#allocation2 + $0x1e8] sm:$0xff]
        %v3360 = vld [vmem:[#allocation2 + $0x218] sm:$0xff]
        %v3361 = vld [vmem:[#allocation2 + $0x248] sm:$0xff]
        %v3362 = vld [vmem:[#allocation2 + $0x278] sm:$0xff]
        %v3363 = vld [vmem:[#allocation2 + $0x2a8] sm:$0xff]
        %v3364 = vld [vmem:[#allocation2 + $0x2d8] sm:$0xff]
        %v3365 = vld [vmem:[#allocation2 + $0x18] sm:$0xff]
        %v3366 = vld [vmem:[#allocation2 + $0x48] sm:$0xff]
        %v3367 = vld [vmem:[#allocation2 + $0x78] sm:$0xff]
        %v3368 = vld [vmem:[#allocation2 + $0xa8] sm:$0xff]
        %v3369 = vld [vmem:[#allocation2 + $0xd8] sm:$0xff]
        %v3370 = vld [vmem:[#allocation2 + $0x108] sm:$0xff]
        %v3371 = vld [vmem:[#allocation2 + $0x138] sm:$0xff]
        %v3372 = vld [vmem:[#allocation2 + $0x168] sm:$0xff]
        %v3373 = vld [vmem:[#allocation2 + $0x198] sm:$0xff]
        %v3374 = vld [vmem:[#allocation2 + $0x1c8] sm:$0xff]
        %v3375 = vld [vmem:[#allocation2 + $0x1f8] sm:$0xff]
        %v3376 = vld [vmem:[#allocation2 + $0x228] sm:$0xff]
        %v3377 = vld [vmem:[#allocation2 + $0x258] sm:$0xff]
        %v3378 = vld [vmem:[#allocation2 + $0x288] sm:$0xff]
        %v3379 = vld [vmem:[#allocation2 + $0x2b8] sm:$0xff]
        %v3380 = vld [vmem:[#allocation2 + $0x2e8] sm:$0xff]
        %v3381 = vld [vmem:[#allocation2 + $0x28] sm:$0xff]
        %v3382 = vld [vmem:[#allocation2 + $0x58] sm:$0xff]
        %v3383 = vld [vmem:[#allocation2 + $0x88] sm:$0xff]
        %v3384 = vld [vmem:[#allocation2 + $0xb8] sm:$0xff]
        %v3385 = vld [vmem:[#allocation2 + $0xe8] sm:$0xff]
        %v3386 = vld [vmem:[#allocation2 + $0x118] sm:$0xff]
        %v3387 = vld [vmem:[#allocation2 + $0x148] sm:$0xff]
        %v3388 = vld [vmem:[#allocation2 + $0x178] sm:$0xff]
        %v3389 = vld [vmem:[#allocation2 + $0x1a8] sm:$0xff]
        %v3390 = vld [vmem:[#allocation2 + $0x1d8] sm:$0xff]
        %v3391 = vld [vmem:[#allocation2 + $0x208] sm:$0xff]
        %v3392 = vld [vmem:[#allocation2 + $0x238] sm:$0xff]
        %v3393 = vld [vmem:[#allocation2 + $0x268] sm:$0xff]
        %v3394 = vld [vmem:[#allocation2 + $0x298] sm:$0xff]
        %v3395 = vld [vmem:[#allocation2 + $0x2c8] sm:$0xff]
        %v3396 = vld [vmem:[#allocation2 + $0x2f8] sm:$0xff]
        %v3397 = vmul.f32 %v3349, %v2699
        %v3398 = vmul.f32 %v3350, %v2700
        %v3399 = vmul.f32 %v3351, %v2701
        %v3400 = vmul.f32 %v3352, %v2702
        %v3401 = vmul.f32 %v3353, %v2703
        %v3402 = vmul.f32 %v3354, %v2704
        %v3403 = vmul.f32 %v3355, %v2705
        %v3404 = vmul.f32 %v3356, %v2706
        %v3405 = vmul.f32 %v3357, %v2707
        %v3406 = vmul.f32 %v3358, %v2708
        %v3407 = vmul.f32 %v3359, %v2709
        %v3408 = vmul.f32 %v3360, %v2710
        %v3409 = vmul.f32 %v3361, %v2711
        %v3410 = vmul.f32 %v3362, %v2712
        %v3411 = vmul.f32 %v3363, %v2713
        %v3412 = vmul.f32 %v3364, %v2714
        %3413 = vrot.lane.b32.xlu0 %v3349, 64
        %v3414 = vpop.permute.xlu0 %3413
        %3415 = vrot.lane.b32.xlu0 %v3350, 64
        %v3416 = vpop.permute.xlu0 %3415
        %3417 = vrot.lane.b32.xlu0 %v3351, 64
        %v3418 = vpop.permute.xlu0 %3417
        %3419 = vrot.lane.b32.xlu0 %v3352, 64
        %v3420 = vpop.permute.xlu0 %3419
        %3421 = vrot.lane.b32.xlu0 %v3353, 64
        %v3422 = vpop.permute.xlu0 %3421
        %3423 = vrot.lane.b32.xlu0 %v3354, 64
        %v3424 = vpop.permute.xlu0 %3423
        %3425 = vrot.lane.b32.xlu0 %v3355, 64
        %v3426 = vpop.permute.xlu0 %3425
        %3427 = vrot.lane.b32.xlu0 %v3356, 64
        %v3428 = vpop.permute.xlu0 %3427
        %3429 = vrot.lane.b32.xlu0 %v3357, 64
        %v3430 = vpop.permute.xlu0 %3429
        %3431 = vrot.lane.b32.xlu0 %v3358, 64
        %v3432 = vpop.permute.xlu0 %3431
        %3433 = vrot.lane.b32.xlu0 %v3359, 64
        %v3434 = vpop.permute.xlu0 %3433
        %3435 = vrot.lane.b32.xlu0 %v3360, 64
        %v3436 = vpop.permute.xlu0 %3435
        %3437 = vrot.lane.b32.xlu0 %v3361, 64
        %v3438 = vpop.permute.xlu0 %3437
        %3439 = vrot.lane.b32.xlu0 %v3362, 64
        %v3440 = vpop.permute.xlu0 %3439
        %3441 = vrot.lane.b32.xlu0 %v3363, 64
        %v3442 = vpop.permute.xlu0 %3441
        %3443 = vrot.lane.b32.xlu0 %v3364, 64
        %v3444 = vpop.permute.xlu0 %3443
        %v3445 = vmul.f32 %v3414, %v2715
        %v3446 = vmul.f32 %v3416, %v2716
        %v3447 = vmul.f32 %v3418, %v2717
        %v3448 = vmul.f32 %v3420, %v2718
        %v3449 = vmul.f32 %v3422, %v2719
        %v3450 = vmul.f32 %v3424, %v2720
        %v3451 = vmul.f32 %v3426, %v2721
        %v3452 = vmul.f32 %v3428, %v2722
        %v3453 = vmul.f32 %v3430, %v2723
        %v3454 = vmul.f32 %v3432, %v2724
        %v3455 = vmul.f32 %v3434, %v2725
        %v3456 = vmul.f32 %v3436, %v2726
        %v3457 = vmul.f32 %v3438, %v2727
        %v3458 = vmul.f32 %v3440, %v2728
        %v3459 = vmul.f32 %v3442, %v2729
        %v3460 = vmul.f32 %v3444, %v2730
        %v3461 = vadd.f32 %v3397, %v3445
        %v3462 = vadd.f32 %v3398, %v3446
        %v3463 = vadd.f32 %v3399, %v3447
        %v3464 = vadd.f32 %v3400, %v3448
        %v3465 = vadd.f32 %v3401, %v3449
        %v3466 = vadd.f32 %v3402, %v3450
        %v3467 = vadd.f32 %v3403, %v3451
        %v3468 = vadd.f32 %v3404, %v3452
        %v3469 = vadd.f32 %v3405, %v3453
        %v3470 = vadd.f32 %v3406, %v3454
        %v3471 = vadd.f32 %v3407, %v3455
        %v3472 = vadd.f32 %v3408, %v3456
        %v3473 = vadd.f32 %v3409, %v3457
        %v3474 = vadd.f32 %v3410, %v3458
        %v3475 = vadd.f32 %v3411, %v3459
        %v3476 = vadd.f32 %v3412, %v3460
        %v3477 = vmul.f32 %v3461, 0.088388346
        %v3478 = vmul.f32 %v3462, 0.088388346
        %v3479 = vmul.f32 %v3463, 0.088388346
        %v3480 = vmul.f32 %v3464, 0.088388346
        %v3481 = vmul.f32 %v3465, 0.088388346
        %v3482 = vmul.f32 %v3466, 0.088388346
        %v3483 = vmul.f32 %v3467, 0.088388346
        %v3484 = vmul.f32 %v3468, 0.088388346
        %v3485 = vmul.f32 %v3469, 0.088388346
        %v3486 = vmul.f32 %v3470, 0.088388346
        %v3487 = vmul.f32 %v3471, 0.088388346
        %v3488 = vmul.f32 %v3472, 0.088388346
        %v3489 = vmul.f32 %v3473, 0.088388346
        %v3490 = vmul.f32 %v3474, 0.088388346
        %v3491 = vmul.f32 %v3475, 0.088388346
        %v3492 = vmul.f32 %v3476, 0.088388346
        %v3493 = vpack.c.bf16 %v3478, %v3477
        %v3494 = vpack.c.bf16 %v3480, %v3479
        %v3495 = vpack.c.bf16 %v3482, %v3481
        %v3496 = vpack.c.bf16 %v3484, %v3483
        %v3497 = vpack.c.bf16 %v3486, %v3485
        %v3498 = vpack.c.bf16 %v3488, %v3487
        %v3499 = vpack.c.bf16 %v3490, %v3489
        %v3500 = vpack.c.bf16 %v3492, %v3491
        %v3501 = vmul.f32 %v3365, %v2699
        %v3502 = vmul.f32 %v3366, %v2700
        %v3503 = vmul.f32 %v3367, %v2701
        %v3504 = vmul.f32 %v3368, %v2702
        %v3505 = vmul.f32 %v3369, %v2703
        %v3506 = vmul.f32 %v3370, %v2704
        %v3507 = vmul.f32 %v3371, %v2705
        %v3508 = vmul.f32 %v3372, %v2706
        %v3509 = vmul.f32 %v3373, %v2707
        %v3510 = vmul.f32 %v3374, %v2708
        %v3511 = vmul.f32 %v3375, %v2709
        %v3512 = vmul.f32 %v3376, %v2710
        %v3513 = vmul.f32 %v3377, %v2711
        %v3514 = vmul.f32 %v3378, %v2712
        %v3515 = vmul.f32 %v3379, %v2713
        %v3516 = vmul.f32 %v3380, %v2714
        %3517 = vrot.lane.b32.xlu0 %v3365, 64
        %v3518 = vpop.permute.xlu0 %3517
        %3519 = vrot.lane.b32.xlu0 %v3366, 64
        %v3520 = vpop.permute.xlu0 %3519
        %3521 = vrot.lane.b32.xlu0 %v3367, 64
        %v3522 = vpop.permute.xlu0 %3521
        %3523 = vrot.lane.b32.xlu0 %v3368, 64
        %v3524 = vpop.permute.xlu0 %3523
        %3525 = vrot.lane.b32.xlu0 %v3369, 64
        %v3526 = vpop.permute.xlu0 %3525
        %3527 = vrot.lane.b32.xlu0 %v3370, 64
        %v3528 = vpop.permute.xlu0 %3527
        %3529 = vrot.lane.b32.xlu0 %v3371, 64
        %v3530 = vpop.permute.xlu0 %3529
        %3531 = vrot.lane.b32.xlu0 %v3372, 64
        %v3532 = vpop.permute.xlu0 %3531
        %3533 = vrot.lane.b32.xlu0 %v3373, 64
        %v3534 = vpop.permute.xlu0 %3533
        %3535 = vrot.lane.b32.xlu0 %v3374, 64
        %v3536 = vpop.permute.xlu0 %3535
        %3537 = vrot.lane.b32.xlu0 %v3375, 64
        %v3538 = vpop.permute.xlu0 %3537
        %3539 = vrot.lane.b32.xlu0 %v3376, 64
        %v3540 = vpop.permute.xlu0 %3539
        %3541 = vrot.lane.b32.xlu0 %v3377, 64
        %v3542 = vpop.permute.xlu0 %3541
        %3543 = vrot.lane.b32.xlu0 %v3378, 64
        %v3544 = vpop.permute.xlu0 %3543
        %3545 = vrot.lane.b32.xlu0 %v3379, 64
        %v3546 = vpop.permute.xlu0 %3545
        %3547 = vrot.lane.b32.xlu0 %v3380, 64
        %v3548 = vpop.permute.xlu0 %3547
        %v3549 = vmul.f32 %v3518, %v2715
        %v3550 = vmul.f32 %v3520, %v2716
        %v3551 = vmul.f32 %v3522, %v2717
        %v3552 = vmul.f32 %v3524, %v2718
        %v3553 = vmul.f32 %v3526, %v2719
        %v3554 = vmul.f32 %v3528, %v2720
        %v3555 = vmul.f32 %v3530, %v2721
        %v3556 = vmul.f32 %v3532, %v2722
        %v3557 = vmul.f32 %v3534, %v2723
        %v3558 = vmul.f32 %v3536, %v2724
        %v3559 = vmul.f32 %v3538, %v2725
        %v3560 = vmul.f32 %v3540, %v2726
        %v3561 = vmul.f32 %v3542, %v2727
        %v3562 = vmul.f32 %v3544, %v2728
        %v3563 = vmul.f32 %v3546, %v2729
        %v3564 = vmul.f32 %v3548, %v2730
        %v3565 = vadd.f32 %v3501, %v3549
        %v3566 = vadd.f32 %v3502, %v3550
        %v3567 = vadd.f32 %v3503, %v3551
        %v3568 = vadd.f32 %v3504, %v3552
        %v3569 = vadd.f32 %v3505, %v3553
        %v3570 = vadd.f32 %v3506, %v3554
        %v3571 = vadd.f32 %v3507, %v3555
        %v3572 = vadd.f32 %v3508, %v3556
        %v3573 = vadd.f32 %v3509, %v3557
        %v3574 = vadd.f32 %v3510, %v3558
        %v3575 = vadd.f32 %v3511, %v3559
        %v3576 = vadd.f32 %v3512, %v3560
        %v3577 = vadd.f32 %v3513, %v3561
        %v3578 = vadd.f32 %v3514, %v3562
        %v3579 = vadd.f32 %v3515, %v3563
        %v3580 = vadd.f32 %v3516, %v3564
        %v3581 = vpack.c.bf16 %v3566, %v3565
        %v3582 = vpack.c.bf16 %v3568, %v3567
        %v3583 = vpack.c.bf16 %v3570, %v3569
        %v3584 = vpack.c.bf16 %v3572, %v3571
        %v3585 = vpack.c.bf16 %v3574, %v3573
        %v3586 = vpack.c.bf16 %v3576, %v3575
        %v3587 = vpack.c.bf16 %v3578, %v3577
        %v3588 = vpack.c.bf16 %v3580, %v3579
        %3589 = vmatprep.subr.bf16.mxu0 0
        %3590 = vmatpush1.bf16.xpose.msra.mxu0 %v3588
        %3591 = vmatprep.subr.bf16.mxu0 0
        %3592 = vmatpush1.bf16.xpose.msra.mxu0 %v3587
        %3593 = vmatprep.subr.bf16.mxu0 0
        %3594 = vmatpush1.bf16.xpose.msra.mxu0 %v3586
        %3595 = vmatprep.subr.bf16.mxu0 0
        %3596 = vmatpush1.bf16.xpose.msra.mxu0 %v3585
        %3597 = vmatprep.subr.bf16.mxu0 0
        %3598 = vmatpush1.bf16.xpose.msra.mxu0 %v3584
        %3599 = vmatprep.subr.bf16.mxu0 0
        %3600 = vmatpush1.bf16.xpose.msra.mxu0 %v3583
        %3601 = vmatprep.subr.bf16.mxu0 0
        %3602 = vmatpush1.bf16.xpose.msra.mxu0 %v3582
        %3603 = vmatprep.subr.bf16.mxu0 0
        %3604 = vmatpush1.bf16.xpose.msra.mxu0 %v3581
        %3605 = vmatprep.subr.bf16.mxu0 0
        %3606 = vmatpush2.bf16.xpose.msra.mxu0 0
        %3607 = vmatprep.subr.bf16.mxu0 0
        %3608 = vmatpush2.bf16.xpose.msra.mxu0 0
        %3609 = vmatprep.subr.bf16.mxu0 0
        %3610 = vmatpush2.bf16.xpose.msra.mxu0 0
        %3611 = vmatprep.subr.bf16.mxu0 0
        %3612 = vmatpush2.bf16.xpose.msra.mxu0 0
        %3613 = vmatprep.subr.bf16.mxu0 0
        %3614 = vmatpush2.bf16.xpose.msra.mxu0 0
        %3615 = vmatprep.subr.bf16.mxu0 0
        %3616 = vmatpush2.bf16.xpose.msra.mxu0 0
        %3617 = vmatprep.subr.bf16.mxu0 0
        %3618 = vmatpush2.bf16.xpose.msra.mxu0 0
        %3619 = vmatprep.subr.bf16.mxu0 0
        %3620 = vmatpush2.bf16.xpose.msra.mxu0 0
        %3621 = vmatprep.mubr.bf16.mxu0 0
        %3622 = vmatmul.mubr.bf16.gmra.mxu0 %v3493
        %v3623 = vpop.f32.mrf.mxu0
        %v3624 = vadd.f32 %v2731, %v3623
        %v3625 = vpop.f32.mrf.mxu0
        %v3626 = vpop.f32.mrf.mxu0
        %v3627 = vadd.f32 %v2732, %v3626
        %v3628 = vpop.f32.mrf.mxu0
        %3629 = vmatprep.mubr.bf16.mxu0 0
        %3630 = vmatmul.mubr.bf16.gmra.mxu0 %v3494
        %v3631 = vpop.f32.mrf.mxu0
        %v3632 = vadd.f32 %v2733, %v3631
        %v3633 = vpop.f32.mrf.mxu0
        %v3634 = vpop.f32.mrf.mxu0
        %v3635 = vadd.f32 %v2734, %v3634
        %v3636 = vpop.f32.mrf.mxu0
        %3637 = vmatprep.mubr.bf16.mxu0 0
        %3638 = vmatmul.mubr.bf16.gmra.mxu0 %v3495
        %v3639 = vpop.f32.mrf.mxu0
        %v3640 = vadd.f32 %v2735, %v3639
        %v3641 = vpop.f32.mrf.mxu0
        %v3642 = vpop.f32.mrf.mxu0
        %v3643 = vadd.f32 %v2736, %v3642
        %v3644 = vpop.f32.mrf.mxu0
        %3645 = vmatprep.mubr.bf16.mxu0 0
        %3646 = vmatmul.mubr.bf16.gmra.mxu0 %v3496
        %v3647 = vpop.f32.mrf.mxu0
        %v3648 = vadd.f32 %v2737, %v3647
        %v3649 = vpop.f32.mrf.mxu0
        %v3650 = vpop.f32.mrf.mxu0
        %v3651 = vadd.f32 %v2738, %v3650
        %v3652 = vpop.f32.mrf.mxu0
        %3653 = vmatprep.mubr.bf16.mxu0 0
        %3654 = vmatmul.mubr.bf16.gmra.mxu0 %v3497
        %v3655 = vpop.f32.mrf.mxu0
        %v3656 = vadd.f32 %v2739, %v3655
        %v3657 = vpop.f32.mrf.mxu0
        %v3658 = vpop.f32.mrf.mxu0
        %v3659 = vadd.f32 %v2740, %v3658
        %v3660 = vpop.f32.mrf.mxu0
        %3661 = vmatprep.mubr.bf16.mxu0 0
        %3662 = vmatmul.mubr.bf16.gmra.mxu0 %v3498
        %v3663 = vpop.f32.mrf.mxu0
        %v3664 = vadd.f32 %v2741, %v3663
        %v3665 = vpop.f32.mrf.mxu0
        %v3666 = vpop.f32.mrf.mxu0
        %v3667 = vadd.f32 %v2742, %v3666
        %v3668 = vpop.f32.mrf.mxu0
        %3669 = vmatprep.mubr.bf16.mxu0 0
        %3670 = vmatmul.mubr.bf16.gmra.mxu0 %v3499
        %v3671 = vpop.f32.mrf.mxu0
        %v3672 = vadd.f32 %v2743, %v3671
        %v3673 = vpop.f32.mrf.mxu0
        %v3674 = vpop.f32.mrf.mxu0
        %v3675 = vadd.f32 %v2744, %v3674
        %v3676 = vpop.f32.mrf.mxu0
        %3677 = vmatprep.mubr.bf16.mxu0 0
        %3678 = vmatmul.mubr.bf16.gmra.mxu0 %v3500
        %v3679 = vpop.f32.mrf.mxu0
        %v3680 = vadd.f32 %v2745, %v3679
        %v3681 = vpop.f32.mrf.mxu0
        %v3682 = vpop.f32.mrf.mxu0
        %v3683 = vadd.f32 %v2746, %v3682
        %v3684 = vpop.f32.mrf.mxu0
        %3685 = vdwg.mxu0
        %3686 = vmax.xlane.f32.xlu0 %v3624
        %v3687 = vpop.xlane.xlu0 %3686
        %3688 = vmax.xlane.f32.xlu0 %v3627
        %v3689 = vpop.xlane.xlu0 %3688
        %3690 = vmax.xlane.f32.xlu0 %v3632
        %v3691 = vpop.xlane.xlu0 %3690
        %3692 = vmax.xlane.f32.xlu0 %v3635
        %v3693 = vpop.xlane.xlu0 %3692
        %3694 = vmax.xlane.f32.xlu0 %v3640
        %v3695 = vpop.xlane.xlu0 %3694
        %3696 = vmax.xlane.f32.xlu0 %v3643
        %v3697 = vpop.xlane.xlu0 %3696
        %3698 = vmax.xlane.f32.xlu0 %v3648
        %v3699 = vpop.xlane.xlu0 %3698
        %3700 = vmax.xlane.f32.xlu0 %v3651
        %v3701 = vpop.xlane.xlu0 %3700
        %3702 = vmax.xlane.f32.xlu0 %v3656
        %v3703 = vpop.xlane.xlu0 %3702
        %3704 = vmax.xlane.f32.xlu0 %v3659
        %v3705 = vpop.xlane.xlu0 %3704
        %3706 = vmax.xlane.f32.xlu0 %v3664
        %v3707 = vpop.xlane.xlu0 %3706
        %3708 = vmax.xlane.f32.xlu0 %v3667
        %v3709 = vpop.xlane.xlu0 %3708
        %3710 = vmax.xlane.f32.xlu0 %v3672
        %v3711 = vpop.xlane.xlu0 %3710
        %3712 = vmax.xlane.f32.xlu0 %v3675
        %v3713 = vpop.xlane.xlu0 %3712
        %3714 = vmax.xlane.f32.xlu0 %v3680
        %v3715 = vpop.xlane.xlu0 %3714
        %3716 = vmax.xlane.f32.xlu0 %v3683
        %v3717 = vpop.xlane.xlu0 %3716
        %v3718 = vsub.f32 %v3624, %v3687
        %v3719 = vsub.f32 %v3627, %v3689
        %v3720 = vsub.f32 %v3632, %v3691
        %v3721 = vsub.f32 %v3635, %v3693
        %v3722 = vsub.f32 %v3640, %v3695
        %v3723 = vsub.f32 %v3643, %v3697
        %v3724 = vsub.f32 %v3648, %v3699
        %v3725 = vsub.f32 %v3651, %v3701
        %v3726 = vsub.f32 %v3656, %v3703
        %v3727 = vsub.f32 %v3659, %v3705
        %v3728 = vsub.f32 %v3664, %v3707
        %v3729 = vsub.f32 %v3667, %v3709
        %v3730 = vsub.f32 %v3672, %v3711
        %v3731 = vsub.f32 %v3675, %v3713
        %v3732 = vsub.f32 %v3680, %v3715
        %v3733 = vsub.f32 %v3683, %v3717
        %v3734 = vmul.f32 %v3718, 1.442695
        %v3735 = vpow.pop %v3734
        %v3736 = vmul.f32 %v3719, 1.442695
        %v3737 = vpow.pop %v3736
        %v3738 = vmul.f32 %v3720, 1.442695
        %v3739 = vpow.pop %v3738
        %v3740 = vmul.f32 %v3721, 1.442695
        %v3741 = vpow.pop %v3740
        %v3742 = vmul.f32 %v3722, 1.442695
        %v3743 = vpow.pop %v3742
        %v3744 = vmul.f32 %v3723, 1.442695
        %v3745 = vpow.pop %v3744
        %v3746 = vmul.f32 %v3724, 1.442695
        %v3747 = vpow.pop %v3746
        %v3748 = vmul.f32 %v3725, 1.442695
        %v3749 = vpow.pop %v3748
        %v3750 = vmul.f32 %v3726, 1.442695
        %v3751 = vpow.pop %v3750
        %v3752 = vmul.f32 %v3727, 1.442695
        %v3753 = vpow.pop %v3752
        %v3754 = vmul.f32 %v3728, 1.442695
        %v3755 = vpow.pop %v3754
        %v3756 = vmul.f32 %v3729, 1.442695
        %v3757 = vpow.pop %v3756
        %v3758 = vmul.f32 %v3730, 1.442695
        %v3759 = vpow.pop %v3758
        %v3760 = vmul.f32 %v3731, 1.442695
        %v3761 = vpow.pop %v3760
        %v3762 = vmul.f32 %v3732, 1.442695
        %v3763 = vpow.pop %v3762
        %v3764 = vmul.f32 %v3733, 1.442695
        %v3765 = vpow.pop %v3764
        %3766 = vadd.xlane.f32.xlu0 %v3735
        %v3767 = vpop.xlane.xlu0 %3766
        %3768 = vadd.xlane.f32.xlu0 %v3737
        %v3769 = vpop.xlane.xlu0 %3768
        %3770 = vadd.xlane.f32.xlu0 %v3739
        %v3771 = vpop.xlane.xlu0 %3770
        %3772 = vadd.xlane.f32.xlu0 %v3741
        %v3773 = vpop.xlane.xlu0 %3772
        %3774 = vadd.xlane.f32.xlu0 %v3743
        %v3775 = vpop.xlane.xlu0 %3774
        %3776 = vadd.xlane.f32.xlu0 %v3745
        %v3777 = vpop.xlane.xlu0 %3776
        %3778 = vadd.xlane.f32.xlu0 %v3747
        %v3779 = vpop.xlane.xlu0 %3778
        %3780 = vadd.xlane.f32.xlu0 %v3749
        %v3781 = vpop.xlane.xlu0 %3780
        %3782 = vadd.xlane.f32.xlu0 %v3751
        %v3783 = vpop.xlane.xlu0 %3782
        %3784 = vadd.xlane.f32.xlu0 %v3753
        %v3785 = vpop.xlane.xlu0 %3784
        %3786 = vadd.xlane.f32.xlu0 %v3755
        %v3787 = vpop.xlane.xlu0 %3786
        %3788 = vadd.xlane.f32.xlu0 %v3757
        %v3789 = vpop.xlane.xlu0 %3788
        %3790 = vadd.xlane.f32.xlu0 %v3759
        %v3791 = vpop.xlane.xlu0 %3790
        %3792 = vadd.xlane.f32.xlu0 %v3761
        %v3793 = vpop.xlane.xlu0 %3792
        %3794 = vadd.xlane.f32.xlu0 %v3763
        %v3795 = vpop.xlane.xlu0 %3794
        %3796 = vadd.xlane.f32.xlu0 %v3765
        %v3797 = vpop.xlane.xlu0 %3796
        %v3798 = vpack.c.bf16 %v3737, %v3735
        %v3799 = vpack.c.bf16 %v3741, %v3739
        %v3800 = vpack.c.bf16 %v3745, %v3743
        %v3801 = vpack.c.bf16 %v3749, %v3747
        %v3802 = vpack.c.bf16 %v3753, %v3751
        %v3803 = vpack.c.bf16 %v3757, %v3755
        %v3804 = vpack.c.bf16 %v3761, %v3759
        %v3805 = vpack.c.bf16 %v3765, %v3763
        %v3806 = vpack.c.bf16 %v3382, %v3381
        %v3807 = vpack.c.bf16 %v3384, %v3383
        %v3808 = vpack.c.bf16 %v3386, %v3385
        %v3809 = vpack.c.bf16 %v3388, %v3387
        %v3810 = vpack.c.bf16 %v3390, %v3389
        %v3811 = vpack.c.bf16 %v3392, %v3391
        %v3812 = vpack.c.bf16 %v3394, %v3393
        %v3813 = vpack.c.bf16 %v3396, %v3395
        %3814 = vmatprep.subr.bf16.mxu0 0
        %3815 = vmatpush1.bf16.msra.mxu0 %v3813
        %3816 = vmatprep.subr.bf16.mxu0 0
        %3817 = vmatpush1.bf16.msra.mxu0 %v3812
        %3818 = vmatprep.subr.bf16.mxu0 0
        %3819 = vmatpush1.bf16.msra.mxu0 %v3811
        %3820 = vmatprep.subr.bf16.mxu0 0
        %3821 = vmatpush1.bf16.msra.mxu0 %v3810
        %3822 = vmatprep.subr.bf16.mxu0 0
        %3823 = vmatpush1.bf16.msra.mxu0 %v3809
        %3824 = vmatprep.subr.bf16.mxu0 0
        %3825 = vmatpush1.bf16.msra.mxu0 %v3808
        %3826 = vmatprep.subr.bf16.mxu0 0
        %3827 = vmatpush1.bf16.msra.mxu0 %v3807
        %3828 = vmatprep.subr.bf16.mxu0 0
        %3829 = vmatpush1.bf16.msra.mxu0 %v3806
        %3830 = vmatprep.subr.bf16.mxu0 0
        %3831 = vmatpush2.bf16.msra.mxu0 0
        %3832 = vmatprep.subr.bf16.mxu0 0
        %3833 = vmatpush2.bf16.msra.mxu0 0
        %3834 = vmatprep.subr.bf16.mxu0 0
        %3835 = vmatpush2.bf16.msra.mxu0 0
        %3836 = vmatprep.subr.bf16.mxu0 0
        %3837 = vmatpush2.bf16.msra.mxu0 0
        %3838 = vmatprep.subr.bf16.mxu0 0
        %3839 = vmatpush2.bf16.msra.mxu0 0
        %3840 = vmatprep.subr.bf16.mxu0 0
        %3841 = vmatpush2.bf16.msra.mxu0 0
        %3842 = vmatprep.subr.bf16.mxu0 0
        %3843 = vmatpush2.bf16.msra.mxu0 0
        %3844 = vmatprep.subr.bf16.mxu0 0
        %3845 = vmatpush2.bf16.msra.mxu0 0
        %3846 = vmatprep.mubr.bf16.mxu0 0
        %3847 = vmatmul.mubr.bf16.gmra.mxu0 %v3798
        %v3848 = vpop.f32.mrf.mxu0
        %v3849 = vadd.f32 0.0, %v3848
        %v3850 = vpop.f32.mrf.mxu0
        %v3851 = vpop.f32.mrf.mxu0
        %v3852 = vadd.f32 0.0, %v3851
        %v3853 = vpop.f32.mrf.mxu0
        %3854 = vmatprep.mubr.bf16.mxu0 0
        %3855 = vmatmul.mubr.bf16.gmra.mxu0 %v3799
        %v3856 = vpop.f32.mrf.mxu0
        %v3857 = vadd.f32 0.0, %v3856
        %v3858 = vpop.f32.mrf.mxu0
        %v3859 = vpop.f32.mrf.mxu0
        %v3860 = vadd.f32 0.0, %v3859
        %v3861 = vpop.f32.mrf.mxu0
        %3862 = vmatprep.mubr.bf16.mxu0 0
        %3863 = vmatmul.mubr.bf16.gmra.mxu0 %v3800
        %v3864 = vpop.f32.mrf.mxu0
        %v3865 = vadd.f32 0.0, %v3864
        %v3866 = vpop.f32.mrf.mxu0
        %v3867 = vpop.f32.mrf.mxu0
        %v3868 = vadd.f32 0.0, %v3867
        %v3869 = vpop.f32.mrf.mxu0
        %3870 = vmatprep.mubr.bf16.mxu0 0
        %3871 = vmatmul.mubr.bf16.gmra.mxu0 %v3801
        %v3872 = vpop.f32.mrf.mxu0
        %v3873 = vadd.f32 0.0, %v3872
        %v3874 = vpop.f32.mrf.mxu0
        %v3875 = vpop.f32.mrf.mxu0
        %v3876 = vadd.f32 0.0, %v3875
        %v3877 = vpop.f32.mrf.mxu0
        %3878 = vmatprep.mubr.bf16.mxu0 0
        %3879 = vmatmul.mubr.bf16.gmra.mxu0 %v3802
        %v3880 = vpop.f32.mrf.mxu0
        %v3881 = vadd.f32 0.0, %v3880
        %v3882 = vpop.f32.mrf.mxu0
        %v3883 = vpop.f32.mrf.mxu0
        %v3884 = vadd.f32 0.0, %v3883
        %v3885 = vpop.f32.mrf.mxu0
        %3886 = vmatprep.mubr.bf16.mxu0 0
        %3887 = vmatmul.mubr.bf16.gmra.mxu0 %v3803
        %v3888 = vpop.f32.mrf.mxu0
        %v3889 = vadd.f32 0.0, %v3888
        %v3890 = vpop.f32.mrf.mxu0
        %v3891 = vpop.f32.mrf.mxu0
        %v3892 = vadd.f32 0.0, %v3891
        %v3893 = vpop.f32.mrf.mxu0
        %3894 = vmatprep.mubr.bf16.mxu0 0
        %3895 = vmatmul.mubr.bf16.gmra.mxu0 %v3804
        %v3896 = vpop.f32.mrf.mxu0
        %v3897 = vadd.f32 0.0, %v3896
        %v3898 = vpop.f32.mrf.mxu0
        %v3899 = vpop.f32.mrf.mxu0
        %v3900 = vadd.f32 0.0, %v3899
        %v3901 = vpop.f32.mrf.mxu0
        %3902 = vmatprep.mubr.bf16.mxu0 0
        %3903 = vmatmul.mubr.bf16.gmra.mxu0 %v3805
        %v3904 = vpop.f32.mrf.mxu0
        %v3905 = vadd.f32 0.0, %v3904
        %v3906 = vpop.f32.mrf.mxu0
        %v3907 = vpop.f32.mrf.mxu0
        %v3908 = vadd.f32 0.0, %v3907
        %v3909 = vpop.f32.mrf.mxu0
        %3910 = vdwg.mxu0
        %v3911 = vrcp.pop %v3767
        %v3912 = vrcp.pop %v3769
        %v3913 = vrcp.pop %v3771
        %v3914 = vrcp.pop %v3773
        %v3915 = vrcp.pop %v3775
        %v3916 = vrcp.pop %v3777
        %v3917 = vrcp.pop %v3779
        %v3918 = vrcp.pop %v3781
        %v3919 = vrcp.pop %v3783
        %v3920 = vrcp.pop %v3785
        %v3921 = vrcp.pop %v3787
        %v3922 = vrcp.pop %v3789
        %v3923 = vrcp.pop %v3791
        %v3924 = vrcp.pop %v3793
        %v3925 = vrcp.pop %v3795
        %v3926 = vrcp.pop %v3797
        %v3927 = vmul.f32 %v3849, %v3911
        %v3928 = vmul.f32 %v3852, %v3912
        %v3929 = vmul.f32 %v3857, %v3913
        %v3930 = vmul.f32 %v3860, %v3914
        %v3931 = vmul.f32 %v3865, %v3915
        %v3932 = vmul.f32 %v3868, %v3916
        %v3933 = vmul.f32 %v3873, %v3917
        %v3934 = vmul.f32 %v3876, %v3918
        %v3935 = vmul.f32 %v3881, %v3919
        %v3936 = vmul.f32 %v3884, %v3920
        %v3937 = vmul.f32 %v3889, %v3921
        %v3938 = vmul.f32 %v3892, %v3922
        %v3939 = vmul.f32 %v3897, %v3923
        %v3940 = vmul.f32 %v3900, %v3924
        %v3941 = vmul.f32 %v3905, %v3925
        %v3942 = vmul.f32 %v3908, %v3926
        %v3943 = vpack.c.bf16 %v3928, %v3927
        %v3944 = vpack.c.bf16 %v3930, %v3929
        %v3945 = vpack.c.bf16 %v3932, %v3931
        %v3946 = vpack.c.bf16 %v3934, %v3933
        %v3947 = vpack.c.bf16 %v3936, %v3935
        %v3948 = vpack.c.bf16 %v3938, %v3937
        %v3949 = vpack.c.bf16 %v3940, %v3939
        %v3950 = vpack.c.bf16 %v3942, %v3941
        %v3951 = vld [vmem:[#allocation9] sm:$0xff]
        %v3952 = vld [vmem:[#allocation9 + $0x8] sm:$0xff]
        %v3953 = vld [vmem:[#allocation9 + $0x10] sm:$0xff]
        %v3954 = vld [vmem:[#allocation9 + $0x18] sm:$0xff]
        %v3955 = vld [vmem:[#allocation9 + $0x20] sm:$0xff]
        %v3956 = vld [vmem:[#allocation9 + $0x28] sm:$0xff]
        %v3957 = vld [vmem:[#allocation9 + $0x30] sm:$0xff]
        %v3958 = vld [vmem:[#allocation9 + $0x38] sm:$0xff]
        %v3959 = vld [vmem:[#allocation9 + $0x40] sm:$0xff]
        %v3960 = vld [vmem:[#allocation9 + $0x48] sm:$0xff]
        %v3961 = vld [vmem:[#allocation9 + $0x50] sm:$0xff]
        %v3962 = vld [vmem:[#allocation9 + $0x58] sm:$0xff]
        %v3963 = vld [vmem:[#allocation9 + $0x60] sm:$0xff]
        %v3964 = vld [vmem:[#allocation9 + $0x68] sm:$0xff]
        %v3965 = vld [vmem:[#allocation9 + $0x70] sm:$0xff]
        %v3966 = vld [vmem:[#allocation9 + $0x78] sm:$0xff]
        %v3967 = vld [vmem:[#allocation9 + $0x80] sm:$0xff]
        %v3968 = vld [vmem:[#allocation9 + $0x88] sm:$0xff]
        %v3969 = vld [vmem:[#allocation9 + $0x90] sm:$0xff]
        %v3970 = vld [vmem:[#allocation9 + $0x98] sm:$0xff]
        %v3971 = vld [vmem:[#allocation9 + $0xa0] sm:$0xff]
        %v3972 = vld [vmem:[#allocation9 + $0xa8] sm:$0xff]
        %v3973 = vld [vmem:[#allocation9 + $0xb0] sm:$0xff]
        %v3974 = vld [vmem:[#allocation9 + $0xb8] sm:$0xff]
        %v3975 = vld [vmem:[#allocation9 + $0xc0] sm:$0xff]
        %v3976 = vld [vmem:[#allocation9 + $0xc8] sm:$0xff]
        %v3977 = vld [vmem:[#allocation9 + $0xd0] sm:$0xff]
        %v3978 = vld [vmem:[#allocation9 + $0xd8] sm:$0xff]
        %v3979 = vld [vmem:[#allocation9 + $0xe0] sm:$0xff]
        %v3980 = vld [vmem:[#allocation9 + $0xe8] sm:$0xff]
        %v3981 = vld [vmem:[#allocation9 + $0xf0] sm:$0xff]
        %v3982 = vld [vmem:[#allocation9 + $0xf8] sm:$0xff]
        %v3983 = vld [vmem:[#allocation9 + $0x100] sm:$0xff]
        %v3984 = vld [vmem:[#allocation9 + $0x108] sm:$0xff]
        %v3985 = vld [vmem:[#allocation9 + $0x110] sm:$0xff]
        %v3986 = vld [vmem:[#allocation9 + $0x118] sm:$0xff]
        %v3987 = vld [vmem:[#allocation9 + $0x120] sm:$0xff]
        %v3988 = vld [vmem:[#allocation9 + $0x128] sm:$0xff]
        %v3989 = vld [vmem:[#allocation9 + $0x130] sm:$0xff]
        %v3990 = vld [vmem:[#allocation9 + $0x138] sm:$0xff]
        %v3991 = vld [vmem:[#allocation9 + $0x140] sm:$0xff]
        %v3992 = vld [vmem:[#allocation9 + $0x148] sm:$0xff]
        %v3993 = vld [vmem:[#allocation9 + $0x150] sm:$0xff]
        %v3994 = vld [vmem:[#allocation9 + $0x158] sm:$0xff]
        %v3995 = vld [vmem:[#allocation9 + $0x160] sm:$0xff]
        %v3996 = vld [vmem:[#allocation9 + $0x168] sm:$0xff]
        %v3997 = vld [vmem:[#allocation9 + $0x170] sm:$0xff]
        %v3998 = vld [vmem:[#allocation9 + $0x178] sm:$0xff]
        %v3999 = vld [vmem:[#allocation9 + $0x180] sm:$0xff]
        %v4000 = vld [vmem:[#allocation9 + $0x188] sm:$0xff]
        %v4001 = vld [vmem:[#allocation9 + $0x190] sm:$0xff]
        %v4002 = vld [vmem:[#allocation9 + $0x198] sm:$0xff]
        %v4003 = vld [vmem:[#allocation9 + $0x1a0] sm:$0xff]
        %v4004 = vld [vmem:[#allocation9 + $0x1a8] sm:$0xff]
        %v4005 = vld [vmem:[#allocation9 + $0x1b0] sm:$0xff]
        %v4006 = vld [vmem:[#allocation9 + $0x1b8] sm:$0xff]
        %v4007 = vld [vmem:[#allocation9 + $0x1c0] sm:$0xff]
        %v4008 = vld [vmem:[#allocation9 + $0x1c8] sm:$0xff]
        %v4009 = vld [vmem:[#allocation9 + $0x1d0] sm:$0xff]
        %v4010 = vld [vmem:[#allocation9 + $0x1d8] sm:$0xff]
        %v4011 = vld [vmem:[#allocation9 + $0x1e0] sm:$0xff]
        %v4012 = vld [vmem:[#allocation9 + $0x1e8] sm:$0xff]
        %v4013 = vld [vmem:[#allocation9 + $0x1f0] sm:$0xff]
        %v4014 = vld [vmem:[#allocation9 + $0x1f8] sm:$0xff]
        %v4079 = vunpack.c.l.b16 %v3951
        %v4080 = vunpack.c.h.b16 %v3951
        %v4081 = vunpack.c.l.b16 %v3952
        %v4082 = vunpack.c.h.b16 %v3952
        %v4083 = vunpack.c.l.b16 %v3953
        %v4084 = vunpack.c.h.b16 %v3953
        %v4085 = vunpack.c.l.b16 %v3954
        %v4086 = vunpack.c.h.b16 %v3954
        %v4087 = vunpack.c.l.b16 %v3955
        %v4088 = vunpack.c.h.b16 %v3955
        %v4089 = vunpack.c.l.b16 %v3956
        %v4090 = vunpack.c.h.b16 %v3956
        %v4091 = vunpack.c.l.b16 %v3957
        %v4092 = vunpack.c.h.b16 %v3957
        %v4093 = vunpack.c.l.b16 %v3958
        %v4094 = vunpack.c.h.b16 %v3958
        %v4095 = vunpack.c.l.b16 %v3959
        %v4096 = vunpack.c.h.b16 %v3959
        %v4097 = vunpack.c.l.b16 %v3960
        %v4098 = vunpack.c.h.b16 %v3960
        %v4099 = vunpack.c.l.b16 %v3961
        %v4100 = vunpack.c.h.b16 %v3961
        %v4101 = vunpack.c.l.b16 %v3962
        %v4102 = vunpack.c.h.b16 %v3962
        %v4103 = vunpack.c.l.b16 %v3963
        %v4104 = vunpack.c.h.b16 %v3963
        %v4105 = vunpack.c.l.b16 %v3964
        %v4106 = vunpack.c.h.b16 %v3964
        %v4107 = vunpack.c.l.b16 %v3965
        %v4108 = vunpack.c.h.b16 %v3965
        %v4109 = vunpack.c.l.b16 %v3966
        %v4110 = vunpack.c.h.b16 %v3966
        %v4111 = vunpack.c.l.b16 %v3967
        %v4112 = vunpack.c.h.b16 %v3967
        %v4113 = vunpack.c.l.b16 %v3968
        %v4114 = vunpack.c.h.b16 %v3968
        %v4115 = vunpack.c.l.b16 %v3969
        %v4116 = vunpack.c.h.b16 %v3969
        %v4117 = vunpack.c.l.b16 %v3970
        %v4118 = vunpack.c.h.b16 %v3970
        %v4119 = vunpack.c.l.b16 %v3971
        %v4120 = vunpack.c.h.b16 %v3971
        %v4121 = vunpack.c.l.b16 %v3972
        %v4122 = vunpack.c.h.b16 %v3972
        %v4123 = vunpack.c.l.b16 %v3973
        %v4124 = vunpack.c.h.b16 %v3973
        %v4125 = vunpack.c.l.b16 %v3974
        %v4126 = vunpack.c.h.b16 %v3974
        %v4127 = vunpack.c.l.b16 %v3975
        %v4128 = vunpack.c.h.b16 %v3975
        %v4129 = vunpack.c.l.b16 %v3976
        %v4130 = vunpack.c.h.b16 %v3976
        %v4131 = vunpack.c.l.b16 %v3977
        %v4132 = vunpack.c.h.b16 %v3977
        %v4133 = vunpack.c.l.b16 %v3978
        %v4134 = vunpack.c.h.b16 %v3978
        %v4135 = vunpack.c.l.b16 %v3979
        %v4136 = vunpack.c.h.b16 %v3979
        %v4137 = vunpack.c.l.b16 %v3980
        %v4138 = vunpack.c.h.b16 %v3980
        %v4139 = vunpack.c.l.b16 %v3981
        %v4140 = vunpack.c.h.b16 %v3981
        %v4141 = vunpack.c.l.b16 %v3982
        %v4142 = vunpack.c.h.b16 %v3982
        %v4143 = vunpack.c.l.b16 %v3983
        %v4144 = vunpack.c.h.b16 %v3983
        %v4145 = vunpack.c.l.b16 %v3984
        %v4146 = vunpack.c.h.b16 %v3984
        %v4147 = vunpack.c.l.b16 %v3985
        %v4148 = vunpack.c.h.b16 %v3985
        %v4149 = vunpack.c.l.b16 %v3986
        %v4150 = vunpack.c.h.b16 %v3986
        %v4151 = vunpack.c.l.b16 %v3987
        %v4152 = vunpack.c.h.b16 %v3987
        %v4153 = vunpack.c.l.b16 %v3988
        %v4154 = vunpack.c.h.b16 %v3988
        %v4155 = vunpack.c.l.b16 %v3989
        %v4156 = vunpack.c.h.b16 %v3989
        %v4157 = vunpack.c.l.b16 %v3990
        %v4158 = vunpack.c.h.b16 %v3990
        %v4159 = vunpack.c.l.b16 %v3991
        %v4160 = vunpack.c.h.b16 %v3991
        %v4161 = vunpack.c.l.b16 %v3992
        %v4162 = vunpack.c.h.b16 %v3992
        %v4163 = vunpack.c.l.b16 %v3993
        %v4164 = vunpack.c.h.b16 %v3993
        %v4165 = vunpack.c.l.b16 %v3994
        %v4166 = vunpack.c.h.b16 %v3994
        %v4167 = vunpack.c.l.b16 %v3995
        %v4168 = vunpack.c.h.b16 %v3995
        %v4169 = vunpack.c.l.b16 %v3996
        %v4170 = vunpack.c.h.b16 %v3996
        %v4171 = vunpack.c.l.b16 %v3997
        %v4172 = vunpack.c.h.b16 %v3997
        %v4173 = vunpack.c.l.b16 %v3998
        %v4174 = vunpack.c.h.b16 %v3998
        %v4175 = vunpack.c.l.b16 %v3999
        %v4176 = vunpack.c.h.b16 %v3999
        %v4177 = vunpack.c.l.b16 %v4000
        %v4178 = vunpack.c.h.b16 %v4000
        %v4179 = vunpack.c.l.b16 %v4001
        %v4180 = vunpack.c.h.b16 %v4001
        %v4181 = vunpack.c.l.b16 %v4002
        %v4182 = vunpack.c.h.b16 %v4002
        %v4183 = vunpack.c.l.b16 %v4003
        %v4184 = vunpack.c.h.b16 %v4003
        %v4185 = vunpack.c.l.b16 %v4004
        %v4186 = vunpack.c.h.b16 %v4004
        %v4187 = vunpack.c.l.b16 %v4005
        %v4188 = vunpack.c.h.b16 %v4005
        %v4189 = vunpack.c.l.b16 %v4006
        %v4190 = vunpack.c.h.b16 %v4006
        %v4191 = vunpack.c.l.b16 %v4007
        %v4192 = vunpack.c.h.b16 %v4007
        %v4193 = vunpack.c.l.b16 %v4008
        %v4194 = vunpack.c.h.b16 %v4008
        %v4195 = vunpack.c.l.b16 %v4009
        %v4196 = vunpack.c.h.b16 %v4009
        %v4197 = vunpack.c.l.b16 %v4010
        %v4198 = vunpack.c.h.b16 %v4010
        %v4199 = vunpack.c.l.b16 %v4011
        %v4200 = vunpack.c.h.b16 %v4011
        %v4201 = vunpack.c.l.b16 %v4012
        %v4202 = vunpack.c.h.b16 %v4012
        %v4203 = vunpack.c.l.b16 %v4013
        %v4204 = vunpack.c.h.b16 %v4013
        %v4205 = vunpack.c.l.b16 %v4014
        %v4206 = vunpack.c.h.b16 %v4014
        %v4207 = vpack.c.b16 %v4083, %v4079
        %v4208 = vpack.c.b16 %v4084, %v4080
        %v4209 = vpack.c.b16 %v4085, %v4081
        %v4210 = vpack.c.b16 %v4086, %v4082
        %v4211 = vpack.c.b16 %v4091, %v4087
        %v4212 = vpack.c.b16 %v4092, %v4088
        %v4213 = vpack.c.b16 %v4093, %v4089
        %v4214 = vpack.c.b16 %v4094, %v4090
        %v4215 = vpack.c.b16 %v4099, %v4095
        %v4216 = vpack.c.b16 %v4100, %v4096
        %v4217 = vpack.c.b16 %v4101, %v4097
        %v4218 = vpack.c.b16 %v4102, %v4098
        %v4219 = vpack.c.b16 %v4107, %v4103
        %v4220 = vpack.c.b16 %v4108, %v4104
        %v4221 = vpack.c.b16 %v4109, %v4105
        %v4222 = vpack.c.b16 %v4110, %v4106
        %v4223 = vpack.c.b16 %v4115, %v4111
        %v4224 = vpack.c.b16 %v4116, %v4112
        %v4225 = vpack.c.b16 %v4117, %v4113
        %v4226 = vpack.c.b16 %v4118, %v4114
        %v4227 = vpack.c.b16 %v4123, %v4119
        %v4228 = vpack.c.b16 %v4124, %v4120
        %v4229 = vpack.c.b16 %v4125, %v4121
        %v4230 = vpack.c.b16 %v4126, %v4122
        %v4231 = vpack.c.b16 %v4131, %v4127
        %v4232 = vpack.c.b16 %v4132, %v4128
        %v4233 = vpack.c.b16 %v4133, %v4129
        %v4234 = vpack.c.b16 %v4134, %v4130
        %v4235 = vpack.c.b16 %v4139, %v4135
        %v4236 = vpack.c.b16 %v4140, %v4136
        %v4237 = vpack.c.b16 %v4141, %v4137
        %v4238 = vpack.c.b16 %v4142, %v4138
        %v4239 = vpack.c.b16 %v4147, %v4143
        %v4240 = vpack.c.b16 %v4148, %v4144
        %v4241 = vpack.c.b16 %v4149, %v4145
        %v4242 = vpack.c.b16 %v4150, %v4146
        %v4243 = vpack.c.b16 %v4155, %v4151
        %v4244 = vpack.c.b16 %v4156, %v4152
        %v4245 = vpack.c.b16 %v4157, %v4153
        %v4246 = vpack.c.b16 %v4158, %v4154
        %v4247 = vpack.c.b16 %v4163, %v4159
        %v4248 = vpack.c.b16 %v4164, %v4160
        %v4249 = vpack.c.b16 %v4165, %v4161
        %v4250 = vpack.c.b16 %v4166, %v4162
        %v4251 = vpack.c.b16 %v4171, %v4167
        %v4252 = vpack.c.b16 %v4172, %v4168
        %v4253 = vpack.c.b16 %v4173, %v4169
        %v4254 = vpack.c.b16 %v4174, %v4170
        %v4255 = vpack.c.b16 %v4179, %v4175
        %v4256 = vpack.c.b16 %v4180, %v4176
        %v4257 = vpack.c.b16 %v4181, %v4177
        %v4258 = vpack.c.b16 %v4182, %v4178
        %v4259 = vpack.c.b16 %v4187, %v4183
        %v4260 = vpack.c.b16 %v4188, %v4184
        %v4261 = vpack.c.b16 %v4189, %v4185
        %v4262 = vpack.c.b16 %v4190, %v4186
        %v4263 = vpack.c.b16 %v4195, %v4191
        %v4264 = vpack.c.b16 %v4196, %v4192
        %v4265 = vpack.c.b16 %v4197, %v4193
        %v4266 = vpack.c.b16 %v4198, %v4194
        %v4267 = vpack.c.b16 %v4203, %v4199
        %v4268 = vpack.c.b16 %v4204, %v4200
        %v4269 = vpack.c.b16 %v4205, %v4201
        %v4270 = vpack.c.b16 %v4206, %v4202
        %4335 = vmatprep.subr.bf16.mxu0 %v4236
        %4336 = vmatpush1.bf16.msra.mxu0 %v4235
        %4337 = vmatprep.subr.bf16.mxu0 %v4232
        %4338 = vmatpush1.bf16.msra.mxu0 %v4231
        %4339 = vmatprep.subr.bf16.mxu0 %v4228
        %4340 = vmatpush1.bf16.msra.mxu0 %v4227
        %4341 = vmatprep.subr.bf16.mxu0 %v4224
        %4342 = vmatpush1.bf16.msra.mxu0 %v4223
        %4343 = vmatprep.subr.bf16.mxu0 %v4220
        %4344 = vmatpush1.bf16.msra.mxu0 %v4219
        %4345 = vmatprep.subr.bf16.mxu0 %v4216
        %4346 = vmatpush1.bf16.msra.mxu0 %v4215
        %4347 = vmatprep.subr.bf16.mxu0 %v4212
        %4348 = vmatpush1.bf16.msra.mxu0 %v4211
        %4349 = vmatprep.subr.bf16.mxu0 %v4208
        %4350 = vmatpush1.bf16.msra.mxu0 %v4207
        %4351 = vmatprep.subr.bf16.mxu0 %v4268
        %4352 = vmatpush2.bf16.msra.mxu0 %v4267
        %4353 = vmatprep.subr.bf16.mxu0 %v4264
        %4354 = vmatpush2.bf16.msra.mxu0 %v4263
        %4355 = vmatprep.subr.bf16.mxu0 %v4260
        %4356 = vmatpush2.bf16.msra.mxu0 %v4259
        %4357 = vmatprep.subr.bf16.mxu0 %v4256
        %4358 = vmatpush2.bf16.msra.mxu0 %v4255
        %4359 = vmatprep.subr.bf16.mxu0 %v4252
        %4360 = vmatpush2.bf16.msra.mxu0 %v4251
        %4361 = vmatprep.subr.bf16.mxu0 %v4248
        %4362 = vmatpush2.bf16.msra.mxu0 %v4247
        %4363 = vmatprep.subr.bf16.mxu0 %v4244
        %4364 = vmatpush2.bf16.msra.mxu0 %v4243
        %4365 = vmatprep.subr.bf16.mxu0 %v4240
        %4366 = vmatpush2.bf16.msra.mxu0 %v4239
        %4367 = vmatprep.mubr.bf16.mxu0 %v3943
        %4368 = vmatmul.mubr.bf16.gmra.mxu0 %v3341
        %v4369 = vpop.f32.mrf.mxu0
        %v4370 = vadd.f32 0.0, %v4369
        %v4371 = vpop.f32.mrf.mxu0
        %v4372 = vadd.f32 0.0, %v4371
        %v4373 = vpop.f32.mrf.mxu0
        %v4374 = vadd.f32 0.0, %v4373
        %v4375 = vpop.f32.mrf.mxu0
        %v4376 = vadd.f32 0.0, %v4375
        %4377 = vmatprep.mubr.bf16.mxu0 %v3944
        %4378 = vmatmul.mubr.bf16.gmra.mxu0 %v3342
        %v4379 = vpop.f32.mrf.mxu0
        %v4380 = vadd.f32 0.0, %v4379
        %v4381 = vpop.f32.mrf.mxu0
        %v4382 = vadd.f32 0.0, %v4381
        %v4383 = vpop.f32.mrf.mxu0
        %v4384 = vadd.f32 0.0, %v4383
        %v4385 = vpop.f32.mrf.mxu0
        %v4386 = vadd.f32 0.0, %v4385
        %4387 = vmatprep.mubr.bf16.mxu0 %v3945
        %4388 = vmatmul.mubr.bf16.gmra.mxu0 %v3343
        %v4389 = vpop.f32.mrf.mxu0
        %v4390 = vadd.f32 0.0, %v4389
        %v4391 = vpop.f32.mrf.mxu0
        %v4392 = vadd.f32 0.0, %v4391
        %v4393 = vpop.f32.mrf.mxu0
        %v4394 = vadd.f32 0.0, %v4393
        %v4395 = vpop.f32.mrf.mxu0
        %v4396 = vadd.f32 0.0, %v4395
        %4397 = vmatprep.mubr.bf16.mxu0 %v3946
        %4398 = vmatmul.mubr.bf16.gmra.mxu0 %v3344
        %v4399 = vpop.f32.mrf.mxu0
        %v4400 = vadd.f32 0.0, %v4399
        %v4401 = vpop.f32.mrf.mxu0
        %v4402 = vadd.f32 0.0, %v4401
        %v4403 = vpop.f32.mrf.mxu0
        %v4404 = vadd.f32 0.0, %v4403
        %v4405 = vpop.f32.mrf.mxu0
        %v4406 = vadd.f32 0.0, %v4405
        %4407 = vmatprep.mubr.bf16.mxu0 %v3947
        %4408 = vmatmul.mubr.bf16.gmra.mxu0 %v3345
        %v4409 = vpop.f32.mrf.mxu0
        %v4410 = vadd.f32 0.0, %v4409
        %v4411 = vpop.f32.mrf.mxu0
        %v4412 = vadd.f32 0.0, %v4411
        %v4413 = vpop.f32.mrf.mxu0
        %v4414 = vadd.f32 0.0, %v4413
        %v4415 = vpop.f32.mrf.mxu0
        %v4416 = vadd.f32 0.0, %v4415
        %4417 = vmatprep.mubr.bf16.mxu0 %v3948
        %4418 = vmatmul.mubr.bf16.gmra.mxu0 %v3346
        %v4419 = vpop.f32.mrf.mxu0
        %v4420 = vadd.f32 0.0, %v4419
        %v4421 = vpop.f32.mrf.mxu0
        %v4422 = vadd.f32 0.0, %v4421
        %v4423 = vpop.f32.mrf.mxu0
        %v4424 = vadd.f32 0.0, %v4423
        %v4425 = vpop.f32.mrf.mxu0
        %v4426 = vadd.f32 0.0, %v4425
        %4427 = vmatprep.mubr.bf16.mxu0 %v3949
        %4428 = vmatmul.mubr.bf16.gmra.mxu0 %v3347
        %v4429 = vpop.f32.mrf.mxu0
        %v4430 = vadd.f32 0.0, %v4429
        %v4431 = vpop.f32.mrf.mxu0
        %v4432 = vadd.f32 0.0, %v4431
        %v4433 = vpop.f32.mrf.mxu0
        %v4434 = vadd.f32 0.0, %v4433
        %v4435 = vpop.f32.mrf.mxu0
        %v4436 = vadd.f32 0.0, %v4435
        %4437 = vmatprep.mubr.bf16.mxu0 %v3950
        %4438 = vmatmul.mubr.bf16.gmra.mxu0 %v3348
        %v4439 = vpop.f32.mrf.mxu0
        %v4440 = vadd.f32 0.0, %v4439
        %v4441 = vpop.f32.mrf.mxu0
        %v4442 = vadd.f32 0.0, %v4441
        %v4443 = vpop.f32.mrf.mxu0
        %v4444 = vadd.f32 0.0, %v4443
        %v4445 = vpop.f32.mrf.mxu0
        %v4446 = vadd.f32 0.0, %v4445
        %4447 = vdwg.mxu0
        %4448 = vmatprep.subr.bf16.mxu0 %v4238
        %4449 = vmatpush1.bf16.msra.mxu0 %v4237
        %4450 = vmatprep.subr.bf16.mxu0 %v4234
        %4451 = vmatpush1.bf16.msra.mxu0 %v4233
        %4452 = vmatprep.subr.bf16.mxu0 %v4230
        %4453 = vmatpush1.bf16.msra.mxu0 %v4229
        %4454 = vmatprep.subr.bf16.mxu0 %v4226
        %4455 = vmatpush1.bf16.msra.mxu0 %v4225
        %4456 = vmatprep.subr.bf16.mxu0 %v4222
        %4457 = vmatpush1.bf16.msra.mxu0 %v4221
        %4458 = vmatprep.subr.bf16.mxu0 %v4218
        %4459 = vmatpush1.bf16.msra.mxu0 %v4217
        %4460 = vmatprep.subr.bf16.mxu0 %v4214
        %4461 = vmatpush1.bf16.msra.mxu0 %v4213
        %4462 = vmatprep.subr.bf16.mxu0 %v4210
        %4463 = vmatpush1.bf16.msra.mxu0 %v4209
        %4464 = vmatprep.subr.bf16.mxu0 %v4270
        %4465 = vmatpush2.bf16.msra.mxu0 %v4269
        %4466 = vmatprep.subr.bf16.mxu0 %v4266
        %4467 = vmatpush2.bf16.msra.mxu0 %v4265
        %4468 = vmatprep.subr.bf16.mxu0 %v4262
        %4469 = vmatpush2.bf16.msra.mxu0 %v4261
        %4470 = vmatprep.subr.bf16.mxu0 %v4258
        %4471 = vmatpush2.bf16.msra.mxu0 %v4257
        %4472 = vmatprep.subr.bf16.mxu0 %v4254
        %4473 = vmatpush2.bf16.msra.mxu0 %v4253
        %4474 = vmatprep.subr.bf16.mxu0 %v4250
        %4475 = vmatpush2.bf16.msra.mxu0 %v4249
        %4476 = vmatprep.subr.bf16.mxu0 %v4246
        %4477 = vmatpush2.bf16.msra.mxu0 %v4245
        %4478 = vmatprep.subr.bf16.mxu0 %v4242
        %4479 = vmatpush2.bf16.msra.mxu0 %v4241
        %4480 = vmatprep.mubr.bf16.mxu0 %v3943
        %4481 = vmatmul.mubr.bf16.gmra.mxu0 %v3341
        %v4482 = vpop.f32.mrf.mxu0
        %v4483 = vadd.f32 0.0, %v4482
        %v4484 = vpop.f32.mrf.mxu0
        %v4485 = vadd.f32 0.0, %v4484
        %v4486 = vpop.f32.mrf.mxu0
        %v4487 = vadd.f32 0.0, %v4486
        %v4488 = vpop.f32.mrf.mxu0
        %v4489 = vadd.f32 0.0, %v4488
        %4490 = vmatprep.mubr.bf16.mxu0 %v3944
        %4491 = vmatmul.mubr.bf16.gmra.mxu0 %v3342
        %v4492 = vpop.f32.mrf.mxu0
        %v4493 = vadd.f32 0.0, %v4492
        %v4494 = vpop.f32.mrf.mxu0
        %v4495 = vadd.f32 0.0, %v4494
        %v4496 = vpop.f32.mrf.mxu0
        %v4497 = vadd.f32 0.0, %v4496
        %v4498 = vpop.f32.mrf.mxu0
        %v4499 = vadd.f32 0.0, %v4498
        %4500 = vmatprep.mubr.bf16.mxu0 %v3945
        %4501 = vmatmul.mubr.bf16.gmra.mxu0 %v3343
        %v4502 = vpop.f32.mrf.mxu0
        %v4503 = vadd.f32 0.0, %v4502
        %v4504 = vpop.f32.mrf.mxu0
        %v4505 = vadd.f32 0.0, %v4504
        %v4506 = vpop.f32.mrf.mxu0
        %v4507 = vadd.f32 0.0, %v4506
        %v4508 = vpop.f32.mrf.mxu0
        %v4509 = vadd.f32 0.0, %v4508
        %4510 = vmatprep.mubr.bf16.mxu0 %v3946
        %4511 = vmatmul.mubr.bf16.gmra.mxu0 %v3344
        %v4512 = vpop.f32.mrf.mxu0
        %v4513 = vadd.f32 0.0, %v4512
        %v4514 = vpop.f32.mrf.mxu0
        %v4515 = vadd.f32 0.0, %v4514
        %v4516 = vpop.f32.mrf.mxu0
        %v4517 = vadd.f32 0.0, %v4516
        %v4518 = vpop.f32.mrf.mxu0
        %v4519 = vadd.f32 0.0, %v4518
        %4520 = vmatprep.mubr.bf16.mxu0 %v3947
        %4521 = vmatmul.mubr.bf16.gmra.mxu0 %v3345
        %v4522 = vpop.f32.mrf.mxu0
        %v4523 = vadd.f32 0.0, %v4522
        %v4524 = vpop.f32.mrf.mxu0
        %v4525 = vadd.f32 0.0, %v4524
        %v4526 = vpop.f32.mrf.mxu0
        %v4527 = vadd.f32 0.0, %v4526
        %v4528 = vpop.f32.mrf.mxu0
        %v4529 = vadd.f32 0.0, %v4528
        %4530 = vmatprep.mubr.bf16.mxu0 %v3948
        %4531 = vmatmul.mubr.bf16.gmra.mxu0 %v3346
        %v4532 = vpop.f32.mrf.mxu0
        %v4533 = vadd.f32 0.0, %v4532
        %v4534 = vpop.f32.mrf.mxu0
        %v4535 = vadd.f32 0.0, %v4534
        %v4536 = vpop.f32.mrf.mxu0
        %v4537 = vadd.f32 0.0, %v4536
        %v4538 = vpop.f32.mrf.mxu0
        %v4539 = vadd.f32 0.0, %v4538
        %4540 = vmatprep.mubr.bf16.mxu0 %v3949
        %4541 = vmatmul.mubr.bf16.gmra.mxu0 %v3347
        %v4542 = vpop.f32.mrf.mxu0
        %v4543 = vadd.f32 0.0, %v4542
        %v4544 = vpop.f32.mrf.mxu0
        %v4545 = vadd.f32 0.0, %v4544
        %v4546 = vpop.f32.mrf.mxu0
        %v4547 = vadd.f32 0.0, %v4546
        %v4548 = vpop.f32.mrf.mxu0
        %v4549 = vadd.f32 0.0, %v4548
        %4550 = vmatprep.mubr.bf16.mxu0 %v3950
        %4551 = vmatmul.mubr.bf16.gmra.mxu0 %v3348
        %v4552 = vpop.f32.mrf.mxu0
        %v4553 = vadd.f32 0.0, %v4552
        %v4554 = vpop.f32.mrf.mxu0
        %v4555 = vadd.f32 0.0, %v4554
        %v4556 = vpop.f32.mrf.mxu0
        %v4557 = vadd.f32 0.0, %v4556
        %v4558 = vpop.f32.mrf.mxu0
        %v4559 = vadd.f32 0.0, %v4558
        %4560 = vdwg.mxu0
        %v4561 = vsel %vm2491, %v4483, %v4370
        %v4562 = vsel %vm2491, %v4485, %v4372
        %v4563 = vsel %vm2492, %v4487, %v4374
        %v4564 = vsel %vm2492, %v4489, %v4376
        %v4565 = vsel %vm2493, %v4493, %v4380
        %v4566 = vsel %vm2493, %v4495, %v4382
        %v4567 = vsel %vm2494, %v4497, %v4384
        %v4568 = vsel %vm2494, %v4499, %v4386
        %v4569 = vsel %vm2495, %v4503, %v4390
        %v4570 = vsel %vm2495, %v4505, %v4392
        %v4571 = vsel %vm2496, %v4507, %v4394
        %v4572 = vsel %vm2496, %v4509, %v4396
        %v4573 = vsel %vm2497, %v4513, %v4400
        %v4574 = vsel %vm2497, %v4515, %v4402
        %v4575 = vsel %vm2498, %v4517, %v4404
        %v4576 = vsel %vm2498, %v4519, %v4406
        %v4577 = vsel %vm2499, %v4523, %v4410
        %v4578 = vsel %vm2499, %v4525, %v4412
        %v4579 = vsel %vm2500, %v4527, %v4414
        %v4580 = vsel %vm2500, %v4529, %v4416
        %v4581 = vsel %vm2501, %v4533, %v4420
        %v4582 = vsel %vm2501, %v4535, %v4422
        %v4583 = vsel %vm2502, %v4537, %v4424
        %v4584 = vsel %vm2502, %v4539, %v4426
        %v4585 = vsel %vm2503, %v4543, %v4430
        %v4586 = vsel %vm2503, %v4545, %v4432
        %v4587 = vsel %vm2504, %v4547, %v4434
        %v4588 = vsel %vm2504, %v4549, %v4436
        %v4589 = vsel %vm2505, %v4553, %v4440
        %v4590 = vsel %vm2505, %v4555, %v4442
        %v4591 = vsel %vm2506, %v4557, %v4444
        %v4592 = vsel %vm2506, %v4559, %v4446
        %4593 = vst [vmem:[%s382] sm:$0xff] %v4561
        %4594 = vst [vmem:[%s382 + $0x8] sm:$0xff] %v4562
        %4595 = vst [vmem:[%s382 + $0x10] sm:$0xff] %v4563
        %4596 = vst [vmem:[%s382 + $0x18] sm:$0xff] %v4564
        %4597 = vst [vmem:[%s382 + $0x20] sm:$0xff] %v4565
        %4598 = vst [vmem:[%s382 + $0x28] sm:$0xff] %v4566
        %4599 = vst [vmem:[%s382 + $0x30] sm:$0xff] %v4567
        %4600 = vst [vmem:[%s382 + $0x38] sm:$0xff] %v4568
        %4601 = vst [vmem:[%s382 + $0x40] sm:$0xff] %v4569
        %4602 = vst [vmem:[%s382 + $0x48] sm:$0xff] %v4570
        %4603 = vst [vmem:[%s382 + $0x50] sm:$0xff] %v4571
        %4604 = vst [vmem:[%s382 + $0x58] sm:$0xff] %v4572
        %4605 = vst [vmem:[%s382 + $0x60] sm:$0xff] %v4573
        %4606 = vst [vmem:[%s382 + $0x68] sm:$0xff] %v4574
        %4607 = vst [vmem:[%s382 + $0x70] sm:$0xff] %v4575
        %4608 = vst [vmem:[%s382 + $0x78] sm:$0xff] %v4576
        %4609 = vst [vmem:[%s382 + $0x80] sm:$0xff] %v4577
        %4610 = vst [vmem:[%s382 + $0x88] sm:$0xff] %v4578
        %4611 = vst [vmem:[%s382 + $0x90] sm:$0xff] %v4579
        %4612 = vst [vmem:[%s382 + $0x98] sm:$0xff] %v4580
        %4613 = vst [vmem:[%s382 + $0xa0] sm:$0xff] %v4581
        %4614 = vst [vmem:[%s382 + $0xa8] sm:$0xff] %v4582
        %4615 = vst [vmem:[%s382 + $0xb0] sm:$0xff] %v4583
        %4616 = vst [vmem:[%s382 + $0xb8] sm:$0xff] %v4584
        %4617 = vst [vmem:[%s382 + $0xc0] sm:$0xff] %v4585
        %4618 = vst [vmem:[%s382 + $0xc8] sm:$0xff] %v4586
        %4619 = vst [vmem:[%s382 + $0xd0] sm:$0xff] %v4587
        %4620 = vst [vmem:[%s382 + $0xd8] sm:$0xff] %v4588
        %4621 = vst [vmem:[%s382 + $0xe0] sm:$0xff] %v4589
        %4622 = vst [vmem:[%s382 + $0xe8] sm:$0xff] %v4590
        %4623 = vst [vmem:[%s382 + $0xf0] sm:$0xff] %v4591
        %4624 = vst [vmem:[%s382 + $0xf8] sm:$0xff] %v4592
        %s4625 = sand.u32 %s213, 1
        %s4626 = scalar_lea.sflag [#allocation5], %s4625
        %s4627 = sand.u32 %s213, 1
        %s4628 = smul.addr %s4627, 256
        %s4629 = scalar_lea.vmem [#allocation11], %s4628
        // Predicated region
        $region69: #{tpu_custom_call.1} parent=51 // pred_check
          %p4630 = pneg %p223
        $region70: #{tpu_custom_call.1} parent=51 // pred_check_branch
          %4632 = sbr.rel (%p4630) target = $region72
        $region71: #{tpu_custom_call.1} parent=51 // pred_region
          %s4634 = ssub.s32 4096, 4096
          %4635 = vsyncadd %s4626, %s4634
          %s4636 = smul.addr %s27, 32
          %s4637 = smul.addr %s4636, 128
          %s4638 = scalar_lea.hbm %s8, %s4637
          %s4639 = sshll.u32 %s4629, 4
          %s4640 = int_to_ptr.vmem [resolvable:$true] %s4639
          %4645 = dma.vmem_to_hbm [thread:$0]  %s4640, 4096, %s4638, %s4626, 256, 256, 16
        $region72: #{tpu_custom_call.1} parent=51 // pred_fallthru
          _
      $region52: #{tpu_custom_call.1} parent=5 // pred_fallthru
        _
      %p4646 = scmp.le.s32.totalorder 2, %s22
      // Predicated region
      $region73: #{tpu_custom_call.1} parent=5 // pred_check
        %p4647 = pneg %p4646
      $region74: #{tpu_custom_call.1} parent=5 // pred_check_branch
        %4649 = sbr.rel (%p4647) target = $region76
      $region75: #{tpu_custom_call.1} parent=5 // pred_region
        %s4650 = ssub.s32 %s22, 2
        // Predicated region
        $region77: #{tpu_custom_call.1} parent=75 // pred_check
          %p4651 = pneg %p229
        $region78: #{tpu_custom_call.1} parent=75 // pred_check_branch
          %4653 = sbr.rel (%p4651) target = $region80
        $region79: #{tpu_custom_call.1} parent=75 // pred_region
          %s4654 = sand.u32 %s214, 1
          %s4655 = scalar_lea.sflag [#allocation5], %s4654
          %s4656 = sand.u32 %s214, 1
          %s4657 = smul.addr %s4656, 256
          %s4658 = scalar_lea.vmem [#allocation11], %s4657
          %4659 = dma.done %s4655, 4096
        $region80: #{tpu_custom_call.1} parent=75 // pred_fallthru
          _
      $region76: #{tpu_custom_call.1} parent=5 // pred_fallthru
        _
    $region6: #{tpu_custom_call.1} parent=1 // loop_footer
      %s26 = sadd.s32 1, %s22
    $region7: #{tpu_custom_call.1} parent=1 // loop_footer_branch
      %21 = sbr.rel target = $region3
    $region8: #{tpu_custom_call.1} parent=1 // loop_exit
      _
    %4660 = vsyncpa [#allocation4], 1
    %s4661 = scalar_lea.sflag [#allocation4], 1
    %4662 = vsyncpa %s4661, 1
    %4663 = vsyncpa [#allocation7], 1
    %4664 = vsyncpa [#allocation10], 1
    %4665 = vsyncpa [#allocation5], 1
    %s4666 = scalar_lea.sflag [#allocation5], 1
    %4667 = vsyncpa %s4666, 1

</llo_original>
